<compile_context>
chip_gen: v7x
topology: tpu7x:2x2x1
jax: 0.10.0
libtpu: 0.0.40
codegen_flags: <defaults>
</compile_context>

<pallas_src>
import functools

import jax
import jax.numpy as jnp
from jax.experimental import pallas as pl
from jax.experimental.pallas import tpu as pltpu


# ----------------------------------------------------------------------------
# helpers
# ----------------------------------------------------------------------------

def _round_up(x, m):
    return ((x + m - 1) // m) * m


def _cdiv(a, b):
    return -(-a // b)


def _tpu_generation():
    try:
        kind = jax.devices()[0].device_kind.lower()
    except Exception:
        return 6
    if "v7" in kind:
        return 7
    if "v6" in kind:
        return 6
    return 5  # v5e and older: use the conservative (small-VMEM) config.


def _tile_targets(operand_bytes):
    """(tm, tn, tk, vmem_limit_bytes) targets per TPU generation / dtype."""
    gen = _tpu_generation()
    if gen >= 7:
        # v7x: ridge ~310 FLOP/B but only 64 MiB physical VMEM.  f32 operands
        # double every buffer, so halve the K tile for f32 inputs.
        tk_t = 256 if operand_bytes >= 4 else 512
        return 1024, 1024, tk_t, 48 << 20
    if gen == 6:
        # v6e: ridge ~650 FLOP/B -> ~1024-wide output tiles, raised VMEM limit.
        return 1024, 1024, 512, 80 << 20
    # v5e: ridge ~240 FLOP/B is already cleared at 512x512; keep the
    # double-buffered footprint small (default scoped VMEM is only 16 MiB).
    return 512, 512, 512, 48 << 20


def _tile_dim(dim, target, gran, pad_full_to_gran=False):
    """Pick (tile, padded_dim) for one dimension.

    If the dim fits in one tile we use the full extent (no zero padding,
    optionally rounded up to `gran` for lane-dense stores).  Otherwise we use
    a balanced tile (a multiple of `gran`) that minimises zero padding.
    """
    if dim <= target:
        t = _round_up(dim, gran) if pad_full_to_gran else dim
        return t, t
    nblk = _cdiv(dim, target)
    t = _round_up(_cdiv(dim, nblk), gran)
    return t, t * nblk


# ----------------------------------------------------------------------------
# kernels
# ----------------------------------------------------------------------------

def _mm_kernel_single(x_ref, y_ref, o_ref, *, precision):
    # Single K step: no accumulator / init-finalize needed.
    o_ref[...] = jnp.dot(
        x_ref[...], y_ref[...],
        preferred_element_type=jnp.float32, precision=precision,
    ).astype(o_ref.dtype)


def _mm_kernel_inplace_f32(x_ref, y_ref, o_ref, *, precision):
    # f32 output: accumulate directly into the VMEM-resident output block
    # (its block index is constant across k) — no scratch, no epilogue copy.
    k = pl.program_id(3)

    @pl.when(k == 0)
    def _init():
        o_ref[...] = jnp.zeros_like(o_ref)

    o_ref[...] += jnp.dot(x_ref[...], y_ref[...],
                          preferred_element_type=jnp.float32,
                          precision=precision)


def _mm_kernel_acc(x_ref, y_ref, o_ref, acc_ref, *, precision):
    # bf16/f16 output: fp32 VMEM accumulator, init/finalize via pl.when.
    k = pl.program_id(3)

    @pl.when(k == 0)
    def _init():
        acc_ref[...] = jnp.zeros_like(acc_ref)

    acc_ref[...] += jnp.dot(x_ref[...], y_ref[...],
                            preferred_element_type=jnp.float32,
                            precision=precision)

    @pl.when(k == pl.num_programs(3) - 1)
    def _store():
        o_ref[...] = acc_ref[...].astype(o_ref.dtype)


def _bmm_small_kernel(x_ref, y_ref, o_ref, *, x_batched, y_batched, precision):
    # A block of `bt` tiny matmuls per grid step (batched einsum -> MXU).
    if x_batched and y_batched:
        r = jnp.einsum("bmk,bkn->bmn", x_ref[...], y_ref[...],
                       preferred_element_type=jnp.float32, precision=precision)
    elif x_batched:
        r = jnp.einsum("bmk,kn->bmn", x_ref[...], y_ref[0],
                       preferred_element_type=jnp.float32, precision=precision)
    elif y_batched:
        r = jnp.einsum("mk,bkn->bmn", x_ref[0], y_ref[...],
                       preferred_element_type=jnp.float32, precision=precision)
    else:
        r = jnp.dot(x_ref[0], y_ref[0],
                    preferred_element_type=jnp.float32,
                    precision=precision)[None]
    o_ref[...] = r.astype(o_ref.dtype)


# ----------------------------------------------------------------------------
# pallas_call wrappers
# ----------------------------------------------------------------------------

def _bmm_batched_small(xb, yb, B, out_dtype, precision):
    """Many tiny matmuls: block the batch axis to amortise per-step overhead."""
    Bx, M, K = xb.shape
    By, _, N = yb.shape
    elem = jnp.dtype(xb.dtype).itemsize
    out_elem = jnp.dtype(out_dtype).itemsize

    x_batched = Bx > 1
    y_batched = By > 1

    per_elem_bytes = (M * K + K * N) * elem + M * N * out_elem
    bt = max(1, min(B, 128, (2 << 20) // max(per_elem_bytes, 1)))
    Bp = _round_up(B, bt)

    if x_batched and Bp != B:
        xb = jnp.pad(xb, ((0, Bp - B), (0, 0), (0, 0)))
    if y_batched and Bp != B:
        yb = jnp.pad(yb, ((0, Bp - B), (0, 0), (0, 0)))

    x_spec = (pl.BlockSpec((bt, M, K), lambda i: (i, 0, 0)) if x_batched
              else pl.BlockSpec((1, M, K), lambda i: (0, 0, 0)))
    y_spec = (pl.BlockSpec((bt, K, N), lambda i: (i, 0, 0)) if y_batched
              else pl.BlockSpec((1, K, N), lambda i: (0, 0, 0)))

    kernel = functools.partial(_bmm_small_kernel, x_batched=x_batched,
                               y_batched=y_batched, precision=precision)

    out = pl.pallas_call(
        kernel,
        out_shape=jax.ShapeDtypeStruct((Bp, M, N), out_dtype),
        grid_spec=pltpu.PrefetchScalarGridSpec(
            num_scalar_prefetch=0,
            grid=(Bp // bt,),
            in_specs=[x_spec, y_spec],
            out_specs=pl.BlockSpec((bt, M, N), lambda i: (i, 0, 0)),
        ),
        compiler_params=pltpu.CompilerParams(
            dimension_semantics=("parallel",)),
        cost_estimate=pl.CostEstimate(
            flops=int(2 * B * M * N * K),
            transcendentals=0,
            bytes_accessed=int(xb.size * elem + yb.size * elem
                               + Bp * M * N * out_elem)),
    )(xb, yb)

    if Bp != B:
        out = out[:B]
    return out


def _bmm_tiled(xb, yb, B, out_dtype, precision):
    """General tiled batched matmul: grid (B, M/tm, N/tn, K/tk)."""
    Bx, M, K = xb.shape
    By, _, N = yb.shape
    elem = jnp.dtype(xb.dtype).itemsize
    out_elem = jnp.dtype(out_dtype).itemsize

    tm_t, tn_t, tk_t, vmem_limit = _tile_targets(elem)
    m_gran = 16 if elem <= 2 else 8  # sublane packing for bf16

    tm, Mp = _tile_dim(M, tm_t, m_gran)                      # no pad if it fits
    tn, Np = _tile_dim(N, tn_t, 128, pad_full_to_gran=True)  # lane-dense stores
    tk, Kp = _tile_dim(K, tk_t, 128)                         # no pad if it fits

    # Give both TensorCores work when a non-trivial problem fits one tile.
    if (B == 1 and Mp // tm == 1 and Np // tn == 1
            and M * N * K >= (1 << 22)):
        if Np % 256 == 0 and Np >= 256:
            tn = Np // 2
        elif Mp % (2 * m_gran) == 0 and Mp >= 2 * m_gran:
            tm = Mp // 2

    if (Mp, Kp) != (M, K):
        xb = jnp.pad(xb, ((0, 0), (0, Mp - M), (0, Kp - K)))
    if (Kp, Np) != (K, N):
        yb = jnp.pad(yb, ((0, 0), (0, Kp - K), (0, Np - N)))

    nk = Kp // tk
    grid = (B, Mp // tm, Np // tn, nk)

    # Broadcast batch handled in the index_map: batch-size-1 operands are
    # passed un-broadcast and always read block 0 along the batch axis.
    x_idx = ((lambda b, i, j, k: (b, i, k)) if Bx == B
             else (lambda b, i, j, k: (0, i, k)))
    y_idx = ((lambda b, i, j, k: (b, k, j)) if By == B
             else (lambda b, i, j, k: (0, k, j)))

    if nk == 1:
        kernel = functools.partial(_mm_kernel_single, precision=precision)
        scratch = []
    elif out_dtype == jnp.dtype(jnp.float32):
        kernel = functools.partial(_mm_kernel_inplace_f32, precision=precision)
        scratch = []
    else:
        kernel = functools.partial(_mm_kernel_acc, precision=precision)
        scratch = [pltpu.VMEM((tm, tn), jnp.float32)]

    out = pl.pallas_call(
        kernel,
        out_shape=jax.ShapeDtypeStruct((B, Mp, Np), out_dtype),
        grid_spec=pltpu.PrefetchScalarGridSpec(
            num_scalar_prefetch=0,
            grid=grid,
            in_specs=[
                pl.BlockSpec((None, tm, tk), x_idx),
                pl.BlockSpec((None, tk, tn), y_idx),
            ],
            out_specs=pl.BlockSpec((None, tm, tn),
                                   lambda b, i, j, k: (b, i, j)),
            scratch_shapes=scratch,
        ),
        compiler_params=pltpu.CompilerParams(
            dimension_semantics=("parallel", "parallel", "parallel",
                                 "arbitrary"),
            vmem_limit_bytes=vmem_limit),
        cost_estimate=pl.CostEstimate(
            flops=int(2 * B * M * N * K),
            transcendentals=0,
            bytes_accessed=int(xb.size * elem + yb.size * elem
                               + B * Mp * Np * out_elem)),
    )(xb, yb)

    if (Mp, Np) != (M, N):
        out = out[:, :M, :N]
    return out


def _matmul_3d(xb, yb, B, out_dtype, precision):
    _, M, K = xb.shape
    _, _, N = yb.shape
    # Tiny per-batch matmuls (e.g. chatglm attention heads): batch-blocked path.
    if B > 1 and M <= 256 and N <= 256 and K <= 512:
        return _bmm_batched_small(xb, yb, B, out_dtype, precision)
    return _bmm_tiled(xb, yb, B, out_dtype, precision)


# ----------------------------------------------------------------------------
# torch.matmul semantics wrapper
# ----------------------------------------------------------------------------

_SUPPORTED = tuple(jnp.dtype(d) for d in (jnp.float32, jnp.bfloat16,
                                          jnp.float16))


def matmul(x, y):
    """torch.matmul(x, y): 1-D promotion + batch broadcasting + matmul."""
    x = jnp.asarray(x)
    y = jnp.asarray(y)

    if 0 in x.shape or 0 in y.shape:
        return jnp.matmul(x, y)

    out_dtype = jnp.promote_types(x.dtype, y.dtype)
    if jnp.dtype(out_dtype) not in _SUPPORTED:
        # TODO(synk): integer / f64 matmul has no MXU path (v7x MXU is
        # float-only); fall back to XLA for those dtypes.
        return jnp.matmul(x, y)

    x = x.astype(out_dtype)
    y = y.astype(out_dtype)

    # f32 operands: HIGHEST precision so the MXU does not silently use a
    # reduced-precision pass; bf16/f16 use the native MXU path (default).
    precision = (jax.lax.Precision.HIGHEST
                 if jnp.dtype(out_dtype) == jnp.dtype(jnp.float32) else None)

    # torch.matmul 1-D promotion rules.
    x_vec = x.ndim == 1
    y_vec = y.ndim == 1
    if x_vec:
        x = x[None, :]
    if y_vec:
        y = y[:, None]

    *bx, M, K = x.shape
    *by, K2, N = y.shape
    assert K == K2, f"contracting dims mismatch: {K} vs {K2}"

    batch = jnp.broadcast_shapes(tuple(bx), tuple(by))
    B = 1
    for d in batch:
        B *= int(d)
    B = max(B, 1)

    def _flatten_batch(a):
        # Flatten batch dims to one leading axis WITHOUT materialising
        # broadcast copies: a batch-size-1 operand stays size 1 and its
        # BlockSpec index_map pins the batch block index to 0.
        size = 1
        for d in a.shape[:-2]:
            size *= int(d)
        if size == B or size == 1:
            return a.reshape((max(size, 1),) + a.shape[-2:])
        # Mixed partial broadcast (rare): materialise.
        a = jnp.broadcast_to(a, batch + a.shape[-2:])
        return a.reshape((B,) + a.shape[-2:])

    xb = _flatten_batch(x)
    yb = _flatten_batch(y)

    out = _matmul_3d(xb, yb, B, jnp.dtype(out_dtype), precision)
    out = out.reshape(batch + (M, N))
    if x_vec:
        out = jnp.squeeze(out, axis=-2)
    if y_vec:
        out = jnp.squeeze(out, axis=-1)
    return out


# ----------------------------------------------------------------------------
# self-test
# ----------------------------------------------------------------------------

if __name__ == "__main__":
    key = jax.random.PRNGKey(0)
    k1, k2, k3, k4, k5, k6 = jax.random.split(key, 6)

    # 1) chatglm CoreAttention shapes: (B,H,Sq,D) @ (B,H,D,Skv)
    #    -> batch-blocked small-matmul path, both operands batched.
    B, H, Sq, D, Skv = 2, 4, 8, 32, 8
    q = jax.random.normal(k1, (B, H, Sq, D), dtype=jnp.float32)
    km = jax.random.normal(k2, (B, H, D, Skv), dtype=jnp.float32)

    out = jax.block_until_ready(matmul(q, km))
    ref = jnp.matmul(q, km, precision=jax.lax.Precision.HIGHEST)
    assert out.shape == ref.shape and out.dtype == ref.dtype
    assert jnp.allclose(out, ref, atol=1e-4, rtol=1e-4), \
        float(jnp.max(jnp.abs(out - ref)))

    # bf16 operands (production dtype) into the MXU, f32 accumulation.
    out_bf = jax.block_until_ready(
        matmul(q.astype(jnp.bfloat16), km.astype(jnp.bfloat16)))
    assert out_bf.dtype == jnp.bfloat16
    assert jnp.allclose(out_bf.astype(jnp.float32), ref, atol=2e-1, rtol=5e-2)

    # 2) broadcast batch: batched activations @ shared 2-D weight — the weight
    #    is NOT materialised per batch element (index_map pins its batch to 0).
    w = jax.random.normal(k3, (D, 16), dtype=jnp.float32)
    out_w = jax.block_until_ready(matmul(q, w))
    ref_w = jnp.matmul(q, w, precision=jax.lax.Precision.HIGHEST)
    assert jnp.allclose(out_w, ref_w, atol=1e-4, rtol=1e-4)

    # 3) plain 2-D matmul, non-aligned shapes -> tiled path, K/M unpadded,
    #    N padded to a lane-dense multiple of 128 and sliced back.
    a = jax.random.normal(k4, (160, 96), dtype=jnp.float32)
    b = jax.random.normal(k5, (96, 200), dtype=jnp.float32)
    out2 = jax.block_until_ready(matmul(a, b))
    ref2 = jnp.matmul(a, b, precision=jax.lax.Precision.HIGHEST)
    assert jnp.allclose(out2, ref2, atol=1e-3, rtol=1e-4), \
        float(jnp.max(jnp.abs(out2 - ref2)))

    # 4) K larger than one tile -> multi-step reduction with the fp32
    #    accumulator scratch (bf16 output) exercised.
    c = jax.random.normal(k6, (8, 1280), dtype=jnp.bfloat16)
    d2 = jax.random.normal(k1, (1280, 256), dtype=jnp.bfloat16)
    out3 = jax.block_until_ready(matmul(c, d2))
    ref3 = jnp.matmul(c.astype(jnp.float32), d2.astype(jnp.float32),
                      precision=jax.lax.Precision.HIGHEST)
    assert out3.dtype == jnp.bfloat16
    assert jnp.allclose(out3.astype(jnp.float32), ref3, atol=1.0, rtol=5e-2)

    print("KERNEL_OK")
</pallas_src>

<mosaic_0001>
module attributes {stable_mosaic.version = 11 : i64} {
  func.func @_bmm_small_kernel(%arg0: i32, %arg1: memref<8x8x32xf32, #tpu.memory_space<vmem>>, %arg2: memref<8x32x8xf32, #tpu.memory_space<vmem>>, %arg3: memref<8x8x8xf32, #tpu.memory_space<vmem>>) attributes {dimension_semantics = [#tpu.dimension_semantics<parallel>], iteration_bounds = array<i64: 1>, scalar_prefetch = 0 : i64, scratch_operands = 0 : i64, tpu.core_type = #tpu.core_type<tc>, window_params = [{transform_indices = @transform_0, window_bounds = array<i64: 8, 8, 32>}, {transform_indices = @transform_1, window_bounds = array<i64: 8, 32, 8>}, {transform_indices = @transform_2, window_bounds = array<i64: 8, 8, 8>}]} {
    %c0 = arith.constant 0 : index
    %c0_0 = arith.constant 0 : index
    %c0_1 = arith.constant 0 : index
    %0 = vector.load %arg1[%c0, %c0_0, %c0_1] : memref<8x8x32xf32, #tpu.memory_space<vmem>>, vector<8x8x32xf32>
    %c0_2 = arith.constant 0 : index
    %c0_3 = arith.constant 0 : index
    %c0_4 = arith.constant 0 : index
    %1 = vector.load %arg2[%c0_2, %c0_3, %c0_4] : memref<8x32x8xf32, #tpu.memory_space<vmem>>, vector<8x32x8xf32>
    "tpu.trace_start"() <{level = 10 : i32, message = "bmk,bkn->bmn"}> : () -> ()
    %cst = arith.constant dense<0.000000e+00> : vector<8x8x8xf32>
    %2 = tpu.matmul %0, %1, %cst {dimension_numbers = #tpu.dot_dimension_numbers<[2], [1], [1], [2], [0, 0, 0, 1, 1, 2], [0], [0]>, precision = #tpu.contract_precision<fp32>} : vector<8x8x32xf32>, vector<8x32x8xf32>, vector<8x8x8xf32> -> vector<8x8x8xf32>
    "tpu.trace_stop"() : () -> ()
    %c0_5 = arith.constant 0 : index
    %c0_6 = arith.constant 0 : index
    %c0_7 = arith.constant 0 : index
    %3 = vector.load %arg3[%c0_5, %c0_6, %c0_7] : memref<8x8x8xf32, #tpu.memory_space<vmem>>, vector<8x8x8xf32>
    tpu.vector_store %arg3[%c0_5, %c0_6, %c0_7], %2 {strides = array<i32>} : memref<8x8x8xf32, #tpu.memory_space<vmem>>, vector<8x8x8xf32>,
    return
  }
  func.func @transform_0(%arg0: i32) -> (i32, i32, i32) {
    %c0_i32 = arith.constant 0 : i32
    %c0_i32_0 = arith.constant 0 : i32
    %c0_i32_1 = arith.constant 0 : i32
    return %arg0, %c0_i32, %c0_i32_0 : i32, i32, i32
  }
  func.func @transform_1(%arg0: i32) -> (i32, i32, i32) {
    %c0_i32 = arith.constant 0 : i32
    %c0_i32_0 = arith.constant 0 : i32
    %c0_i32_1 = arith.constant 0 : i32
    return %arg0, %c0_i32, %c0_i32_0 : i32, i32, i32
  }
  func.func @transform_2(%arg0: i32) -> (i32, i32, i32) {
    %c0_i32 = arith.constant 0 : i32
    %c0_i32_0 = arith.constant 0 : i32
    %c0_i32_1 = arith.constant 0 : i32
    return %arg0, %c0_i32, %c0_i32_0 : i32, i32, i32
  }
}

</mosaic_0001>

<llo_original>
// kernel: tpu_custom_call.1
$region0: #{tpu_custom_call.1}
  #allocation0 [shape = 'u32[]', space=smem, size = 0x4, offset = 0x4, fixed_abs, tag = 'smem constant byte address 0x4 - core index']
  #allocation1 [shape = 'u32[144,128]{1,0:T(1,128)}', space=vmem, size = 0x12000, scoped, tag = 'internal scratch']
  %s0 = inlined_call_operand.vmem [shape: f32[8,8,32], index: 0, kind: input, shape index: {}]
  %s1 = inlined_call_operand.vmem [shape: f32[8,32,8], index: 1, kind: input, shape index: {}]
  %s2 = inlined_call_operand.hbm [shape: f32[8,8,8], index: 2, kind: output, shape index: {}]
  %s3 = sld [smem:[#allocation0]]
  $region18: #{tpu_custom_call.1} parent=0
    _
  %s5 = ssub.s32 1, %s3
  %s6 = scalar_select 0, %s5, %s3
  $region1: #{tpu_custom_call.1} parent=0
    #allocation2 [shape = 'u8[32768]{0}', space=vmem, size = 0x8000, scoped, tag = 'output window, operand 0, single buffered']
    #allocation3 [shape = 's32[1]{0}', space=sflag, size = 0x4, scoped, tag = 'scoped memory for tpu_custom_call.1']
    %7 = vsyncpa [#allocation3], 0
    // Predicated region
    $region2: #{tpu_custom_call.1} parent=1 // pred_check
      _
    $region3: #{tpu_custom_call.1} parent=1 // pred_check_branch
      %9 = sbr.rel (0) target = $region5
    $region4: #{tpu_custom_call.1} parent=1 // pred_region
      _
    $region5: #{tpu_custom_call.1} parent=1 // pred_fallthru
      _
    // Predicated region
    $region6: #{tpu_custom_call.1} parent=1 // pred_check
      _
    $region7: #{tpu_custom_call.1} parent=1 // pred_check_branch
      %11 = sbr.rel (0) target = $region9
    $region8: #{tpu_custom_call.1} parent=1 // pred_region
      _
    $region9: #{tpu_custom_call.1} parent=1 // pred_fallthru
      _
    %v12 = vld [vmem:[%s0] sm:$0xff]
    %v13 = vld [vmem:[%s0 + $0x8] sm:$0xff]
    %v14 = vld [vmem:[%s0 + $0x10] sm:$0xff]
    %v15 = vld [vmem:[%s0 + $0x18] sm:$0xff]
    %v16 = vld [vmem:[%s0 + $0x20] sm:$0xff]
    %v17 = vld [vmem:[%s0 + $0x28] sm:$0xff]
    %v18 = vld [vmem:[%s0 + $0x30] sm:$0xff]
    %v19 = vld [vmem:[%s0 + $0x38] sm:$0xff]
    %v20 = vld [vmem:[%s1] sm:$0xff]
    %v21 = vld [vmem:[%s1 + $0x8] sm:$0xff]
    %v22 = vld [vmem:[%s1 + $0x10] sm:$0xff]
    %v23 = vld [vmem:[%s1 + $0x18] sm:$0xff]
    %v24 = vld [vmem:[%s1 + $0x20] sm:$0xff]
    %v25 = vld [vmem:[%s1 + $0x28] sm:$0xff]
    %v26 = vld [vmem:[%s1 + $0x30] sm:$0xff]
    %v27 = vld [vmem:[%s1 + $0x38] sm:$0xff]
    %v28 = vld [vmem:[%s1 + $0x40] sm:$0xff]
    %v29 = vld [vmem:[%s1 + $0x48] sm:$0xff]
    %v30 = vld [vmem:[%s1 + $0x50] sm:$0xff]
    %v31 = vld [vmem:[%s1 + $0x58] sm:$0xff]
    %v32 = vld [vmem:[%s1 + $0x60] sm:$0xff]
    %v33 = vld [vmem:[%s1 + $0x68] sm:$0xff]
    %v34 = vld [vmem:[%s1 + $0x70] sm:$0xff]
    %v35 = vld [vmem:[%s1 + $0x78] sm:$0xff]
    %v36 = vld [vmem:[%s1 + $0x80] sm:$0xff]
    %v37 = vld [vmem:[%s1 + $0x88] sm:$0xff]
    %v38 = vld [vmem:[%s1 + $0x90] sm:$0xff]
    %v39 = vld [vmem:[%s1 + $0x98] sm:$0xff]
    %v40 = vld [vmem:[%s1 + $0xa0] sm:$0xff]
    %v41 = vld [vmem:[%s1 + $0xa8] sm:$0xff]
    %v42 = vld [vmem:[%s1 + $0xb0] sm:$0xff]
    %v43 = vld [vmem:[%s1 + $0xb8] sm:$0xff]
    %v44 = vld [vmem:[%s1 + $0xc0] sm:$0xff]
    %v45 = vld [vmem:[%s1 + $0xc8] sm:$0xff]
    %v46 = vld [vmem:[%s1 + $0xd0] sm:$0xff]
    %v47 = vld [vmem:[%s1 + $0xd8] sm:$0xff]
    %v48 = vld [vmem:[%s1 + $0xe0] sm:$0xff]
    %v49 = vld [vmem:[%s1 + $0xe8] sm:$0xff]
    %v50 = vld [vmem:[%s1 + $0xf0] sm:$0xff]
    %v51 = vld [vmem:[%s1 + $0xf8] sm:$0xff]
    %vm52 = vcmask 261120
    %v54 = vsel %vm52, %v12, 0
    %56 = vmatprep.subr.mxu0 0.0
    %v57 = vand.u32 %v20, 4294901760
    %58 = vmatpush1.msra.mxu0 %v57
    %59 = vmatprep.subr.mxu0 0.0
    %v60 = vand.u32 %v21, 4294901760
    %61 = vmatpush1.msra.mxu0 %v60
    %62 = vmatprep.subr.mxu0 0.0
    %v63 = vand.u32 %v22, 4294901760
    %64 = vmatpush1.msra.mxu0 %v63
    %65 = vmatprep.subr.mxu0 0.0
    %v66 = vand.u32 %v23, 4294901760
    %67 = vmatpush1.msra.mxu0 %v66
    %68 = vmatprep.subr.mxu0 0.0
    %69 = vmatpush1.msra.mxu0 0.0
    %70 = vmatprep.subr.mxu0 0.0
    %71 = vmatpush1.msra.mxu0 0.0
    %72 = vmatprep.subr.mxu0 0.0
    %73 = vmatpush1.msra.mxu0 0.0
    %74 = vmatprep.subr.mxu0 0.0
    %75 = vmatpush1.msra.mxu0 0.0
    %76 = vmatprep.subr.mxu0 0.0
    %77 = vmatpush1.msra.mxu0 0.0
    %78 = vmatprep.subr.mxu0 0.0
    %79 = vmatpush1.msra.mxu0 0.0
    %80 = vmatprep.subr.mxu0 0.0
    %81 = vmatpush1.msra.mxu0 0.0
    %82 = vmatprep.subr.mxu0 0.0
    %83 = vmatpush1.msra.mxu0 0.0
    %84 = vmatprep.subr.mxu0 0.0
    %85 = vmatpush1.msra.mxu0 0.0
    %86 = vmatprep.subr.mxu0 0.0
    %87 = vmatpush1.msra.mxu0 0.0
    %88 = vmatprep.subr.mxu0 0.0
    %89 = vmatpush1.msra.mxu0 0.0
    %90 = vmatprep.subr.mxu0 0.0
    %91 = vmatpush1.msra.mxu0 0.0
    %92 = vmatprep.subr.mxu0 0.0
    %93 = vmatpush1.msra.mxu0 0.0
    %94 = vmatprep.subr.mxu0 0.0
    %95 = vmatpush1.msra.mxu0 0.0
    %96 = vmatprep.subr.mxu0 0.0
    %97 = vmatpush1.msra.mxu0 0.0
    %98 = vmatprep.subr.mxu0 0.0
    %99 = vmatpush1.msra.mxu0 0.0
    %100 = vmatprep.subr.mxu0 0.0
    %101 = vmatpush1.msra.mxu0 0.0
    %102 = vmatprep.subr.mxu0 0.0
    %103 = vmatpush1.msra.mxu0 0.0
    %104 = vmatprep.subr.mxu0 0.0
    %105 = vmatpush1.msra.mxu0 0.0
    %106 = vmatprep.subr.mxu0 0.0
    %107 = vmatpush1.msra.mxu0 0.0
    %108 = vmatprep.subr.mxu0 0.0
    %109 = vmatpush1.msra.mxu0 0.0
    %110 = vmatprep.subr.mxu0 0.0
    %111 = vmatpush1.msra.mxu0 0.0
    %112 = vmatprep.subr.mxu0 0.0
    %113 = vmatpush1.msra.mxu0 0.0
    %114 = vmatprep.subr.mxu0 0.0
    %115 = vmatpush1.msra.mxu0 0.0
    %116 = vmatprep.subr.mxu0 0.0
    %117 = vmatpush1.msra.mxu0 0.0
    %118 = vmatprep.subr.mxu0 0.0
    %119 = vmatpush1.msra.mxu0 0.0
    %120 = vmatprep.subr.mxu0 0.0
    %121 = vmatpush1.msra.mxu0 0.0
    %122 = vmatprep.subr.mxu0 0.0
    %123 = vmatpush1.msra.mxu0 0.0
    %124 = vmatprep.mubr.f32.mxu0 0.0
    %v125 = vand.u32 %v54, 4294901760
    %v126 = vsub.f32 %v54, %v125
    %v127 = vand.u32 %v126, 4294901760
    %v128 = vsub.f32 %v126, %v127
    %v129 = vand.u32 %v128, 4294901760
    %130 = vmatmul.mubr.f32.gmra.mrb[0].mxu0 %v129
    %v131 = vpop.f32.mrb[0].mxu0
    %v132 = vadd.f32 0.0, %v131
    %v133 = vpop.f32.mrb[0].mxu0
    %134 = vdwg.mxu0
    %135 = vmatprep.subr.mxu0 0.0
    %v136 = vand.u32 %v20, 4294901760
    %v137 = vsub.f32 %v20, %v136
    %v138 = vand.u32 %v137, 4294901760
    %v139 = vsub.f32 %v137, %v138
    %v140 = vand.u32 %v139, 4294901760
    %141 = vmatpush1.msra.mxu0 %v140
    %142 = vmatprep.subr.mxu0 0.0
    %v143 = vand.u32 %v21, 4294901760
    %v144 = vsub.f32 %v21, %v143
    %v145 = vand.u32 %v144, 4294901760
    %v146 = vsub.f32 %v144, %v145
    %v147 = vand.u32 %v146, 4294901760
    %148 = vmatpush1.msra.mxu0 %v147
    %149 = vmatprep.subr.mxu0 0.0
    %v150 = vand.u32 %v22, 4294901760
    %v151 = vsub.f32 %v22, %v150
    %v152 = vand.u32 %v151, 4294901760
    %v153 = vsub.f32 %v151, %v152
    %v154 = vand.u32 %v153, 4294901760
    %155 = vmatpush1.msra.mxu0 %v154
    %156 = vmatprep.subr.mxu0 0.0
    %v157 = vand.u32 %v23, 4294901760
    %v158 = vsub.f32 %v23, %v157
    %v159 = vand.u32 %v158, 4294901760
    %v160 = vsub.f32 %v158, %v159
    %v161 = vand.u32 %v160, 4294901760
    %162 = vmatpush1.msra.mxu0 %v161
    %163 = vmatprep.subr.mxu0 0.0
    %164 = vmatpush1.msra.mxu0 0.0
    %165 = vmatprep.subr.mxu0 0.0
    %166 = vmatpush1.msra.mxu0 0.0
    %167 = vmatprep.subr.mxu0 0.0
    %168 = vmatpush1.msra.mxu0 0.0
    %169 = vmatprep.subr.mxu0 0.0
    %170 = vmatpush1.msra.mxu0 0.0
    %171 = vmatprep.subr.mxu0 0.0
    %172 = vmatpush1.msra.mxu0 0.0
    %173 = vmatprep.subr.mxu0 0.0
    %174 = vmatpush1.msra.mxu0 0.0
    %175 = vmatprep.subr.mxu0 0.0
    %176 = vmatpush1.msra.mxu0 0.0
    %177 = vmatprep.subr.mxu0 0.0
    %178 = vmatpush1.msra.mxu0 0.0
    %179 = vmatprep.subr.mxu0 0.0
    %180 = vmatpush1.msra.mxu0 0.0
    %181 = vmatprep.subr.mxu0 0.0
    %182 = vmatpush1.msra.mxu0 0.0
    %183 = vmatprep.subr.mxu0 0.0
    %184 = vmatpush1.msra.mxu0 0.0
    %185 = vmatprep.subr.mxu0 0.0
    %186 = vmatpush1.msra.mxu0 0.0
    %187 = vmatprep.subr.mxu0 0.0
    %188 = vmatpush1.msra.mxu0 0.0
    %189 = vmatprep.subr.mxu0 0.0
    %190 = vmatpush1.msra.mxu0 0.0
    %191 = vmatprep.subr.mxu0 0.0
    %192 = vmatpush1.msra.mxu0 0.0
    %193 = vmatprep.subr.mxu0 0.0
    %194 = vmatpush1.msra.mxu0 0.0
    %195 = vmatprep.subr.mxu0 0.0
    %196 = vmatpush1.msra.mxu0 0.0
    %197 = vmatprep.subr.mxu0 0.0
    %198 = vmatpush1.msra.mxu0 0.0
    %199 = vmatprep.subr.mxu0 0.0
    %200 = vmatpush1.msra.mxu0 0.0
    %201 = vmatprep.subr.mxu0 0.0
    %202 = vmatpush1.msra.mxu0 0.0
    %203 = vmatprep.subr.mxu0 0.0
    %204 = vmatpush1.msra.mxu0 0.0
    %205 = vmatprep.subr.mxu0 0.0
    %206 = vmatpush1.msra.mxu0 0.0
    %207 = vmatprep.subr.mxu0 0.0
    %208 = vmatpush1.msra.mxu0 0.0
    %209 = vmatprep.subr.mxu0 0.0
    %210 = vmatpush1.msra.mxu0 0.0
    %211 = vmatprep.subr.mxu0 0.0
    %212 = vmatpush1.msra.mxu0 0.0
    %213 = vmatprep.subr.mxu0 0.0
    %214 = vmatpush1.msra.mxu0 0.0
    %215 = vmatprep.subr.mxu0 0.0
    %216 = vmatpush1.msra.mxu0 0.0
    %217 = vmatprep.subr.mxu0 0.0
    %218 = vmatpush1.msra.mxu0 0.0
    %219 = vmatprep.mubr.f32.mxu0 0.0
    %v220 = vand.u32 %v54, 4294901760
    %221 = vmatmul.mubr.f32.gmra.mrb[0].mxu0 %v220
    %v222 = vpop.f32.mrb[0].mxu0
    %v223 = vadd.f32 %v132, %v222
    %v224 = vpop.f32.mrb[0].mxu0
    %225 = vdwg.mxu0
    %226 = vmatprep.subr.mxu0 0.0
    %v227 = vand.u32 %v20, 4294901760
    %v228 = vsub.f32 %v20, %v227
    %229 = vmatpush1.msra.mxu0 %v228
    %230 = vmatprep.subr.mxu0 0.0
    %v231 = vand.u32 %v21, 4294901760
    %v232 = vsub.f32 %v21, %v231
    %233 = vmatpush1.msra.mxu0 %v232
    %234 = vmatprep.subr.mxu0 0.0
    %v235 = vand.u32 %v22, 4294901760
    %v236 = vsub.f32 %v22, %v235
    %237 = vmatpush1.msra.mxu0 %v236
    %238 = vmatprep.subr.mxu0 0.0
    %v239 = vand.u32 %v23, 4294901760
    %v240 = vsub.f32 %v23, %v239
    %241 = vmatpush1.msra.mxu0 %v240
    %242 = vmatprep.subr.mxu0 0.0
    %243 = vmatpush1.msra.mxu0 0.0
    %244 = vmatprep.subr.mxu0 0.0
    %245 = vmatpush1.msra.mxu0 0.0
    %246 = vmatprep.subr.mxu0 0.0
    %247 = vmatpush1.msra.mxu0 0.0
    %248 = vmatprep.subr.mxu0 0.0
    %249 = vmatpush1.msra.mxu0 0.0
    %250 = vmatprep.subr.mxu0 0.0
    %251 = vmatpush1.msra.mxu0 0.0
    %252 = vmatprep.subr.mxu0 0.0
    %253 = vmatpush1.msra.mxu0 0.0
    %254 = vmatprep.subr.mxu0 0.0
    %255 = vmatpush1.msra.mxu0 0.0
    %256 = vmatprep.subr.mxu0 0.0
    %257 = vmatpush1.msra.mxu0 0.0
    %258 = vmatprep.subr.mxu0 0.0
    %259 = vmatpush1.msra.mxu0 0.0
    %260 = vmatprep.subr.mxu0 0.0
    %261 = vmatpush1.msra.mxu0 0.0
    %262 = vmatprep.subr.mxu0 0.0
    %263 = vmatpush1.msra.mxu0 0.0
    %264 = vmatprep.subr.mxu0 0.0
    %265 = vmatpush1.msra.mxu0 0.0
    %266 = vmatprep.subr.mxu0 0.0
    %267 = vmatpush1.msra.mxu0 0.0
    %268 = vmatprep.subr.mxu0 0.0
    %269 = vmatpush1.msra.mxu0 0.0
    %270 = vmatprep.subr.mxu0 0.0
    %271 = vmatpush1.msra.mxu0 0.0
    %272 = vmatprep.subr.mxu0 0.0
    %273 = vmatpush1.msra.mxu0 0.0
    %274 = vmatprep.subr.mxu0 0.0
    %275 = vmatpush1.msra.mxu0 0.0
    %276 = vmatprep.subr.mxu0 0.0
    %277 = vmatpush1.msra.mxu0 0.0
    %278 = vmatprep.subr.mxu0 0.0
    %279 = vmatpush1.msra.mxu0 0.0
    %280 = vmatprep.subr.mxu0 0.0
    %281 = vmatpush1.msra.mxu0 0.0
    %282 = vmatprep.subr.mxu0 0.0
    %283 = vmatpush1.msra.mxu0 0.0
    %284 = vmatprep.subr.mxu0 0.0
    %285 = vmatpush1.msra.mxu0 0.0
    %286 = vmatprep.subr.mxu0 0.0
    %287 = vmatpush1.msra.mxu0 0.0
    %288 = vmatprep.subr.mxu0 0.0
    %289 = vmatpush1.msra.mxu0 0.0
    %290 = vmatprep.subr.mxu0 0.0
    %291 = vmatpush1.msra.mxu0 0.0
    %292 = vmatprep.subr.mxu0 0.0
    %293 = vmatpush1.msra.mxu0 0.0
    %294 = vmatprep.subr.mxu0 0.0
    %295 = vmatpush1.msra.mxu0 0.0
    %296 = vmatprep.subr.mxu0 0.0
    %297 = vmatpush1.msra.mxu0 0.0
    %298 = vmatprep.mubr.f32.mxu0 0.0
    %v299 = vand.u32 %v54, 4294901760
    %v300 = vsub.f32 %v54, %v299
    %301 = vmatmul.mubr.f32.gmra.mrb[0].mxu0 %v300
    %v302 = vpop.f32.mrb[0].mxu0
    %v303 = vadd.f32 %v223, %v302
    %v304 = vpop.f32.mrb[0].mxu0
    %305 = vdwg.mxu0
    %306 = vmatprep.subr.mxu0 0.0
    %v307 = vand.u32 %v20, 4294901760
    %308 = vmatpush1.msra.mxu0 %v307
    %309 = vmatprep.subr.mxu0 0.0
    %v310 = vand.u32 %v21, 4294901760
    %311 = vmatpush1.msra.mxu0 %v310
    %312 = vmatprep.subr.mxu0 0.0
    %v313 = vand.u32 %v22, 4294901760
    %314 = vmatpush1.msra.mxu0 %v313
    %315 = vmatprep.subr.mxu0 0.0
    %v316 = vand.u32 %v23, 4294901760
    %317 = vmatpush1.msra.mxu0 %v316
    %318 = vmatprep.subr.mxu0 0.0
    %319 = vmatpush1.msra.mxu0 0.0
    %320 = vmatprep.subr.mxu0 0.0
    %321 = vmatpush1.msra.mxu0 0.0
    %322 = vmatprep.subr.mxu0 0.0
    %323 = vmatpush1.msra.mxu0 0.0
    %324 = vmatprep.subr.mxu0 0.0
    %325 = vmatpush1.msra.mxu0 0.0
    %326 = vmatprep.subr.mxu0 0.0
    %327 = vmatpush1.msra.mxu0 0.0
    %328 = vmatprep.subr.mxu0 0.0
    %329 = vmatpush1.msra.mxu0 0.0
    %330 = vmatprep.subr.mxu0 0.0
    %331 = vmatpush1.msra.mxu0 0.0
    %332 = vmatprep.subr.mxu0 0.0
    %333 = vmatpush1.msra.mxu0 0.0
    %334 = vmatprep.subr.mxu0 0.0
    %335 = vmatpush1.msra.mxu0 0.0
    %336 = vmatprep.subr.mxu0 0.0
    %337 = vmatpush1.msra.mxu0 0.0
    %338 = vmatprep.subr.mxu0 0.0
    %339 = vmatpush1.msra.mxu0 0.0
    %340 = vmatprep.subr.mxu0 0.0
    %341 = vmatpush1.msra.mxu0 0.0
    %342 = vmatprep.subr.mxu0 0.0
    %343 = vmatpush1.msra.mxu0 0.0
    %344 = vmatprep.subr.mxu0 0.0
    %345 = vmatpush1.msra.mxu0 0.0
    %346 = vmatprep.subr.mxu0 0.0
    %347 = vmatpush1.msra.mxu0 0.0
    %348 = vmatprep.subr.mxu0 0.0
    %349 = vmatpush1.msra.mxu0 0.0
    %350 = vmatprep.subr.mxu0 0.0
    %351 = vmatpush1.msra.mxu0 0.0
    %352 = vmatprep.subr.mxu0 0.0
    %353 = vmatpush1.msra.mxu0 0.0
    %354 = vmatprep.subr.mxu0 0.0
    %355 = vmatpush1.msra.mxu0 0.0
    %356 = vmatprep.subr.mxu0 0.0
    %357 = vmatpush1.msra.mxu0 0.0
    %358 = vmatprep.subr.mxu0 0.0
    %359 = vmatpush1.msra.mxu0 0.0
    %360 = vmatprep.subr.mxu0 0.0
    %361 = vmatpush1.msra.mxu0 0.0
    %362 = vmatprep.subr.mxu0 0.0
    %363 = vmatpush1.msra.mxu0 0.0
    %364 = vmatprep.subr.mxu0 0.0
    %365 = vmatpush1.msra.mxu0 0.0
    %366 = vmatprep.subr.mxu0 0.0
    %367 = vmatpush1.msra.mxu0 0.0
    %368 = vmatprep.subr.mxu0 0.0
    %369 = vmatpush1.msra.mxu0 0.0
    %370 = vmatprep.subr.mxu0 0.0
    %371 = vmatpush1.msra.mxu0 0.0
    %372 = vmatprep.subr.mxu0 0.0
    %373 = vmatpush1.msra.mxu0 0.0
    %374 = vmatprep.mubr.f32.mxu0 0.0
    %v375 = vand.u32 %v54, 4294901760
    %v376 = vsub.f32 %v54, %v375
    %v377 = vand.u32 %v376, 4294901760
    %378 = vmatmul.mubr.f32.gmra.mrb[0].mxu0 %v377
    %v379 = vpop.f32.mrb[0].mxu0
    %v380 = vadd.f32 %v303, %v379
    %v381 = vpop.f32.mrb[0].mxu0
    %382 = vdwg.mxu0
    %383 = vmatprep.subr.mxu0 0.0
    %v384 = vand.u32 %v20, 4294901760
    %v385 = vsub.f32 %v20, %v384
    %v386 = vand.u32 %v385, 4294901760
    %387 = vmatpush1.msra.mxu0 %v386
    %388 = vmatprep.subr.mxu0 0.0
    %v389 = vand.u32 %v21, 4294901760
    %v390 = vsub.f32 %v21, %v389
    %v391 = vand.u32 %v390, 4294901760
    %392 = vmatpush1.msra.mxu0 %v391
    %393 = vmatprep.subr.mxu0 0.0
    %v394 = vand.u32 %v22, 4294901760
    %v395 = vsub.f32 %v22, %v394
    %v396 = vand.u32 %v395, 4294901760
    %397 = vmatpush1.msra.mxu0 %v396
    %398 = vmatprep.subr.mxu0 0.0
    %v399 = vand.u32 %v23, 4294901760
    %v400 = vsub.f32 %v23, %v399
    %v401 = vand.u32 %v400, 4294901760
    %402 = vmatpush1.msra.mxu0 %v401
    %403 = vmatprep.subr.mxu0 0.0
    %404 = vmatpush1.msra.mxu0 0.0
    %405 = vmatprep.subr.mxu0 0.0
    %406 = vmatpush1.msra.mxu0 0.0
    %407 = vmatprep.subr.mxu0 0.0
    %408 = vmatpush1.msra.mxu0 0.0
    %409 = vmatprep.subr.mxu0 0.0
    %410 = vmatpush1.msra.mxu0 0.0
    %411 = vmatprep.subr.mxu0 0.0
    %412 = vmatpush1.msra.mxu0 0.0
    %413 = vmatprep.subr.mxu0 0.0
    %414 = vmatpush1.msra.mxu0 0.0
    %415 = vmatprep.subr.mxu0 0.0
    %416 = vmatpush1.msra.mxu0 0.0
    %417 = vmatprep.subr.mxu0 0.0
    %418 = vmatpush1.msra.mxu0 0.0
    %419 = vmatprep.subr.mxu0 0.0
    %420 = vmatpush1.msra.mxu0 0.0
    %421 = vmatprep.subr.mxu0 0.0
    %422 = vmatpush1.msra.mxu0 0.0
    %423 = vmatprep.subr.mxu0 0.0
    %424 = vmatpush1.msra.mxu0 0.0
    %425 = vmatprep.subr.mxu0 0.0
    %426 = vmatpush1.msra.mxu0 0.0
    %427 = vmatprep.subr.mxu0 0.0
    %428 = vmatpush1.msra.mxu0 0.0
    %429 = vmatprep.subr.mxu0 0.0
    %430 = vmatpush1.msra.mxu0 0.0
    %431 = vmatprep.subr.mxu0 0.0
    %432 = vmatpush1.msra.mxu0 0.0
    %433 = vmatprep.subr.mxu0 0.0
    %434 = vmatpush1.msra.mxu0 0.0
    %435 = vmatprep.subr.mxu0 0.0
    %436 = vmatpush1.msra.mxu0 0.0
    %437 = vmatprep.subr.mxu0 0.0
    %438 = vmatpush1.msra.mxu0 0.0
    %439 = vmatprep.subr.mxu0 0.0
    %440 = vmatpush1.msra.mxu0 0.0
    %441 = vmatprep.subr.mxu0 0.0
    %442 = vmatpush1.msra.mxu0 0.0
    %443 = vmatprep.subr.mxu0 0.0
    %444 = vmatpush1.msra.mxu0 0.0
    %445 = vmatprep.subr.mxu0 0.0
    %446 = vmatpush1.msra.mxu0 0.0
    %447 = vmatprep.subr.mxu0 0.0
    %448 = vmatpush1.msra.mxu0 0.0
    %449 = vmatprep.subr.mxu0 0.0
    %450 = vmatpush1.msra.mxu0 0.0
    %451 = vmatprep.subr.mxu0 0.0
    %452 = vmatpush1.msra.mxu0 0.0
    %453 = vmatprep.subr.mxu0 0.0
    %454 = vmatpush1.msra.mxu0 0.0
    %455 = vmatprep.subr.mxu0 0.0
    %456 = vmatpush1.msra.mxu0 0.0
    %457 = vmatprep.subr.mxu0 0.0
    %458 = vmatpush1.msra.mxu0 0.0
    %459 = vmatprep.mubr.f32.mxu0 0.0
    %v460 = vand.u32 %v54, 4294901760
    %461 = vmatmul.mubr.f32.gmra.mrb[0].mxu0 %v460
    %v462 = vpop.f32.mrb[0].mxu0
    %v463 = vadd.f32 %v380, %v462
    %v464 = vpop.f32.mrb[0].mxu0
    %465 = vdwg.mxu0
    %466 = vmatprep.subr.mxu0 0.0
    %v467 = vand.u32 %v20, 4294901760
    %468 = vmatpush1.msra.mxu0 %v467
    %469 = vmatprep.subr.mxu0 0.0
    %v470 = vand.u32 %v21, 4294901760
    %471 = vmatpush1.msra.mxu0 %v470
    %472 = vmatprep.subr.mxu0 0.0
    %v473 = vand.u32 %v22, 4294901760
    %474 = vmatpush1.msra.mxu0 %v473
    %475 = vmatprep.subr.mxu0 0.0
    %v476 = vand.u32 %v23, 4294901760
    %477 = vmatpush1.msra.mxu0 %v476
    %478 = vmatprep.subr.mxu0 0.0
    %479 = vmatpush1.msra.mxu0 0.0
    %480 = vmatprep.subr.mxu0 0.0
    %481 = vmatpush1.msra.mxu0 0.0
    %482 = vmatprep.subr.mxu0 0.0
    %483 = vmatpush1.msra.mxu0 0.0
    %484 = vmatprep.subr.mxu0 0.0
    %485 = vmatpush1.msra.mxu0 0.0
    %486 = vmatprep.subr.mxu0 0.0
    %487 = vmatpush1.msra.mxu0 0.0
    %488 = vmatprep.subr.mxu0 0.0
    %489 = vmatpush1.msra.mxu0 0.0
    %490 = vmatprep.subr.mxu0 0.0
    %491 = vmatpush1.msra.mxu0 0.0
    %492 = vmatprep.subr.mxu0 0.0
    %493 = vmatpush1.msra.mxu0 0.0
    %494 = vmatprep.subr.mxu0 0.0
    %495 = vmatpush1.msra.mxu0 0.0
    %496 = vmatprep.subr.mxu0 0.0
    %497 = vmatpush1.msra.mxu0 0.0
    %498 = vmatprep.subr.mxu0 0.0
    %499 = vmatpush1.msra.mxu0 0.0
    %500 = vmatprep.subr.mxu0 0.0
    %501 = vmatpush1.msra.mxu0 0.0
    %502 = vmatprep.subr.mxu0 0.0
    %503 = vmatpush1.msra.mxu0 0.0
    %504 = vmatprep.subr.mxu0 0.0
    %505 = vmatpush1.msra.mxu0 0.0
    %506 = vmatprep.subr.mxu0 0.0
    %507 = vmatpush1.msra.mxu0 0.0
    %508 = vmatprep.subr.mxu0 0.0
    %509 = vmatpush1.msra.mxu0 0.0
    %510 = vmatprep.subr.mxu0 0.0
    %511 = vmatpush1.msra.mxu0 0.0
    %512 = vmatprep.subr.mxu0 0.0
    %513 = vmatpush1.msra.mxu0 0.0
    %514 = vmatprep.subr.mxu0 0.0
    %515 = vmatpush1.msra.mxu0 0.0
    %516 = vmatprep.subr.mxu0 0.0
    %517 = vmatpush1.msra.mxu0 0.0
    %518 = vmatprep.subr.mxu0 0.0
    %519 = vmatpush1.msra.mxu0 0.0
    %520 = vmatprep.subr.mxu0 0.0
    %521 = vmatpush1.msra.mxu0 0.0
    %522 = vmatprep.subr.mxu0 0.0
    %523 = vmatpush1.msra.mxu0 0.0
    %524 = vmatprep.subr.mxu0 0.0
    %525 = vmatpush1.msra.mxu0 0.0
    %526 = vmatprep.subr.mxu0 0.0
    %527 = vmatpush1.msra.mxu0 0.0
    %528 = vmatprep.subr.mxu0 0.0
    %529 = vmatpush1.msra.mxu0 0.0
    %530 = vmatprep.subr.mxu0 0.0
    %531 = vmatpush1.msra.mxu0 0.0
    %532 = vmatprep.subr.mxu0 0.0
    %533 = vmatpush1.msra.mxu0 0.0
    %534 = vmatprep.mubr.f32.mxu0 0.0
    %v535 = vand.u32 %v54, 4294901760
    %536 = vmatmul.mubr.f32.gmra.mrb[0].mxu0 %v535
    %v537 = vpop.f32.mrb[0].mxu0
    %v538 = vadd.f32 %v463, %v537
    %v539 = vpop.f32.mrb[0].mxu0
    %540 = vdwg.mxu0
    %v542 = vsel %vm52, %v13, 0
    %544 = vmatprep.subr.mxu0 0.0
    %v545 = vand.u32 %v24, 4294901760
    %546 = vmatpush1.msra.mxu0 %v545
    %547 = vmatprep.subr.mxu0 0.0
    %v548 = vand.u32 %v25, 4294901760
    %549 = vmatpush1.msra.mxu0 %v548
    %550 = vmatprep.subr.mxu0 0.0
    %v551 = vand.u32 %v26, 4294901760
    %552 = vmatpush1.msra.mxu0 %v551
    %553 = vmatprep.subr.mxu0 0.0
    %v554 = vand.u32 %v27, 4294901760
    %555 = vmatpush1.msra.mxu0 %v554
    %556 = vmatprep.subr.mxu0 0.0
    %557 = vmatpush1.msra.mxu0 0.0
    %558 = vmatprep.subr.mxu0 0.0
    %559 = vmatpush1.msra.mxu0 0.0
    %560 = vmatprep.subr.mxu0 0.0
    %561 = vmatpush1.msra.mxu0 0.0
    %562 = vmatprep.subr.mxu0 0.0
    %563 = vmatpush1.msra.mxu0 0.0
    %564 = vmatprep.subr.mxu0 0.0
    %565 = vmatpush1.msra.mxu0 0.0
    %566 = vmatprep.subr.mxu0 0.0
    %567 = vmatpush1.msra.mxu0 0.0
    %568 = vmatprep.subr.mxu0 0.0
    %569 = vmatpush1.msra.mxu0 0.0
    %570 = vmatprep.subr.mxu0 0.0
    %571 = vmatpush1.msra.mxu0 0.0
    %572 = vmatprep.subr.mxu0 0.0
    %573 = vmatpush1.msra.mxu0 0.0
    %574 = vmatprep.subr.mxu0 0.0
    %575 = vmatpush1.msra.mxu0 0.0
    %576 = vmatprep.subr.mxu0 0.0
    %577 = vmatpush1.msra.mxu0 0.0
    %578 = vmatprep.subr.mxu0 0.0
    %579 = vmatpush1.msra.mxu0 0.0
    %580 = vmatprep.subr.mxu0 0.0
    %581 = vmatpush1.msra.mxu0 0.0
    %582 = vmatprep.subr.mxu0 0.0
    %583 = vmatpush1.msra.mxu0 0.0
    %584 = vmatprep.subr.mxu0 0.0
    %585 = vmatpush1.msra.mxu0 0.0
    %586 = vmatprep.subr.mxu0 0.0
    %587 = vmatpush1.msra.mxu0 0.0
    %588 = vmatprep.subr.mxu0 0.0
    %589 = vmatpush1.msra.mxu0 0.0
    %590 = vmatprep.subr.mxu0 0.0
    %591 = vmatpush1.msra.mxu0 0.0
    %592 = vmatprep.subr.mxu0 0.0
    %593 = vmatpush1.msra.mxu0 0.0
    %594 = vmatprep.subr.mxu0 0.0
    %595 = vmatpush1.msra.mxu0 0.0
    %596 = vmatprep.subr.mxu0 0.0
    %597 = vmatpush1.msra.mxu0 0.0
    %598 = vmatprep.subr.mxu0 0.0
    %599 = vmatpush1.msra.mxu0 0.0
    %600 = vmatprep.subr.mxu0 0.0
    %601 = vmatpush1.msra.mxu0 0.0
    %602 = vmatprep.subr.mxu0 0.0
    %603 = vmatpush1.msra.mxu0 0.0
    %604 = vmatprep.subr.mxu0 0.0
    %605 = vmatpush1.msra.mxu0 0.0
    %606 = vmatprep.subr.mxu0 0.0
    %607 = vmatpush1.msra.mxu0 0.0
    %608 = vmatprep.subr.mxu0 0.0
    %609 = vmatpush1.msra.mxu0 0.0
    %610 = vmatprep.subr.mxu0 0.0
    %611 = vmatpush1.msra.mxu0 0.0
    %612 = vmatprep.mubr.f32.mxu0 0.0
    %v613 = vand.u32 %v542, 4294901760
    %v614 = vsub.f32 %v542, %v613
    %v615 = vand.u32 %v614, 4294901760
    %v616 = vsub.f32 %v614, %v615
    %v617 = vand.u32 %v616, 4294901760
    %618 = vmatmul.mubr.f32.gmra.mrb[0].mxu0 %v617
    %v619 = vpop.f32.mrb[0].mxu0
    %v620 = vadd.f32 0.0, %v619
    %v621 = vpop.f32.mrb[0].mxu0
    %622 = vdwg.mxu0
    %623 = vmatprep.subr.mxu0 0.0
    %v624 = vand.u32 %v24, 4294901760
    %v625 = vsub.f32 %v24, %v624
    %v626 = vand.u32 %v625, 4294901760
    %v627 = vsub.f32 %v625, %v626
    %v628 = vand.u32 %v627, 4294901760
    %629 = vmatpush1.msra.mxu0 %v628
    %630 = vmatprep.subr.mxu0 0.0
    %v631 = vand.u32 %v25, 4294901760
    %v632 = vsub.f32 %v25, %v631
    %v633 = vand.u32 %v632, 4294901760
    %v634 = vsub.f32 %v632, %v633
    %v635 = vand.u32 %v634, 4294901760
    %636 = vmatpush1.msra.mxu0 %v635
    %637 = vmatprep.subr.mxu0 0.0
    %v638 = vand.u32 %v26, 4294901760
    %v639 = vsub.f32 %v26, %v638
    %v640 = vand.u32 %v639, 4294901760
    %v641 = vsub.f32 %v639, %v640
    %v642 = vand.u32 %v641, 4294901760
    %643 = vmatpush1.msra.mxu0 %v642
    %644 = vmatprep.subr.mxu0 0.0
    %v645 = vand.u32 %v27, 4294901760
    %v646 = vsub.f32 %v27, %v645
    %v647 = vand.u32 %v646, 4294901760
    %v648 = vsub.f32 %v646, %v647
    %v649 = vand.u32 %v648, 4294901760
    %650 = vmatpush1.msra.mxu0 %v649
    %651 = vmatprep.subr.mxu0 0.0
    %652 = vmatpush1.msra.mxu0 0.0
    %653 = vmatprep.subr.mxu0 0.0
    %654 = vmatpush1.msra.mxu0 0.0
    %655 = vmatprep.subr.mxu0 0.0
    %656 = vmatpush1.msra.mxu0 0.0
    %657 = vmatprep.subr.mxu0 0.0
    %658 = vmatpush1.msra.mxu0 0.0
    %659 = vmatprep.subr.mxu0 0.0
    %660 = vmatpush1.msra.mxu0 0.0
    %661 = vmatprep.subr.mxu0 0.0
    %662 = vmatpush1.msra.mxu0 0.0
    %663 = vmatprep.subr.mxu0 0.0
    %664 = vmatpush1.msra.mxu0 0.0
    %665 = vmatprep.subr.mxu0 0.0
    %666 = vmatpush1.msra.mxu0 0.0
    %667 = vmatprep.subr.mxu0 0.0
    %668 = vmatpush1.msra.mxu0 0.0
    %669 = vmatprep.subr.mxu0 0.0
    %670 = vmatpush1.msra.mxu0 0.0
    %671 = vmatprep.subr.mxu0 0.0
    %672 = vmatpush1.msra.mxu0 0.0
    %673 = vmatprep.subr.mxu0 0.0
    %674 = vmatpush1.msra.mxu0 0.0
    %675 = vmatprep.subr.mxu0 0.0
    %676 = vmatpush1.msra.mxu0 0.0
    %677 = vmatprep.subr.mxu0 0.0
    %678 = vmatpush1.msra.mxu0 0.0
    %679 = vmatprep.subr.mxu0 0.0
    %680 = vmatpush1.msra.mxu0 0.0
    %681 = vmatprep.subr.mxu0 0.0
    %682 = vmatpush1.msra.mxu0 0.0
    %683 = vmatprep.subr.mxu0 0.0
    %684 = vmatpush1.msra.mxu0 0.0
    %685 = vmatprep.subr.mxu0 0.0
    %686 = vmatpush1.msra.mxu0 0.0
    %687 = vmatprep.subr.mxu0 0.0
    %688 = vmatpush1.msra.mxu0 0.0
    %689 = vmatprep.subr.mxu0 0.0
    %690 = vmatpush1.msra.mxu0 0.0
    %691 = vmatprep.subr.mxu0 0.0
    %692 = vmatpush1.msra.mxu0 0.0
    %693 = vmatprep.subr.mxu0 0.0
    %694 = vmatpush1.msra.mxu0 0.0
    %695 = vmatprep.subr.mxu0 0.0
    %696 = vmatpush1.msra.mxu0 0.0
    %697 = vmatprep.subr.mxu0 0.0
    %698 = vmatpush1.msra.mxu0 0.0
    %699 = vmatprep.subr.mxu0 0.0
    %700 = vmatpush1.msra.mxu0 0.0
    %701 = vmatprep.subr.mxu0 0.0
    %702 = vmatpush1.msra.mxu0 0.0
    %703 = vmatprep.subr.mxu0 0.0
    %704 = vmatpush1.msra.mxu0 0.0
    %705 = vmatprep.subr.mxu0 0.0
    %706 = vmatpush1.msra.mxu0 0.0
    %707 = vmatprep.mubr.f32.mxu0 0.0
    %v708 = vand.u32 %v542, 4294901760
    %709 = vmatmul.mubr.f32.gmra.mrb[0].mxu0 %v708
    %v710 = vpop.f32.mrb[0].mxu0
    %v711 = vadd.f32 %v620, %v710
    %v712 = vpop.f32.mrb[0].mxu0
    %713 = vdwg.mxu0
    %714 = vmatprep.subr.mxu0 0.0
    %v715 = vand.u32 %v24, 4294901760
    %v716 = vsub.f32 %v24, %v715
    %717 = vmatpush1.msra.mxu0 %v716
    %718 = vmatprep.subr.mxu0 0.0
    %v719 = vand.u32 %v25, 4294901760
    %v720 = vsub.f32 %v25, %v719
    %721 = vmatpush1.msra.mxu0 %v720
    %722 = vmatprep.subr.mxu0 0.0
    %v723 = vand.u32 %v26, 4294901760
    %v724 = vsub.f32 %v26, %v723
    %725 = vmatpush1.msra.mxu0 %v724
    %726 = vmatprep.subr.mxu0 0.0
    %v727 = vand.u32 %v27, 4294901760
    %v728 = vsub.f32 %v27, %v727
    %729 = vmatpush1.msra.mxu0 %v728
    %730 = vmatprep.subr.mxu0 0.0
    %731 = vmatpush1.msra.mxu0 0.0
    %732 = vmatprep.subr.mxu0 0.0
    %733 = vmatpush1.msra.mxu0 0.0
    %734 = vmatprep.subr.mxu0 0.0
    %735 = vmatpush1.msra.mxu0 0.0
    %736 = vmatprep.subr.mxu0 0.0
    %737 = vmatpush1.msra.mxu0 0.0
    %738 = vmatprep.subr.mxu0 0.0
    %739 = vmatpush1.msra.mxu0 0.0
    %740 = vmatprep.subr.mxu0 0.0
    %741 = vmatpush1.msra.mxu0 0.0
    %742 = vmatprep.subr.mxu0 0.0
    %743 = vmatpush1.msra.mxu0 0.0
    %744 = vmatprep.subr.mxu0 0.0
    %745 = vmatpush1.msra.mxu0 0.0
    %746 = vmatprep.subr.mxu0 0.0
    %747 = vmatpush1.msra.mxu0 0.0
    %748 = vmatprep.subr.mxu0 0.0
    %749 = vmatpush1.msra.mxu0 0.0
    %750 = vmatprep.subr.mxu0 0.0
    %751 = vmatpush1.msra.mxu0 0.0
    %752 = vmatprep.subr.mxu0 0.0
    %753 = vmatpush1.msra.mxu0 0.0
    %754 = vmatprep.subr.mxu0 0.0
    %755 = vmatpush1.msra.mxu0 0.0
    %756 = vmatprep.subr.mxu0 0.0
    %757 = vmatpush1.msra.mxu0 0.0
    %758 = vmatprep.subr.mxu0 0.0
    %759 = vmatpush1.msra.mxu0 0.0
    %760 = vmatprep.subr.mxu0 0.0
    %761 = vmatpush1.msra.mxu0 0.0
    %762 = vmatprep.subr.mxu0 0.0
    %763 = vmatpush1.msra.mxu0 0.0
    %764 = vmatprep.subr.mxu0 0.0
    %765 = vmatpush1.msra.mxu0 0.0
    %766 = vmatprep.subr.mxu0 0.0
    %767 = vmatpush1.msra.mxu0 0.0
    %768 = vmatprep.subr.mxu0 0.0
    %769 = vmatpush1.msra.mxu0 0.0
    %770 = vmatprep.subr.mxu0 0.0
    %771 = vmatpush1.msra.mxu0 0.0
    %772 = vmatprep.subr.mxu0 0.0
    %773 = vmatpush1.msra.mxu0 0.0
    %774 = vmatprep.subr.mxu0 0.0
    %775 = vmatpush1.msra.mxu0 0.0
    %776 = vmatprep.subr.mxu0 0.0
    %777 = vmatpush1.msra.mxu0 0.0
    %778 = vmatprep.subr.mxu0 0.0
    %779 = vmatpush1.msra.mxu0 0.0
    %780 = vmatprep.subr.mxu0 0.0
    %781 = vmatpush1.msra.mxu0 0.0
    %782 = vmatprep.subr.mxu0 0.0
    %783 = vmatpush1.msra.mxu0 0.0
    %784 = vmatprep.subr.mxu0 0.0
    %785 = vmatpush1.msra.mxu0 0.0
    %786 = vmatprep.mubr.f32.mxu0 0.0
    %v787 = vand.u32 %v542, 4294901760
    %v788 = vsub.f32 %v542, %v787
    %789 = vmatmul.mubr.f32.gmra.mrb[0].mxu0 %v788
    %v790 = vpop.f32.mrb[0].mxu0
    %v791 = vadd.f32 %v711, %v790
    %v792 = vpop.f32.mrb[0].mxu0
    %793 = vdwg.mxu0
    %794 = vmatprep.subr.mxu0 0.0
    %v795 = vand.u32 %v24, 4294901760
    %796 = vmatpush1.msra.mxu0 %v795
    %797 = vmatprep.subr.mxu0 0.0
    %v798 = vand.u32 %v25, 4294901760
    %799 = vmatpush1.msra.mxu0 %v798
    %800 = vmatprep.subr.mxu0 0.0
    %v801 = vand.u32 %v26, 4294901760
    %802 = vmatpush1.msra.mxu0 %v801
    %803 = vmatprep.subr.mxu0 0.0
    %v804 = vand.u32 %v27, 4294901760
    %805 = vmatpush1.msra.mxu0 %v804
    %806 = vmatprep.subr.mxu0 0.0
    %807 = vmatpush1.msra.mxu0 0.0
    %808 = vmatprep.subr.mxu0 0.0
    %809 = vmatpush1.msra.mxu0 0.0
    %810 = vmatprep.subr.mxu0 0.0
    %811 = vmatpush1.msra.mxu0 0.0
    %812 = vmatprep.subr.mxu0 0.0
    %813 = vmatpush1.msra.mxu0 0.0
    %814 = vmatprep.subr.mxu0 0.0
    %815 = vmatpush1.msra.mxu0 0.0
    %816 = vmatprep.subr.mxu0 0.0
    %817 = vmatpush1.msra.mxu0 0.0
    %818 = vmatprep.subr.mxu0 0.0
    %819 = vmatpush1.msra.mxu0 0.0
    %820 = vmatprep.subr.mxu0 0.0
    %821 = vmatpush1.msra.mxu0 0.0
    %822 = vmatprep.subr.mxu0 0.0
    %823 = vmatpush1.msra.mxu0 0.0
    %824 = vmatprep.subr.mxu0 0.0
    %825 = vmatpush1.msra.mxu0 0.0
    %826 = vmatprep.subr.mxu0 0.0
    %827 = vmatpush1.msra.mxu0 0.0
    %828 = vmatprep.subr.mxu0 0.0
    %829 = vmatpush1.msra.mxu0 0.0
    %830 = vmatprep.subr.mxu0 0.0
    %831 = vmatpush1.msra.mxu0 0.0
    %832 = vmatprep.subr.mxu0 0.0
    %833 = vmatpush1.msra.mxu0 0.0
    %834 = vmatprep.subr.mxu0 0.0
    %835 = vmatpush1.msra.mxu0 0.0
    %836 = vmatprep.subr.mxu0 0.0
    %837 = vmatpush1.msra.mxu0 0.0
    %838 = vmatprep.subr.mxu0 0.0
    %839 = vmatpush1.msra.mxu0 0.0
    %840 = vmatprep.subr.mxu0 0.0
    %841 = vmatpush1.msra.mxu0 0.0
    %842 = vmatprep.subr.mxu0 0.0
    %843 = vmatpush1.msra.mxu0 0.0
    %844 = vmatprep.subr.mxu0 0.0
    %845 = vmatpush1.msra.mxu0 0.0
    %846 = vmatprep.subr.mxu0 0.0
    %847 = vmatpush1.msra.mxu0 0.0
    %848 = vmatprep.subr.mxu0 0.0
    %849 = vmatpush1.msra.mxu0 0.0
    %850 = vmatprep.subr.mxu0 0.0
    %851 = vmatpush1.msra.mxu0 0.0
    %852 = vmatprep.subr.mxu0 0.0
    %853 = vmatpush1.msra.mxu0 0.0
    %854 = vmatprep.subr.mxu0 0.0
    %855 = vmatpush1.msra.mxu0 0.0
    %856 = vmatprep.subr.mxu0 0.0
    %857 = vmatpush1.msra.mxu0 0.0
    %858 = vmatprep.subr.mxu0 0.0
    %859 = vmatpush1.msra.mxu0 0.0
    %860 = vmatprep.subr.mxu0 0.0
    %861 = vmatpush1.msra.mxu0 0.0
    %862 = vmatprep.mubr.f32.mxu0 0.0
    %v863 = vand.u32 %v542, 4294901760
    %v864 = vsub.f32 %v542, %v863
    %v865 = vand.u32 %v864, 4294901760
    %866 = vmatmul.mubr.f32.gmra.mrb[0].mxu0 %v865
    %v867 = vpop.f32.mrb[0].mxu0
    %v868 = vadd.f32 %v791, %v867
    %v869 = vpop.f32.mrb[0].mxu0
    %870 = vdwg.mxu0
    %871 = vmatprep.subr.mxu0 0.0
    %v872 = vand.u32 %v24, 4294901760
    %v873 = vsub.f32 %v24, %v872
    %v874 = vand.u32 %v873, 4294901760
    %875 = vmatpush1.msra.mxu0 %v874
    %876 = vmatprep.subr.mxu0 0.0
    %v877 = vand.u32 %v25, 4294901760
    %v878 = vsub.f32 %v25, %v877
    %v879 = vand.u32 %v878, 4294901760
    %880 = vmatpush1.msra.mxu0 %v879
    %881 = vmatprep.subr.mxu0 0.0
    %v882 = vand.u32 %v26, 4294901760
    %v883 = vsub.f32 %v26, %v882
    %v884 = vand.u32 %v883, 4294901760
    %885 = vmatpush1.msra.mxu0 %v884
    %886 = vmatprep.subr.mxu0 0.0
    %v887 = vand.u32 %v27, 4294901760
    %v888 = vsub.f32 %v27, %v887
    %v889 = vand.u32 %v888, 4294901760
    %890 = vmatpush1.msra.mxu0 %v889
    %891 = vmatprep.subr.mxu0 0.0
    %892 = vmatpush1.msra.mxu0 0.0
    %893 = vmatprep.subr.mxu0 0.0
    %894 = vmatpush1.msra.mxu0 0.0
    %895 = vmatprep.subr.mxu0 0.0
    %896 = vmatpush1.msra.mxu0 0.0
    %897 = vmatprep.subr.mxu0 0.0
    %898 = vmatpush1.msra.mxu0 0.0
    %899 = vmatprep.subr.mxu0 0.0
    %900 = vmatpush1.msra.mxu0 0.0
    %901 = vmatprep.subr.mxu0 0.0
    %902 = vmatpush1.msra.mxu0 0.0
    %903 = vmatprep.subr.mxu0 0.0
    %904 = vmatpush1.msra.mxu0 0.0
    %905 = vmatprep.subr.mxu0 0.0
    %906 = vmatpush1.msra.mxu0 0.0
    %907 = vmatprep.subr.mxu0 0.0
    %908 = vmatpush1.msra.mxu0 0.0
    %909 = vmatprep.subr.mxu0 0.0
    %910 = vmatpush1.msra.mxu0 0.0
    %911 = vmatprep.subr.mxu0 0.0
    %912 = vmatpush1.msra.mxu0 0.0
    %913 = vmatprep.subr.mxu0 0.0
    %914 = vmatpush1.msra.mxu0 0.0
    %915 = vmatprep.subr.mxu0 0.0
    %916 = vmatpush1.msra.mxu0 0.0
    %917 = vmatprep.subr.mxu0 0.0
    %918 = vmatpush1.msra.mxu0 0.0
    %919 = vmatprep.subr.mxu0 0.0
    %920 = vmatpush1.msra.mxu0 0.0
    %921 = vmatprep.subr.mxu0 0.0
    %922 = vmatpush1.msra.mxu0 0.0
    %923 = vmatprep.subr.mxu0 0.0
    %924 = vmatpush1.msra.mxu0 0.0
    %925 = vmatprep.subr.mxu0 0.0
    %926 = vmatpush1.msra.mxu0 0.0
    %927 = vmatprep.subr.mxu0 0.0
    %928 = vmatpush1.msra.mxu0 0.0
    %929 = vmatprep.subr.mxu0 0.0
    %930 = vmatpush1.msra.mxu0 0.0
    %931 = vmatprep.subr.mxu0 0.0
    %932 = vmatpush1.msra.mxu0 0.0
    %933 = vmatprep.subr.mxu0 0.0
    %934 = vmatpush1.msra.mxu0 0.0
    %935 = vmatprep.subr.mxu0 0.0
    %936 = vmatpush1.msra.mxu0 0.0
    %937 = vmatprep.subr.mxu0 0.0
    %938 = vmatpush1.msra.mxu0 0.0
    %939 = vmatprep.subr.mxu0 0.0
    %940 = vmatpush1.msra.mxu0 0.0
    %941 = vmatprep.subr.mxu0 0.0
    %942 = vmatpush1.msra.mxu0 0.0
    %943 = vmatprep.subr.mxu0 0.0
    %944 = vmatpush1.msra.mxu0 0.0
    %945 = vmatprep.subr.mxu0 0.0
    %946 = vmatpush1.msra.mxu0 0.0
    %947 = vmatprep.mubr.f32.mxu0 0.0
    %v948 = vand.u32 %v542, 4294901760
    %949 = vmatmul.mubr.f32.gmra.mrb[0].mxu0 %v948
    %v950 = vpop.f32.mrb[0].mxu0
    %v951 = vadd.f32 %v868, %v950
    %v952 = vpop.f32.mrb[0].mxu0
    %953 = vdwg.mxu0
    %954 = vmatprep.subr.mxu0 0.0
    %v955 = vand.u32 %v24, 4294901760
    %956 = vmatpush1.msra.mxu0 %v955
    %957 = vmatprep.subr.mxu0 0.0
    %v958 = vand.u32 %v25, 4294901760
    %959 = vmatpush1.msra.mxu0 %v958
    %960 = vmatprep.subr.mxu0 0.0
    %v961 = vand.u32 %v26, 4294901760
    %962 = vmatpush1.msra.mxu0 %v961
    %963 = vmatprep.subr.mxu0 0.0
    %v964 = vand.u32 %v27, 4294901760
    %965 = vmatpush1.msra.mxu0 %v964
    %966 = vmatprep.subr.mxu0 0.0
    %967 = vmatpush1.msra.mxu0 0.0
    %968 = vmatprep.subr.mxu0 0.0
    %969 = vmatpush1.msra.mxu0 0.0
    %970 = vmatprep.subr.mxu0 0.0
    %971 = vmatpush1.msra.mxu0 0.0
    %972 = vmatprep.subr.mxu0 0.0
    %973 = vmatpush1.msra.mxu0 0.0
    %974 = vmatprep.subr.mxu0 0.0
    %975 = vmatpush1.msra.mxu0 0.0
    %976 = vmatprep.subr.mxu0 0.0
    %977 = vmatpush1.msra.mxu0 0.0
    %978 = vmatprep.subr.mxu0 0.0
    %979 = vmatpush1.msra.mxu0 0.0
    %980 = vmatprep.subr.mxu0 0.0
    %981 = vmatpush1.msra.mxu0 0.0
    %982 = vmatprep.subr.mxu0 0.0
    %983 = vmatpush1.msra.mxu0 0.0
    %984 = vmatprep.subr.mxu0 0.0
    %985 = vmatpush1.msra.mxu0 0.0
    %986 = vmatprep.subr.mxu0 0.0
    %987 = vmatpush1.msra.mxu0 0.0
    %988 = vmatprep.subr.mxu0 0.0
    %989 = vmatpush1.msra.mxu0 0.0
    %990 = vmatprep.subr.mxu0 0.0
    %991 = vmatpush1.msra.mxu0 0.0
    %992 = vmatprep.subr.mxu0 0.0
    %993 = vmatpush1.msra.mxu0 0.0
    %994 = vmatprep.subr.mxu0 0.0
    %995 = vmatpush1.msra.mxu0 0.0
    %996 = vmatprep.subr.mxu0 0.0
    %997 = vmatpush1.msra.mxu0 0.0
    %998 = vmatprep.subr.mxu0 0.0
    %999 = vmatpush1.msra.mxu0 0.0
    %1000 = vmatprep.subr.mxu0 0.0
    %1001 = vmatpush1.msra.mxu0 0.0
    %1002 = vmatprep.subr.mxu0 0.0
    %1003 = vmatpush1.msra.mxu0 0.0
    %1004 = vmatprep.subr.mxu0 0.0
    %1005 = vmatpush1.msra.mxu0 0.0
    %1006 = vmatprep.subr.mxu0 0.0
    %1007 = vmatpush1.msra.mxu0 0.0
    %1008 = vmatprep.subr.mxu0 0.0
    %1009 = vmatpush1.msra.mxu0 0.0
    %1010 = vmatprep.subr.mxu0 0.0
    %1011 = vmatpush1.msra.mxu0 0.0
    %1012 = vmatprep.subr.mxu0 0.0
    %1013 = vmatpush1.msra.mxu0 0.0
    %1014 = vmatprep.subr.mxu0 0.0
    %1015 = vmatpush1.msra.mxu0 0.0
    %1016 = vmatprep.subr.mxu0 0.0
    %1017 = vmatpush1.msra.mxu0 0.0
    %1018 = vmatprep.subr.mxu0 0.0
    %1019 = vmatpush1.msra.mxu0 0.0
    %1020 = vmatprep.subr.mxu0 0.0
    %1021 = vmatpush1.msra.mxu0 0.0
    %1022 = vmatprep.mubr.f32.mxu0 0.0
    %v1023 = vand.u32 %v542, 4294901760
    %1024 = vmatmul.mubr.f32.gmra.mrb[0].mxu0 %v1023
    %v1025 = vpop.f32.mrb[0].mxu0
    %v1026 = vadd.f32 %v951, %v1025
    %v1027 = vpop.f32.mrb[0].mxu0
    %1028 = vdwg.mxu0
    %v1030 = vsel %vm52, %v14, 0
    %1032 = vmatprep.subr.mxu0 0.0
    %v1033 = vand.u32 %v28, 4294901760
    %1034 = vmatpush1.msra.mxu0 %v1033
    %1035 = vmatprep.subr.mxu0 0.0
    %v1036 = vand.u32 %v29, 4294901760
    %1037 = vmatpush1.msra.mxu0 %v1036
    %1038 = vmatprep.subr.mxu0 0.0
    %v1039 = vand.u32 %v30, 4294901760
    %1040 = vmatpush1.msra.mxu0 %v1039
    %1041 = vmatprep.subr.mxu0 0.0
    %v1042 = vand.u32 %v31, 4294901760
    %1043 = vmatpush1.msra.mxu0 %v1042
    %1044 = vmatprep.subr.mxu0 0.0
    %1045 = vmatpush1.msra.mxu0 0.0
    %1046 = vmatprep.subr.mxu0 0.0
    %1047 = vmatpush1.msra.mxu0 0.0
    %1048 = vmatprep.subr.mxu0 0.0
    %1049 = vmatpush1.msra.mxu0 0.0
    %1050 = vmatprep.subr.mxu0 0.0
    %1051 = vmatpush1.msra.mxu0 0.0
    %1052 = vmatprep.subr.mxu0 0.0
    %1053 = vmatpush1.msra.mxu0 0.0
    %1054 = vmatprep.subr.mxu0 0.0
    %1055 = vmatpush1.msra.mxu0 0.0
    %1056 = vmatprep.subr.mxu0 0.0
    %1057 = vmatpush1.msra.mxu0 0.0
    %1058 = vmatprep.subr.mxu0 0.0
    %1059 = vmatpush1.msra.mxu0 0.0
    %1060 = vmatprep.subr.mxu0 0.0
    %1061 = vmatpush1.msra.mxu0 0.0
    %1062 = vmatprep.subr.mxu0 0.0
    %1063 = vmatpush1.msra.mxu0 0.0
    %1064 = vmatprep.subr.mxu0 0.0
    %1065 = vmatpush1.msra.mxu0 0.0
    %1066 = vmatprep.subr.mxu0 0.0
    %1067 = vmatpush1.msra.mxu0 0.0
    %1068 = vmatprep.subr.mxu0 0.0
    %1069 = vmatpush1.msra.mxu0 0.0
    %1070 = vmatprep.subr.mxu0 0.0
    %1071 = vmatpush1.msra.mxu0 0.0
    %1072 = vmatprep.subr.mxu0 0.0
    %1073 = vmatpush1.msra.mxu0 0.0
    %1074 = vmatprep.subr.mxu0 0.0
    %1075 = vmatpush1.msra.mxu0 0.0
    %1076 = vmatprep.subr.mxu0 0.0
    %1077 = vmatpush1.msra.mxu0 0.0
    %1078 = vmatprep.subr.mxu0 0.0
    %1079 = vmatpush1.msra.mxu0 0.0
    %1080 = vmatprep.subr.mxu0 0.0
    %1081 = vmatpush1.msra.mxu0 0.0
    %1082 = vmatprep.subr.mxu0 0.0
    %1083 = vmatpush1.msra.mxu0 0.0
    %1084 = vmatprep.subr.mxu0 0.0
    %1085 = vmatpush1.msra.mxu0 0.0
    %1086 = vmatprep.subr.mxu0 0.0
    %1087 = vmatpush1.msra.mxu0 0.0
    %1088 = vmatprep.subr.mxu0 0.0
    %1089 = vmatpush1.msra.mxu0 0.0
    %1090 = vmatprep.subr.mxu0 0.0
    %1091 = vmatpush1.msra.mxu0 0.0
    %1092 = vmatprep.subr.mxu0 0.0
    %1093 = vmatpush1.msra.mxu0 0.0
    %1094 = vmatprep.subr.mxu0 0.0
    %1095 = vmatpush1.msra.mxu0 0.0
    %1096 = vmatprep.subr.mxu0 0.0
    %1097 = vmatpush1.msra.mxu0 0.0
    %1098 = vmatprep.subr.mxu0 0.0
    %1099 = vmatpush1.msra.mxu0 0.0
    %1100 = vmatprep.mubr.f32.mxu0 0.0
    %v1101 = vand.u32 %v1030, 4294901760
    %v1102 = vsub.f32 %v1030, %v1101
    %v1103 = vand.u32 %v1102, 4294901760
    %v1104 = vsub.f32 %v1102, %v1103
    %v1105 = vand.u32 %v1104, 4294901760
    %1106 = vmatmul.mubr.f32.gmra.mrb[0].mxu0 %v1105
    %v1107 = vpop.f32.mrb[0].mxu0
    %v1108 = vadd.f32 0.0, %v1107
    %v1109 = vpop.f32.mrb[0].mxu0
    %1110 = vdwg.mxu0
    %1111 = vmatprep.subr.mxu0 0.0
    %v1112 = vand.u32 %v28, 4294901760
    %v1113 = vsub.f32 %v28, %v1112
    %v1114 = vand.u32 %v1113, 4294901760
    %v1115 = vsub.f32 %v1113, %v1114
    %v1116 = vand.u32 %v1115, 4294901760
    %1117 = vmatpush1.msra.mxu0 %v1116
    %1118 = vmatprep.subr.mxu0 0.0
    %v1119 = vand.u32 %v29, 4294901760
    %v1120 = vsub.f32 %v29, %v1119
    %v1121 = vand.u32 %v1120, 4294901760
    %v1122 = vsub.f32 %v1120, %v1121
    %v1123 = vand.u32 %v1122, 4294901760
    %1124 = vmatpush1.msra.mxu0 %v1123
    %1125 = vmatprep.subr.mxu0 0.0
    %v1126 = vand.u32 %v30, 4294901760
    %v1127 = vsub.f32 %v30, %v1126
    %v1128 = vand.u32 %v1127, 4294901760
    %v1129 = vsub.f32 %v1127, %v1128
    %v1130 = vand.u32 %v1129, 4294901760
    %1131 = vmatpush1.msra.mxu0 %v1130
    %1132 = vmatprep.subr.mxu0 0.0
    %v1133 = vand.u32 %v31, 4294901760
    %v1134 = vsub.f32 %v31, %v1133
    %v1135 = vand.u32 %v1134, 4294901760
    %v1136 = vsub.f32 %v1134, %v1135
    %v1137 = vand.u32 %v1136, 4294901760
    %1138 = vmatpush1.msra.mxu0 %v1137
    %1139 = vmatprep.subr.mxu0 0.0
    %1140 = vmatpush1.msra.mxu0 0.0
    %1141 = vmatprep.subr.mxu0 0.0
    %1142 = vmatpush1.msra.mxu0 0.0
    %1143 = vmatprep.subr.mxu0 0.0
    %1144 = vmatpush1.msra.mxu0 0.0
    %1145 = vmatprep.subr.mxu0 0.0
    %1146 = vmatpush1.msra.mxu0 0.0
    %1147 = vmatprep.subr.mxu0 0.0
    %1148 = vmatpush1.msra.mxu0 0.0
    %1149 = vmatprep.subr.mxu0 0.0
    %1150 = vmatpush1.msra.mxu0 0.0
    %1151 = vmatprep.subr.mxu0 0.0
    %1152 = vmatpush1.msra.mxu0 0.0
    %1153 = vmatprep.subr.mxu0 0.0
    %1154 = vmatpush1.msra.mxu0 0.0
    %1155 = vmatprep.subr.mxu0 0.0
    %1156 = vmatpush1.msra.mxu0 0.0
    %1157 = vmatprep.subr.mxu0 0.0
    %1158 = vmatpush1.msra.mxu0 0.0
    %1159 = vmatprep.subr.mxu0 0.0
    %1160 = vmatpush1.msra.mxu0 0.0
    %1161 = vmatprep.subr.mxu0 0.0
    %1162 = vmatpush1.msra.mxu0 0.0
    %1163 = vmatprep.subr.mxu0 0.0
    %1164 = vmatpush1.msra.mxu0 0.0
    %1165 = vmatprep.subr.mxu0 0.0
    %1166 = vmatpush1.msra.mxu0 0.0
    %1167 = vmatprep.subr.mxu0 0.0
    %1168 = vmatpush1.msra.mxu0 0.0
    %1169 = vmatprep.subr.mxu0 0.0
    %1170 = vmatpush1.msra.mxu0 0.0
    %1171 = vmatprep.subr.mxu0 0.0
    %1172 = vmatpush1.msra.mxu0 0.0
    %1173 = vmatprep.subr.mxu0 0.0
    %1174 = vmatpush1.msra.mxu0 0.0
    %1175 = vmatprep.subr.mxu0 0.0
    %1176 = vmatpush1.msra.mxu0 0.0
    %1177 = vmatprep.subr.mxu0 0.0
    %1178 = vmatpush1.msra.mxu0 0.0
    %1179 = vmatprep.subr.mxu0 0.0
    %1180 = vmatpush1.msra.mxu0 0.0
    %1181 = vmatprep.subr.mxu0 0.0
    %1182 = vmatpush1.msra.mxu0 0.0
    %1183 = vmatprep.subr.mxu0 0.0
    %1184 = vmatpush1.msra.mxu0 0.0
    %1185 = vmatprep.subr.mxu0 0.0
    %1186 = vmatpush1.msra.mxu0 0.0
    %1187 = vmatprep.subr.mxu0 0.0
    %1188 = vmatpush1.msra.mxu0 0.0
    %1189 = vmatprep.subr.mxu0 0.0
    %1190 = vmatpush1.msra.mxu0 0.0
    %1191 = vmatprep.subr.mxu0 0.0
    %1192 = vmatpush1.msra.mxu0 0.0
    %1193 = vmatprep.subr.mxu0 0.0
    %1194 = vmatpush1.msra.mxu0 0.0
    %1195 = vmatprep.mubr.f32.mxu0 0.0
    %v1196 = vand.u32 %v1030, 4294901760
    %1197 = vmatmul.mubr.f32.gmra.mrb[0].mxu0 %v1196
    %v1198 = vpop.f32.mrb[0].mxu0
    %v1199 = vadd.f32 %v1108, %v1198
    %v1200 = vpop.f32.mrb[0].mxu0
    %1201 = vdwg.mxu0
    %1202 = vmatprep.subr.mxu0 0.0
    %v1203 = vand.u32 %v28, 4294901760
    %v1204 = vsub.f32 %v28, %v1203
    %1205 = vmatpush1.msra.mxu0 %v1204
    %1206 = vmatprep.subr.mxu0 0.0
    %v1207 = vand.u32 %v29, 4294901760
    %v1208 = vsub.f32 %v29, %v1207
    %1209 = vmatpush1.msra.mxu0 %v1208
    %1210 = vmatprep.subr.mxu0 0.0
    %v1211 = vand.u32 %v30, 4294901760
    %v1212 = vsub.f32 %v30, %v1211
    %1213 = vmatpush1.msra.mxu0 %v1212
    %1214 = vmatprep.subr.mxu0 0.0
    %v1215 = vand.u32 %v31, 4294901760
    %v1216 = vsub.f32 %v31, %v1215
    %1217 = vmatpush1.msra.mxu0 %v1216
    %1218 = vmatprep.subr.mxu0 0.0
    %1219 = vmatpush1.msra.mxu0 0.0
    %1220 = vmatprep.subr.mxu0 0.0
    %1221 = vmatpush1.msra.mxu0 0.0
    %1222 = vmatprep.subr.mxu0 0.0
    %1223 = vmatpush1.msra.mxu0 0.0
    %1224 = vmatprep.subr.mxu0 0.0
    %1225 = vmatpush1.msra.mxu0 0.0
    %1226 = vmatprep.subr.mxu0 0.0
    %1227 = vmatpush1.msra.mxu0 0.0
    %1228 = vmatprep.subr.mxu0 0.0
    %1229 = vmatpush1.msra.mxu0 0.0
    %1230 = vmatprep.subr.mxu0 0.0
    %1231 = vmatpush1.msra.mxu0 0.0
    %1232 = vmatprep.subr.mxu0 0.0
    %1233 = vmatpush1.msra.mxu0 0.0
    %1234 = vmatprep.subr.mxu0 0.0
    %1235 = vmatpush1.msra.mxu0 0.0
    %1236 = vmatprep.subr.mxu0 0.0
    %1237 = vmatpush1.msra.mxu0 0.0
    %1238 = vmatprep.subr.mxu0 0.0
    %1239 = vmatpush1.msra.mxu0 0.0
    %1240 = vmatprep.subr.mxu0 0.0
    %1241 = vmatpush1.msra.mxu0 0.0
    %1242 = vmatprep.subr.mxu0 0.0
    %1243 = vmatpush1.msra.mxu0 0.0
    %1244 = vmatprep.subr.mxu0 0.0
    %1245 = vmatpush1.msra.mxu0 0.0
    %1246 = vmatprep.subr.mxu0 0.0
    %1247 = vmatpush1.msra.mxu0 0.0
    %1248 = vmatprep.subr.mxu0 0.0
    %1249 = vmatpush1.msra.mxu0 0.0
    %1250 = vmatprep.subr.mxu0 0.0
    %1251 = vmatpush1.msra.mxu0 0.0
    %1252 = vmatprep.subr.mxu0 0.0
    %1253 = vmatpush1.msra.mxu0 0.0
    %1254 = vmatprep.subr.mxu0 0.0
    %1255 = vmatpush1.msra.mxu0 0.0
    %1256 = vmatprep.subr.mxu0 0.0
    %1257 = vmatpush1.msra.mxu0 0.0
    %1258 = vmatprep.subr.mxu0 0.0
    %1259 = vmatpush1.msra.mxu0 0.0
    %1260 = vmatprep.subr.mxu0 0.0
    %1261 = vmatpush1.msra.mxu0 0.0
    %1262 = vmatprep.subr.mxu0 0.0
    %1263 = vmatpush1.msra.mxu0 0.0
    %1264 = vmatprep.subr.mxu0 0.0
    %1265 = vmatpush1.msra.mxu0 0.0
    %1266 = vmatprep.subr.mxu0 0.0
    %1267 = vmatpush1.msra.mxu0 0.0
    %1268 = vmatprep.subr.mxu0 0.0
    %1269 = vmatpush1.msra.mxu0 0.0
    %1270 = vmatprep.subr.mxu0 0.0
    %1271 = vmatpush1.msra.mxu0 0.0
    %1272 = vmatprep.subr.mxu0 0.0
    %1273 = vmatpush1.msra.mxu0 0.0
    %1274 = vmatprep.mubr.f32.mxu0 0.0
    %v1275 = vand.u32 %v1030, 4294901760
    %v1276 = vsub.f32 %v1030, %v1275
    %1277 = vmatmul.mubr.f32.gmra.mrb[0].mxu0 %v1276
    %v1278 = vpop.f32.mrb[0].mxu0
    %v1279 = vadd.f32 %v1199, %v1278
    %v1280 = vpop.f32.mrb[0].mxu0
    %1281 = vdwg.mxu0
    %1282 = vmatprep.subr.mxu0 0.0
    %v1283 = vand.u32 %v28, 4294901760
    %1284 = vmatpush1.msra.mxu0 %v1283
    %1285 = vmatprep.subr.mxu0 0.0
    %v1286 = vand.u32 %v29, 4294901760
    %1287 = vmatpush1.msra.mxu0 %v1286
    %1288 = vmatprep.subr.mxu0 0.0
    %v1289 = vand.u32 %v30, 4294901760
    %1290 = vmatpush1.msra.mxu0 %v1289
    %1291 = vmatprep.subr.mxu0 0.0
    %v1292 = vand.u32 %v31, 4294901760
    %1293 = vmatpush1.msra.mxu0 %v1292
    %1294 = vmatprep.subr.mxu0 0.0
    %1295 = vmatpush1.msra.mxu0 0.0
    %1296 = vmatprep.subr.mxu0 0.0
    %1297 = vmatpush1.msra.mxu0 0.0
    %1298 = vmatprep.subr.mxu0 0.0
    %1299 = vmatpush1.msra.mxu0 0.0
    %1300 = vmatprep.subr.mxu0 0.0
    %1301 = vmatpush1.msra.mxu0 0.0
    %1302 = vmatprep.subr.mxu0 0.0
    %1303 = vmatpush1.msra.mxu0 0.0
    %1304 = vmatprep.subr.mxu0 0.0
    %1305 = vmatpush1.msra.mxu0 0.0
    %1306 = vmatprep.subr.mxu0 0.0
    %1307 = vmatpush1.msra.mxu0 0.0
    %1308 = vmatprep.subr.mxu0 0.0
    %1309 = vmatpush1.msra.mxu0 0.0
    %1310 = vmatprep.subr.mxu0 0.0
    %1311 = vmatpush1.msra.mxu0 0.0
    %1312 = vmatprep.subr.mxu0 0.0
    %1313 = vmatpush1.msra.mxu0 0.0
    %1314 = vmatprep.subr.mxu0 0.0
    %1315 = vmatpush1.msra.mxu0 0.0
    %1316 = vmatprep.subr.mxu0 0.0
    %1317 = vmatpush1.msra.mxu0 0.0
    %1318 = vmatprep.subr.mxu0 0.0
    %1319 = vmatpush1.msra.mxu0 0.0
    %1320 = vmatprep.subr.mxu0 0.0
    %1321 = vmatpush1.msra.mxu0 0.0
    %1322 = vmatprep.subr.mxu0 0.0
    %1323 = vmatpush1.msra.mxu0 0.0
    %1324 = vmatprep.subr.mxu0 0.0
    %1325 = vmatpush1.msra.mxu0 0.0
    %1326 = vmatprep.subr.mxu0 0.0
    %1327 = vmatpush1.msra.mxu0 0.0
    %1328 = vmatprep.subr.mxu0 0.0
    %1329 = vmatpush1.msra.mxu0 0.0
    %1330 = vmatprep.subr.mxu0 0.0
    %1331 = vmatpush1.msra.mxu0 0.0
    %1332 = vmatprep.subr.mxu0 0.0
    %1333 = vmatpush1.msra.mxu0 0.0
    %1334 = vmatprep.subr.mxu0 0.0
    %1335 = vmatpush1.msra.mxu0 0.0
    %1336 = vmatprep.subr.mxu0 0.0
    %1337 = vmatpush1.msra.mxu0 0.0
    %1338 = vmatprep.subr.mxu0 0.0
    %1339 = vmatpush1.msra.mxu0 0.0
    %1340 = vmatprep.subr.mxu0 0.0
    %1341 = vmatpush1.msra.mxu0 0.0
    %1342 = vmatprep.subr.mxu0 0.0
    %1343 = vmatpush1.msra.mxu0 0.0
    %1344 = vmatprep.subr.mxu0 0.0
    %1345 = vmatpush1.msra.mxu0 0.0
    %1346 = vmatprep.subr.mxu0 0.0
    %1347 = vmatpush1.msra.mxu0 0.0
    %1348 = vmatprep.subr.mxu0 0.0
    %1349 = vmatpush1.msra.mxu0 0.0
    %1350 = vmatprep.mubr.f32.mxu0 0.0
    %v1351 = vand.u32 %v1030, 4294901760
    %v1352 = vsub.f32 %v1030, %v1351
    %v1353 = vand.u32 %v1352, 4294901760
    %1354 = vmatmul.mubr.f32.gmra.mrb[0].mxu0 %v1353
    %v1355 = vpop.f32.mrb[0].mxu0
    %v1356 = vadd.f32 %v1279, %v1355
    %v1357 = vpop.f32.mrb[0].mxu0
    %1358 = vdwg.mxu0
    %1359 = vmatprep.subr.mxu0 0.0
    %v1360 = vand.u32 %v28, 4294901760
    %v1361 = vsub.f32 %v28, %v1360
    %v1362 = vand.u32 %v1361, 4294901760
    %1363 = vmatpush1.msra.mxu0 %v1362
    %1364 = vmatprep.subr.mxu0 0.0
    %v1365 = vand.u32 %v29, 4294901760
    %v1366 = vsub.f32 %v29, %v1365
    %v1367 = vand.u32 %v1366, 4294901760
    %1368 = vmatpush1.msra.mxu0 %v1367
    %1369 = vmatprep.subr.mxu0 0.0
    %v1370 = vand.u32 %v30, 4294901760
    %v1371 = vsub.f32 %v30, %v1370
    %v1372 = vand.u32 %v1371, 4294901760
    %1373 = vmatpush1.msra.mxu0 %v1372
    %1374 = vmatprep.subr.mxu0 0.0
    %v1375 = vand.u32 %v31, 4294901760
    %v1376 = vsub.f32 %v31, %v1375
    %v1377 = vand.u32 %v1376, 4294901760
    %1378 = vmatpush1.msra.mxu0 %v1377
    %1379 = vmatprep.subr.mxu0 0.0
    %1380 = vmatpush1.msra.mxu0 0.0
    %1381 = vmatprep.subr.mxu0 0.0
    %1382 = vmatpush1.msra.mxu0 0.0
    %1383 = vmatprep.subr.mxu0 0.0
    %1384 = vmatpush1.msra.mxu0 0.0
    %1385 = vmatprep.subr.mxu0 0.0
    %1386 = vmatpush1.msra.mxu0 0.0
    %1387 = vmatprep.subr.mxu0 0.0
    %1388 = vmatpush1.msra.mxu0 0.0
    %1389 = vmatprep.subr.mxu0 0.0
    %1390 = vmatpush1.msra.mxu0 0.0
    %1391 = vmatprep.subr.mxu0 0.0
    %1392 = vmatpush1.msra.mxu0 0.0
    %1393 = vmatprep.subr.mxu0 0.0
    %1394 = vmatpush1.msra.mxu0 0.0
    %1395 = vmatprep.subr.mxu0 0.0
    %1396 = vmatpush1.msra.mxu0 0.0
    %1397 = vmatprep.subr.mxu0 0.0
    %1398 = vmatpush1.msra.mxu0 0.0
    %1399 = vmatprep.subr.mxu0 0.0
    %1400 = vmatpush1.msra.mxu0 0.0
    %1401 = vmatprep.subr.mxu0 0.0
    %1402 = vmatpush1.msra.mxu0 0.0
    %1403 = vmatprep.subr.mxu0 0.0
    %1404 = vmatpush1.msra.mxu0 0.0
    %1405 = vmatprep.subr.mxu0 0.0
    %1406 = vmatpush1.msra.mxu0 0.0
    %1407 = vmatprep.subr.mxu0 0.0
    %1408 = vmatpush1.msra.mxu0 0.0
    %1409 = vmatprep.subr.mxu0 0.0
    %1410 = vmatpush1.msra.mxu0 0.0
    %1411 = vmatprep.subr.mxu0 0.0
    %1412 = vmatpush1.msra.mxu0 0.0
    %1413 = vmatprep.subr.mxu0 0.0
    %1414 = vmatpush1.msra.mxu0 0.0
    %1415 = vmatprep.subr.mxu0 0.0
    %1416 = vmatpush1.msra.mxu0 0.0
    %1417 = vmatprep.subr.mxu0 0.0
    %1418 = vmatpush1.msra.mxu0 0.0
    %1419 = vmatprep.subr.mxu0 0.0
    %1420 = vmatpush1.msra.mxu0 0.0
    %1421 = vmatprep.subr.mxu0 0.0
    %1422 = vmatpush1.msra.mxu0 0.0
    %1423 = vmatprep.subr.mxu0 0.0
    %1424 = vmatpush1.msra.mxu0 0.0
    %1425 = vmatprep.subr.mxu0 0.0
    %1426 = vmatpush1.msra.mxu0 0.0
    %1427 = vmatprep.subr.mxu0 0.0
    %1428 = vmatpush1.msra.mxu0 0.0
    %1429 = vmatprep.subr.mxu0 0.0
    %1430 = vmatpush1.msra.mxu0 0.0
    %1431 = vmatprep.subr.mxu0 0.0
    %1432 = vmatpush1.msra.mxu0 0.0
    %1433 = vmatprep.subr.mxu0 0.0
    %1434 = vmatpush1.msra.mxu0 0.0
    %1435 = vmatprep.mubr.f32.mxu0 0.0
    %v1436 = vand.u32 %v1030, 4294901760
    %1437 = vmatmul.mubr.f32.gmra.mrb[0].mxu0 %v1436
    %v1438 = vpop.f32.mrb[0].mxu0
    %v1439 = vadd.f32 %v1356, %v1438
    %v1440 = vpop.f32.mrb[0].mxu0
    %1441 = vdwg.mxu0
    %1442 = vmatprep.subr.mxu0 0.0
    %v1443 = vand.u32 %v28, 4294901760
    %1444 = vmatpush1.msra.mxu0 %v1443
    %1445 = vmatprep.subr.mxu0 0.0
    %v1446 = vand.u32 %v29, 4294901760
    %1447 = vmatpush1.msra.mxu0 %v1446
    %1448 = vmatprep.subr.mxu0 0.0
    %v1449 = vand.u32 %v30, 4294901760
    %1450 = vmatpush1.msra.mxu0 %v1449
    %1451 = vmatprep.subr.mxu0 0.0
    %v1452 = vand.u32 %v31, 4294901760
    %1453 = vmatpush1.msra.mxu0 %v1452
    %1454 = vmatprep.subr.mxu0 0.0
    %1455 = vmatpush1.msra.mxu0 0.0
    %1456 = vmatprep.subr.mxu0 0.0
    %1457 = vmatpush1.msra.mxu0 0.0
    %1458 = vmatprep.subr.mxu0 0.0
    %1459 = vmatpush1.msra.mxu0 0.0
    %1460 = vmatprep.subr.mxu0 0.0
    %1461 = vmatpush1.msra.mxu0 0.0
    %1462 = vmatprep.subr.mxu0 0.0
    %1463 = vmatpush1.msra.mxu0 0.0
    %1464 = vmatprep.subr.mxu0 0.0
    %1465 = vmatpush1.msra.mxu0 0.0
    %1466 = vmatprep.subr.mxu0 0.0
    %1467 = vmatpush1.msra.mxu0 0.0
    %1468 = vmatprep.subr.mxu0 0.0
    %1469 = vmatpush1.msra.mxu0 0.0
    %1470 = vmatprep.subr.mxu0 0.0
    %1471 = vmatpush1.msra.mxu0 0.0
    %1472 = vmatprep.subr.mxu0 0.0
    %1473 = vmatpush1.msra.mxu0 0.0
    %1474 = vmatprep.subr.mxu0 0.0
    %1475 = vmatpush1.msra.mxu0 0.0
    %1476 = vmatprep.subr.mxu0 0.0
    %1477 = vmatpush1.msra.mxu0 0.0
    %1478 = vmatprep.subr.mxu0 0.0
    %1479 = vmatpush1.msra.mxu0 0.0
    %1480 = vmatprep.subr.mxu0 0.0
    %1481 = vmatpush1.msra.mxu0 0.0
    %1482 = vmatprep.subr.mxu0 0.0
    %1483 = vmatpush1.msra.mxu0 0.0
    %1484 = vmatprep.subr.mxu0 0.0
    %1485 = vmatpush1.msra.mxu0 0.0
    %1486 = vmatprep.subr.mxu0 0.0
    %1487 = vmatpush1.msra.mxu0 0.0
    %1488 = vmatprep.subr.mxu0 0.0
    %1489 = vmatpush1.msra.mxu0 0.0
    %1490 = vmatprep.subr.mxu0 0.0
    %1491 = vmatpush1.msra.mxu0 0.0
    %1492 = vmatprep.subr.mxu0 0.0
    %1493 = vmatpush1.msra.mxu0 0.0
    %1494 = vmatprep.subr.mxu0 0.0
    %1495 = vmatpush1.msra.mxu0 0.0
    %1496 = vmatprep.subr.mxu0 0.0
    %1497 = vmatpush1.msra.mxu0 0.0
    %1498 = vmatprep.subr.mxu0 0.0
    %1499 = vmatpush1.msra.mxu0 0.0
    %1500 = vmatprep.subr.mxu0 0.0
    %1501 = vmatpush1.msra.mxu0 0.0
    %1502 = vmatprep.subr.mxu0 0.0
    %1503 = vmatpush1.msra.mxu0 0.0
    %1504 = vmatprep.subr.mxu0 0.0
    %1505 = vmatpush1.msra.mxu0 0.0
    %1506 = vmatprep.subr.mxu0 0.0
    %1507 = vmatpush1.msra.mxu0 0.0
    %1508 = vmatprep.subr.mxu0 0.0
    %1509 = vmatpush1.msra.mxu0 0.0
    %1510 = vmatprep.mubr.f32.mxu0 0.0
    %v1511 = vand.u32 %v1030, 4294901760
    %1512 = vmatmul.mubr.f32.gmra.mrb[0].mxu0 %v1511
    %v1513 = vpop.f32.mrb[0].mxu0
    %v1514 = vadd.f32 %v1439, %v1513
    %v1515 = vpop.f32.mrb[0].mxu0
    %1516 = vdwg.mxu0
    %v1518 = vsel %vm52, %v15, 0
    %1520 = vmatprep.subr.mxu0 0.0
    %v1521 = vand.u32 %v32, 4294901760
    %1522 = vmatpush1.msra.mxu0 %v1521
    %1523 = vmatprep.subr.mxu0 0.0
    %v1524 = vand.u32 %v33, 4294901760
    %1525 = vmatpush1.msra.mxu0 %v1524
    %1526 = vmatprep.subr.mxu0 0.0
    %v1527 = vand.u32 %v34, 4294901760
    %1528 = vmatpush1.msra.mxu0 %v1527
    %1529 = vmatprep.subr.mxu0 0.0
    %v1530 = vand.u32 %v35, 4294901760
    %1531 = vmatpush1.msra.mxu0 %v1530
    %1532 = vmatprep.subr.mxu0 0.0
    %1533 = vmatpush1.msra.mxu0 0.0
    %1534 = vmatprep.subr.mxu0 0.0
    %1535 = vmatpush1.msra.mxu0 0.0
    %1536 = vmatprep.subr.mxu0 0.0
    %1537 = vmatpush1.msra.mxu0 0.0
    %1538 = vmatprep.subr.mxu0 0.0
    %1539 = vmatpush1.msra.mxu0 0.0
    %1540 = vmatprep.subr.mxu0 0.0
    %1541 = vmatpush1.msra.mxu0 0.0
    %1542 = vmatprep.subr.mxu0 0.0
    %1543 = vmatpush1.msra.mxu0 0.0
    %1544 = vmatprep.subr.mxu0 0.0
    %1545 = vmatpush1.msra.mxu0 0.0
    %1546 = vmatprep.subr.mxu0 0.0
    %1547 = vmatpush1.msra.mxu0 0.0
    %1548 = vmatprep.subr.mxu0 0.0
    %1549 = vmatpush1.msra.mxu0 0.0
    %1550 = vmatprep.subr.mxu0 0.0
    %1551 = vmatpush1.msra.mxu0 0.0
    %1552 = vmatprep.subr.mxu0 0.0
    %1553 = vmatpush1.msra.mxu0 0.0
    %1554 = vmatprep.subr.mxu0 0.0
    %1555 = vmatpush1.msra.mxu0 0.0
    %1556 = vmatprep.subr.mxu0 0.0
    %1557 = vmatpush1.msra.mxu0 0.0
    %1558 = vmatprep.subr.mxu0 0.0
    %1559 = vmatpush1.msra.mxu0 0.0
    %1560 = vmatprep.subr.mxu0 0.0
    %1561 = vmatpush1.msra.mxu0 0.0
    %1562 = vmatprep.subr.mxu0 0.0
    %1563 = vmatpush1.msra.mxu0 0.0
    %1564 = vmatprep.subr.mxu0 0.0
    %1565 = vmatpush1.msra.mxu0 0.0
    %1566 = vmatprep.subr.mxu0 0.0
    %1567 = vmatpush1.msra.mxu0 0.0
    %1568 = vmatprep.subr.mxu0 0.0
    %1569 = vmatpush1.msra.mxu0 0.0
    %1570 = vmatprep.subr.mxu0 0.0
    %1571 = vmatpush1.msra.mxu0 0.0
    %1572 = vmatprep.subr.mxu0 0.0
    %1573 = vmatpush1.msra.mxu0 0.0
    %1574 = vmatprep.subr.mxu0 0.0
    %1575 = vmatpush1.msra.mxu0 0.0
    %1576 = vmatprep.subr.mxu0 0.0
    %1577 = vmatpush1.msra.mxu0 0.0
    %1578 = vmatprep.subr.mxu0 0.0
    %1579 = vmatpush1.msra.mxu0 0.0
    %1580 = vmatprep.subr.mxu0 0.0
    %1581 = vmatpush1.msra.mxu0 0.0
    %1582 = vmatprep.subr.mxu0 0.0
    %1583 = vmatpush1.msra.mxu0 0.0
    %1584 = vmatprep.subr.mxu0 0.0
    %1585 = vmatpush1.msra.mxu0 0.0
    %1586 = vmatprep.subr.mxu0 0.0
    %1587 = vmatpush1.msra.mxu0 0.0
    %1588 = vmatprep.mubr.f32.mxu0 0.0
    %v1589 = vand.u32 %v1518, 4294901760
    %v1590 = vsub.f32 %v1518, %v1589
    %v1591 = vand.u32 %v1590, 4294901760
    %v1592 = vsub.f32 %v1590, %v1591
    %v1593 = vand.u32 %v1592, 4294901760
    %1594 = vmatmul.mubr.f32.gmra.mrb[0].mxu0 %v1593
    %v1595 = vpop.f32.mrb[0].mxu0
    %v1596 = vadd.f32 0.0, %v1595
    %v1597 = vpop.f32.mrb[0].mxu0
    %1598 = vdwg.mxu0
    %1599 = vmatprep.subr.mxu0 0.0
    %v1600 = vand.u32 %v32, 4294901760
    %v1601 = vsub.f32 %v32, %v1600
    %v1602 = vand.u32 %v1601, 4294901760
    %v1603 = vsub.f32 %v1601, %v1602
    %v1604 = vand.u32 %v1603, 4294901760
    %1605 = vmatpush1.msra.mxu0 %v1604
    %1606 = vmatprep.subr.mxu0 0.0
    %v1607 = vand.u32 %v33, 4294901760
    %v1608 = vsub.f32 %v33, %v1607
    %v1609 = vand.u32 %v1608, 4294901760
    %v1610 = vsub.f32 %v1608, %v1609
    %v1611 = vand.u32 %v1610, 4294901760
    %1612 = vmatpush1.msra.mxu0 %v1611
    %1613 = vmatprep.subr.mxu0 0.0
    %v1614 = vand.u32 %v34, 4294901760
    %v1615 = vsub.f32 %v34, %v1614
    %v1616 = vand.u32 %v1615, 4294901760
    %v1617 = vsub.f32 %v1615, %v1616
    %v1618 = vand.u32 %v1617, 4294901760
    %1619 = vmatpush1.msra.mxu0 %v1618
    %1620 = vmatprep.subr.mxu0 0.0
    %v1621 = vand.u32 %v35, 4294901760
    %v1622 = vsub.f32 %v35, %v1621
    %v1623 = vand.u32 %v1622, 4294901760
    %v1624 = vsub.f32 %v1622, %v1623
    %v1625 = vand.u32 %v1624, 4294901760
    %1626 = vmatpush1.msra.mxu0 %v1625
    %1627 = vmatprep.subr.mxu0 0.0
    %1628 = vmatpush1.msra.mxu0 0.0
    %1629 = vmatprep.subr.mxu0 0.0
    %1630 = vmatpush1.msra.mxu0 0.0
    %1631 = vmatprep.subr.mxu0 0.0
    %1632 = vmatpush1.msra.mxu0 0.0
    %1633 = vmatprep.subr.mxu0 0.0
    %1634 = vmatpush1.msra.mxu0 0.0
    %1635 = vmatprep.subr.mxu0 0.0
    %1636 = vmatpush1.msra.mxu0 0.0
    %1637 = vmatprep.subr.mxu0 0.0
    %1638 = vmatpush1.msra.mxu0 0.0
    %1639 = vmatprep.subr.mxu0 0.0
    %1640 = vmatpush1.msra.mxu0 0.0
    %1641 = vmatprep.subr.mxu0 0.0
    %1642 = vmatpush1.msra.mxu0 0.0
    %1643 = vmatprep.subr.mxu0 0.0
    %1644 = vmatpush1.msra.mxu0 0.0
    %1645 = vmatprep.subr.mxu0 0.0
    %1646 = vmatpush1.msra.mxu0 0.0
    %1647 = vmatprep.subr.mxu0 0.0
    %1648 = vmatpush1.msra.mxu0 0.0
    %1649 = vmatprep.subr.mxu0 0.0
    %1650 = vmatpush1.msra.mxu0 0.0
    %1651 = vmatprep.subr.mxu0 0.0
    %1652 = vmatpush1.msra.mxu0 0.0
    %1653 = vmatprep.subr.mxu0 0.0
    %1654 = vmatpush1.msra.mxu0 0.0
    %1655 = vmatprep.subr.mxu0 0.0
    %1656 = vmatpush1.msra.mxu0 0.0
    %1657 = vmatprep.subr.mxu0 0.0
    %1658 = vmatpush1.msra.mxu0 0.0
    %1659 = vmatprep.subr.mxu0 0.0
    %1660 = vmatpush1.msra.mxu0 0.0
    %1661 = vmatprep.subr.mxu0 0.0
    %1662 = vmatpush1.msra.mxu0 0.0
    %1663 = vmatprep.subr.mxu0 0.0
    %1664 = vmatpush1.msra.mxu0 0.0
    %1665 = vmatprep.subr.mxu0 0.0
    %1666 = vmatpush1.msra.mxu0 0.0
    %1667 = vmatprep.subr.mxu0 0.0
    %1668 = vmatpush1.msra.mxu0 0.0
    %1669 = vmatprep.subr.mxu0 0.0
    %1670 = vmatpush1.msra.mxu0 0.0
    %1671 = vmatprep.subr.mxu0 0.0
    %1672 = vmatpush1.msra.mxu0 0.0
    %1673 = vmatprep.subr.mxu0 0.0
    %1674 = vmatpush1.msra.mxu0 0.0
    %1675 = vmatprep.subr.mxu0 0.0
    %1676 = vmatpush1.msra.mxu0 0.0
    %1677 = vmatprep.subr.mxu0 0.0
    %1678 = vmatpush1.msra.mxu0 0.0
    %1679 = vmatprep.subr.mxu0 0.0
    %1680 = vmatpush1.msra.mxu0 0.0
    %1681 = vmatprep.subr.mxu0 0.0
    %1682 = vmatpush1.msra.mxu0 0.0
    %1683 = vmatprep.mubr.f32.mxu0 0.0
    %v1684 = vand.u32 %v1518, 4294901760
    %1685 = vmatmul.mubr.f32.gmra.mrb[0].mxu0 %v1684
    %v1686 = vpop.f32.mrb[0].mxu0
    %v1687 = vadd.f32 %v1596, %v1686
    %v1688 = vpop.f32.mrb[0].mxu0
    %1689 = vdwg.mxu0
    %1690 = vmatprep.subr.mxu0 0.0
    %v1691 = vand.u32 %v32, 4294901760
    %v1692 = vsub.f32 %v32, %v1691
    %1693 = vmatpush1.msra.mxu0 %v1692
    %1694 = vmatprep.subr.mxu0 0.0
    %v1695 = vand.u32 %v33, 4294901760
    %v1696 = vsub.f32 %v33, %v1695
    %1697 = vmatpush1.msra.mxu0 %v1696
    %1698 = vmatprep.subr.mxu0 0.0
    %v1699 = vand.u32 %v34, 4294901760
    %v1700 = vsub.f32 %v34, %v1699
    %1701 = vmatpush1.msra.mxu0 %v1700
    %1702 = vmatprep.subr.mxu0 0.0
    %v1703 = vand.u32 %v35, 4294901760
    %v1704 = vsub.f32 %v35, %v1703
    %1705 = vmatpush1.msra.mxu0 %v1704
    %1706 = vmatprep.subr.mxu0 0.0
    %1707 = vmatpush1.msra.mxu0 0.0
    %1708 = vmatprep.subr.mxu0 0.0
    %1709 = vmatpush1.msra.mxu0 0.0
    %1710 = vmatprep.subr.mxu0 0.0
    %1711 = vmatpush1.msra.mxu0 0.0
    %1712 = vmatprep.subr.mxu0 0.0
    %1713 = vmatpush1.msra.mxu0 0.0
    %1714 = vmatprep.subr.mxu0 0.0
    %1715 = vmatpush1.msra.mxu0 0.0
    %1716 = vmatprep.subr.mxu0 0.0
    %1717 = vmatpush1.msra.mxu0 0.0
    %1718 = vmatprep.subr.mxu0 0.0
    %1719 = vmatpush1.msra.mxu0 0.0
    %1720 = vmatprep.subr.mxu0 0.0
    %1721 = vmatpush1.msra.mxu0 0.0
    %1722 = vmatprep.subr.mxu0 0.0
    %1723 = vmatpush1.msra.mxu0 0.0
    %1724 = vmatprep.subr.mxu0 0.0
    %1725 = vmatpush1.msra.mxu0 0.0
    %1726 = vmatprep.subr.mxu0 0.0
    %1727 = vmatpush1.msra.mxu0 0.0
    %1728 = vmatprep.subr.mxu0 0.0
    %1729 = vmatpush1.msra.mxu0 0.0
    %1730 = vmatprep.subr.mxu0 0.0
    %1731 = vmatpush1.msra.mxu0 0.0
    %1732 = vmatprep.subr.mxu0 0.0
    %1733 = vmatpush1.msra.mxu0 0.0
    %1734 = vmatprep.subr.mxu0 0.0
    %1735 = vmatpush1.msra.mxu0 0.0
    %1736 = vmatprep.subr.mxu0 0.0
    %1737 = vmatpush1.msra.mxu0 0.0
    %1738 = vmatprep.subr.mxu0 0.0
    %1739 = vmatpush1.msra.mxu0 0.0
    %1740 = vmatprep.subr.mxu0 0.0
    %1741 = vmatpush1.msra.mxu0 0.0
    %1742 = vmatprep.subr.mxu0 0.0
    %1743 = vmatpush1.msra.mxu0 0.0
    %1744 = vmatprep.subr.mxu0 0.0
    %1745 = vmatpush1.msra.mxu0 0.0
    %1746 = vmatprep.subr.mxu0 0.0
    %1747 = vmatpush1.msra.mxu0 0.0
    %1748 = vmatprep.subr.mxu0 0.0
    %1749 = vmatpush1.msra.mxu0 0.0
    %1750 = vmatprep.subr.mxu0 0.0
    %1751 = vmatpush1.msra.mxu0 0.0
    %1752 = vmatprep.subr.mxu0 0.0
    %1753 = vmatpush1.msra.mxu0 0.0
    %1754 = vmatprep.subr.mxu0 0.0
    %1755 = vmatpush1.msra.mxu0 0.0
    %1756 = vmatprep.subr.mxu0 0.0
    %1757 = vmatpush1.msra.mxu0 0.0
    %1758 = vmatprep.subr.mxu0 0.0
    %1759 = vmatpush1.msra.mxu0 0.0
    %1760 = vmatprep.subr.mxu0 0.0
    %1761 = vmatpush1.msra.mxu0 0.0
    %1762 = vmatprep.mubr.f32.mxu0 0.0
    %v1763 = vand.u32 %v1518, 4294901760
    %v1764 = vsub.f32 %v1518, %v1763
    %1765 = vmatmul.mubr.f32.gmra.mrb[0].mxu0 %v1764
    %v1766 = vpop.f32.mrb[0].mxu0
    %v1767 = vadd.f32 %v1687, %v1766
    %v1768 = vpop.f32.mrb[0].mxu0
    %1769 = vdwg.mxu0
    %1770 = vmatprep.subr.mxu0 0.0
    %v1771 = vand.u32 %v32, 4294901760
    %1772 = vmatpush1.msra.mxu0 %v1771
    %1773 = vmatprep.subr.mxu0 0.0
    %v1774 = vand.u32 %v33, 4294901760
    %1775 = vmatpush1.msra.mxu0 %v1774
    %1776 = vmatprep.subr.mxu0 0.0
    %v1777 = vand.u32 %v34, 4294901760
    %1778 = vmatpush1.msra.mxu0 %v1777
    %1779 = vmatprep.subr.mxu0 0.0
    %v1780 = vand.u32 %v35, 4294901760
    %1781 = vmatpush1.msra.mxu0 %v1780
    %1782 = vmatprep.subr.mxu0 0.0
    %1783 = vmatpush1.msra.mxu0 0.0
    %1784 = vmatprep.subr.mxu0 0.0
    %1785 = vmatpush1.msra.mxu0 0.0
    %1786 = vmatprep.subr.mxu0 0.0
    %1787 = vmatpush1.msra.mxu0 0.0
    %1788 = vmatprep.subr.mxu0 0.0
    %1789 = vmatpush1.msra.mxu0 0.0
    %1790 = vmatprep.subr.mxu0 0.0
    %1791 = vmatpush1.msra.mxu0 0.0
    %1792 = vmatprep.subr.mxu0 0.0
    %1793 = vmatpush1.msra.mxu0 0.0
    %1794 = vmatprep.subr.mxu0 0.0
    %1795 = vmatpush1.msra.mxu0 0.0
    %1796 = vmatprep.subr.mxu0 0.0
    %1797 = vmatpush1.msra.mxu0 0.0
    %1798 = vmatprep.subr.mxu0 0.0
    %1799 = vmatpush1.msra.mxu0 0.0
    %1800 = vmatprep.subr.mxu0 0.0
    %1801 = vmatpush1.msra.mxu0 0.0
    %1802 = vmatprep.subr.mxu0 0.0
    %1803 = vmatpush1.msra.mxu0 0.0
    %1804 = vmatprep.subr.mxu0 0.0
    %1805 = vmatpush1.msra.mxu0 0.0
    %1806 = vmatprep.subr.mxu0 0.0
    %1807 = vmatpush1.msra.mxu0 0.0
    %1808 = vmatprep.subr.mxu0 0.0
    %1809 = vmatpush1.msra.mxu0 0.0
    %1810 = vmatprep.subr.mxu0 0.0
    %1811 = vmatpush1.msra.mxu0 0.0
    %1812 = vmatprep.subr.mxu0 0.0
    %1813 = vmatpush1.msra.mxu0 0.0
    %1814 = vmatprep.subr.mxu0 0.0
    %1815 = vmatpush1.msra.mxu0 0.0
    %1816 = vmatprep.subr.mxu0 0.0
    %1817 = vmatpush1.msra.mxu0 0.0
    %1818 = vmatprep.subr.mxu0 0.0
    %1819 = vmatpush1.msra.mxu0 0.0
    %1820 = vmatprep.subr.mxu0 0.0
    %1821 = vmatpush1.msra.mxu0 0.0
    %1822 = vmatprep.subr.mxu0 0.0
    %1823 = vmatpush1.msra.mxu0 0.0
    %1824 = vmatprep.subr.mxu0 0.0
    %1825 = vmatpush1.msra.mxu0 0.0
    %1826 = vmatprep.subr.mxu0 0.0
    %1827 = vmatpush1.msra.mxu0 0.0
    %1828 = vmatprep.subr.mxu0 0.0
    %1829 = vmatpush1.msra.mxu0 0.0
    %1830 = vmatprep.subr.mxu0 0.0
    %1831 = vmatpush1.msra.mxu0 0.0
    %1832 = vmatprep.subr.mxu0 0.0
    %1833 = vmatpush1.msra.mxu0 0.0
    %1834 = vmatprep.subr.mxu0 0.0
    %1835 = vmatpush1.msra.mxu0 0.0
    %1836 = vmatprep.subr.mxu0 0.0
    %1837 = vmatpush1.msra.mxu0 0.0
    %1838 = vmatprep.mubr.f32.mxu0 0.0
    %v1839 = vand.u32 %v1518, 4294901760
    %v1840 = vsub.f32 %v1518, %v1839
    %v1841 = vand.u32 %v1840, 4294901760
    %1842 = vmatmul.mubr.f32.gmra.mrb[0].mxu0 %v1841
    %v1843 = vpop.f32.mrb[0].mxu0
    %v1844 = vadd.f32 %v1767, %v1843
    %v1845 = vpop.f32.mrb[0].mxu0
    %1846 = vdwg.mxu0
    %1847 = vmatprep.subr.mxu0 0.0
    %v1848 = vand.u32 %v32, 4294901760
    %v1849 = vsub.f32 %v32, %v1848
    %v1850 = vand.u32 %v1849, 4294901760
    %1851 = vmatpush1.msra.mxu0 %v1850
    %1852 = vmatprep.subr.mxu0 0.0
    %v1853 = vand.u32 %v33, 4294901760
    %v1854 = vsub.f32 %v33, %v1853
    %v1855 = vand.u32 %v1854, 4294901760
    %1856 = vmatpush1.msra.mxu0 %v1855
    %1857 = vmatprep.subr.mxu0 0.0
    %v1858 = vand.u32 %v34, 4294901760
    %v1859 = vsub.f32 %v34, %v1858
    %v1860 = vand.u32 %v1859, 4294901760
    %1861 = vmatpush1.msra.mxu0 %v1860
    %1862 = vmatprep.subr.mxu0 0.0
    %v1863 = vand.u32 %v35, 4294901760
    %v1864 = vsub.f32 %v35, %v1863
    %v1865 = vand.u32 %v1864, 4294901760
    %1866 = vmatpush1.msra.mxu0 %v1865
    %1867 = vmatprep.subr.mxu0 0.0
    %1868 = vmatpush1.msra.mxu0 0.0
    %1869 = vmatprep.subr.mxu0 0.0
    %1870 = vmatpush1.msra.mxu0 0.0
    %1871 = vmatprep.subr.mxu0 0.0
    %1872 = vmatpush1.msra.mxu0 0.0
    %1873 = vmatprep.subr.mxu0 0.0
    %1874 = vmatpush1.msra.mxu0 0.0
    %1875 = vmatprep.subr.mxu0 0.0
    %1876 = vmatpush1.msra.mxu0 0.0
    %1877 = vmatprep.subr.mxu0 0.0
    %1878 = vmatpush1.msra.mxu0 0.0
    %1879 = vmatprep.subr.mxu0 0.0
    %1880 = vmatpush1.msra.mxu0 0.0
    %1881 = vmatprep.subr.mxu0 0.0
    %1882 = vmatpush1.msra.mxu0 0.0
    %1883 = vmatprep.subr.mxu0 0.0
    %1884 = vmatpush1.msra.mxu0 0.0
    %1885 = vmatprep.subr.mxu0 0.0
    %1886 = vmatpush1.msra.mxu0 0.0
    %1887 = vmatprep.subr.mxu0 0.0
    %1888 = vmatpush1.msra.mxu0 0.0
    %1889 = vmatprep.subr.mxu0 0.0
    %1890 = vmatpush1.msra.mxu0 0.0
    %1891 = vmatprep.subr.mxu0 0.0
    %1892 = vmatpush1.msra.mxu0 0.0
    %1893 = vmatprep.subr.mxu0 0.0
    %1894 = vmatpush1.msra.mxu0 0.0
    %1895 = vmatprep.subr.mxu0 0.0
    %1896 = vmatpush1.msra.mxu0 0.0
    %1897 = vmatprep.subr.mxu0 0.0
    %1898 = vmatpush1.msra.mxu0 0.0
    %1899 = vmatprep.subr.mxu0 0.0
    %1900 = vmatpush1.msra.mxu0 0.0
    %1901 = vmatprep.subr.mxu0 0.0
    %1902 = vmatpush1.msra.mxu0 0.0
    %1903 = vmatprep.subr.mxu0 0.0
    %1904 = vmatpush1.msra.mxu0 0.0
    %1905 = vmatprep.subr.mxu0 0.0
    %1906 = vmatpush1.msra.mxu0 0.0
    %1907 = vmatprep.subr.mxu0 0.0
    %1908 = vmatpush1.msra.mxu0 0.0
    %1909 = vmatprep.subr.mxu0 0.0
    %1910 = vmatpush1.msra.mxu0 0.0
    %1911 = vmatprep.subr.mxu0 0.0
    %1912 = vmatpush1.msra.mxu0 0.0
    %1913 = vmatprep.subr.mxu0 0.0
    %1914 = vmatpush1.msra.mxu0 0.0
    %1915 = vmatprep.subr.mxu0 0.0
    %1916 = vmatpush1.msra.mxu0 0.0
    %1917 = vmatprep.subr.mxu0 0.0
    %1918 = vmatpush1.msra.mxu0 0.0
    %1919 = vmatprep.subr.mxu0 0.0
    %1920 = vmatpush1.msra.mxu0 0.0
    %1921 = vmatprep.subr.mxu0 0.0
    %1922 = vmatpush1.msra.mxu0 0.0
    %1923 = vmatprep.mubr.f32.mxu0 0.0
    %v1924 = vand.u32 %v1518, 4294901760
    %1925 = vmatmul.mubr.f32.gmra.mrb[0].mxu0 %v1924
    %v1926 = vpop.f32.mrb[0].mxu0
    %v1927 = vadd.f32 %v1844, %v1926
    %v1928 = vpop.f32.mrb[0].mxu0
    %1929 = vdwg.mxu0
    %1930 = vmatprep.subr.mxu0 0.0
    %v1931 = vand.u32 %v32, 4294901760
    %1932 = vmatpush1.msra.mxu0 %v1931
    %1933 = vmatprep.subr.mxu0 0.0
    %v1934 = vand.u32 %v33, 4294901760
    %1935 = vmatpush1.msra.mxu0 %v1934
    %1936 = vmatprep.subr.mxu0 0.0
    %v1937 = vand.u32 %v34, 4294901760
    %1938 = vmatpush1.msra.mxu0 %v1937
    %1939 = vmatprep.subr.mxu0 0.0
    %v1940 = vand.u32 %v35, 4294901760
    %1941 = vmatpush1.msra.mxu0 %v1940
    %1942 = vmatprep.subr.mxu0 0.0
    %1943 = vmatpush1.msra.mxu0 0.0
    %1944 = vmatprep.subr.mxu0 0.0
    %1945 = vmatpush1.msra.mxu0 0.0
    %1946 = vmatprep.subr.mxu0 0.0
    %1947 = vmatpush1.msra.mxu0 0.0
    %1948 = vmatprep.subr.mxu0 0.0
    %1949 = vmatpush1.msra.mxu0 0.0
    %1950 = vmatprep.subr.mxu0 0.0
    %1951 = vmatpush1.msra.mxu0 0.0
    %1952 = vmatprep.subr.mxu0 0.0
    %1953 = vmatpush1.msra.mxu0 0.0
    %1954 = vmatprep.subr.mxu0 0.0
    %1955 = vmatpush1.msra.mxu0 0.0
    %1956 = vmatprep.subr.mxu0 0.0
    %1957 = vmatpush1.msra.mxu0 0.0
    %1958 = vmatprep.subr.mxu0 0.0
    %1959 = vmatpush1.msra.mxu0 0.0
    %1960 = vmatprep.subr.mxu0 0.0
    %1961 = vmatpush1.msra.mxu0 0.0
    %1962 = vmatprep.subr.mxu0 0.0
    %1963 = vmatpush1.msra.mxu0 0.0
    %1964 = vmatprep.subr.mxu0 0.0
    %1965 = vmatpush1.msra.mxu0 0.0
    %1966 = vmatprep.subr.mxu0 0.0
    %1967 = vmatpush1.msra.mxu0 0.0
    %1968 = vmatprep.subr.mxu0 0.0
    %1969 = vmatpush1.msra.mxu0 0.0
    %1970 = vmatprep.subr.mxu0 0.0
    %1971 = vmatpush1.msra.mxu0 0.0
    %1972 = vmatprep.subr.mxu0 0.0
    %1973 = vmatpush1.msra.mxu0 0.0
    %1974 = vmatprep.subr.mxu0 0.0
    %1975 = vmatpush1.msra.mxu0 0.0
    %1976 = vmatprep.subr.mxu0 0.0
    %1977 = vmatpush1.msra.mxu0 0.0
    %1978 = vmatprep.subr.mxu0 0.0
    %1979 = vmatpush1.msra.mxu0 0.0
    %1980 = vmatprep.subr.mxu0 0.0
    %1981 = vmatpush1.msra.mxu0 0.0
    %1982 = vmatprep.subr.mxu0 0.0
    %1983 = vmatpush1.msra.mxu0 0.0
    %1984 = vmatprep.subr.mxu0 0.0
    %1985 = vmatpush1.msra.mxu0 0.0
    %1986 = vmatprep.subr.mxu0 0.0
    %1987 = vmatpush1.msra.mxu0 0.0
    %1988 = vmatprep.subr.mxu0 0.0
    %1989 = vmatpush1.msra.mxu0 0.0
    %1990 = vmatprep.subr.mxu0 0.0
    %1991 = vmatpush1.msra.mxu0 0.0
    %1992 = vmatprep.subr.mxu0 0.0
    %1993 = vmatpush1.msra.mxu0 0.0
    %1994 = vmatprep.subr.mxu0 0.0
    %1995 = vmatpush1.msra.mxu0 0.0
    %1996 = vmatprep.subr.mxu0 0.0
    %1997 = vmatpush1.msra.mxu0 0.0
    %1998 = vmatprep.mubr.f32.mxu0 0.0
    %v1999 = vand.u32 %v1518, 4294901760
    %2000 = vmatmul.mubr.f32.gmra.mrb[0].mxu0 %v1999
    %v2001 = vpop.f32.mrb[0].mxu0
    %v2002 = vadd.f32 %v1927, %v2001
    %v2003 = vpop.f32.mrb[0].mxu0
    %2004 = vdwg.mxu0
    %v2006 = vsel %vm52, %v16, 0
    %2008 = vmatprep.subr.mxu0 0.0
    %v2009 = vand.u32 %v36, 4294901760
    %2010 = vmatpush1.msra.mxu0 %v2009
    %2011 = vmatprep.subr.mxu0 0.0
    %v2012 = vand.u32 %v37, 4294901760
    %2013 = vmatpush1.msra.mxu0 %v2012
    %2014 = vmatprep.subr.mxu0 0.0
    %v2015 = vand.u32 %v38, 4294901760
    %2016 = vmatpush1.msra.mxu0 %v2015
    %2017 = vmatprep.subr.mxu0 0.0
    %v2018 = vand.u32 %v39, 4294901760
    %2019 = vmatpush1.msra.mxu0 %v2018
    %2020 = vmatprep.subr.mxu0 0.0
    %2021 = vmatpush1.msra.mxu0 0.0
    %2022 = vmatprep.subr.mxu0 0.0
    %2023 = vmatpush1.msra.mxu0 0.0
    %2024 = vmatprep.subr.mxu0 0.0
    %2025 = vmatpush1.msra.mxu0 0.0
    %2026 = vmatprep.subr.mxu0 0.0
    %2027 = vmatpush1.msra.mxu0 0.0
    %2028 = vmatprep.subr.mxu0 0.0
    %2029 = vmatpush1.msra.mxu0 0.0
    %2030 = vmatprep.subr.mxu0 0.0
    %2031 = vmatpush1.msra.mxu0 0.0
    %2032 = vmatprep.subr.mxu0 0.0
    %2033 = vmatpush1.msra.mxu0 0.0
    %2034 = vmatprep.subr.mxu0 0.0
    %2035 = vmatpush1.msra.mxu0 0.0
    %2036 = vmatprep.subr.mxu0 0.0
    %2037 = vmatpush1.msra.mxu0 0.0
    %2038 = vmatprep.subr.mxu0 0.0
    %2039 = vmatpush1.msra.mxu0 0.0
    %2040 = vmatprep.subr.mxu0 0.0
    %2041 = vmatpush1.msra.mxu0 0.0
    %2042 = vmatprep.subr.mxu0 0.0
    %2043 = vmatpush1.msra.mxu0 0.0
    %2044 = vmatprep.subr.mxu0 0.0
    %2045 = vmatpush1.msra.mxu0 0.0
    %2046 = vmatprep.subr.mxu0 0.0
    %2047 = vmatpush1.msra.mxu0 0.0
    %2048 = vmatprep.subr.mxu0 0.0
    %2049 = vmatpush1.msra.mxu0 0.0
    %2050 = vmatprep.subr.mxu0 0.0
    %2051 = vmatpush1.msra.mxu0 0.0
    %2052 = vmatprep.subr.mxu0 0.0
    %2053 = vmatpush1.msra.mxu0 0.0
    %2054 = vmatprep.subr.mxu0 0.0
    %2055 = vmatpush1.msra.mxu0 0.0
    %2056 = vmatprep.subr.mxu0 0.0
    %2057 = vmatpush1.msra.mxu0 0.0
    %2058 = vmatprep.subr.mxu0 0.0
    %2059 = vmatpush1.msra.mxu0 0.0
    %2060 = vmatprep.subr.mxu0 0.0
    %2061 = vmatpush1.msra.mxu0 0.0
    %2062 = vmatprep.subr.mxu0 0.0
    %2063 = vmatpush1.msra.mxu0 0.0
    %2064 = vmatprep.subr.mxu0 0.0
    %2065 = vmatpush1.msra.mxu0 0.0
    %2066 = vmatprep.subr.mxu0 0.0
    %2067 = vmatpush1.msra.mxu0 0.0
    %2068 = vmatprep.subr.mxu0 0.0
    %2069 = vmatpush1.msra.mxu0 0.0
    %2070 = vmatprep.subr.mxu0 0.0
    %2071 = vmatpush1.msra.mxu0 0.0
    %2072 = vmatprep.subr.mxu0 0.0
    %2073 = vmatpush1.msra.mxu0 0.0
    %2074 = vmatprep.subr.mxu0 0.0
    %2075 = vmatpush1.msra.mxu0 0.0
    %2076 = vmatprep.mubr.f32.mxu0 0.0
    %v2077 = vand.u32 %v2006, 4294901760
    %v2078 = vsub.f32 %v2006, %v2077
    %v2079 = vand.u32 %v2078, 4294901760
    %v2080 = vsub.f32 %v2078, %v2079
    %v2081 = vand.u32 %v2080, 4294901760
    %2082 = vmatmul.mubr.f32.gmra.mrb[0].mxu0 %v2081
    %v2083 = vpop.f32.mrb[0].mxu0
    %v2084 = vadd.f32 0.0, %v2083
    %v2085 = vpop.f32.mrb[0].mxu0
    %2086 = vdwg.mxu0
    %2087 = vmatprep.subr.mxu0 0.0
    %v2088 = vand.u32 %v36, 4294901760
    %v2089 = vsub.f32 %v36, %v2088
    %v2090 = vand.u32 %v2089, 4294901760
    %v2091 = vsub.f32 %v2089, %v2090
    %v2092 = vand.u32 %v2091, 4294901760
    %2093 = vmatpush1.msra.mxu0 %v2092
    %2094 = vmatprep.subr.mxu0 0.0
    %v2095 = vand.u32 %v37, 4294901760
    %v2096 = vsub.f32 %v37, %v2095
    %v2097 = vand.u32 %v2096, 4294901760
    %v2098 = vsub.f32 %v2096, %v2097
    %v2099 = vand.u32 %v2098, 4294901760
    %2100 = vmatpush1.msra.mxu0 %v2099
    %2101 = vmatprep.subr.mxu0 0.0
    %v2102 = vand.u32 %v38, 4294901760
    %v2103 = vsub.f32 %v38, %v2102
    %v2104 = vand.u32 %v2103, 4294901760
    %v2105 = vsub.f32 %v2103, %v2104
    %v2106 = vand.u32 %v2105, 4294901760
    %2107 = vmatpush1.msra.mxu0 %v2106
    %2108 = vmatprep.subr.mxu0 0.0
    %v2109 = vand.u32 %v39, 4294901760
    %v2110 = vsub.f32 %v39, %v2109
    %v2111 = vand.u32 %v2110, 4294901760
    %v2112 = vsub.f32 %v2110, %v2111
    %v2113 = vand.u32 %v2112, 4294901760
    %2114 = vmatpush1.msra.mxu0 %v2113
    %2115 = vmatprep.subr.mxu0 0.0
    %2116 = vmatpush1.msra.mxu0 0.0
    %2117 = vmatprep.subr.mxu0 0.0
    %2118 = vmatpush1.msra.mxu0 0.0
    %2119 = vmatprep.subr.mxu0 0.0
    %2120 = vmatpush1.msra.mxu0 0.0
    %2121 = vmatprep.subr.mxu0 0.0
    %2122 = vmatpush1.msra.mxu0 0.0
    %2123 = vmatprep.subr.mxu0 0.0
    %2124 = vmatpush1.msra.mxu0 0.0
    %2125 = vmatprep.subr.mxu0 0.0
    %2126 = vmatpush1.msra.mxu0 0.0
    %2127 = vmatprep.subr.mxu0 0.0
    %2128 = vmatpush1.msra.mxu0 0.0
    %2129 = vmatprep.subr.mxu0 0.0
    %2130 = vmatpush1.msra.mxu0 0.0
    %2131 = vmatprep.subr.mxu0 0.0
    %2132 = vmatpush1.msra.mxu0 0.0
    %2133 = vmatprep.subr.mxu0 0.0
    %2134 = vmatpush1.msra.mxu0 0.0
    %2135 = vmatprep.subr.mxu0 0.0
    %2136 = vmatpush1.msra.mxu0 0.0
    %2137 = vmatprep.subr.mxu0 0.0
    %2138 = vmatpush1.msra.mxu0 0.0
    %2139 = vmatprep.subr.mxu0 0.0
    %2140 = vmatpush1.msra.mxu0 0.0
    %2141 = vmatprep.subr.mxu0 0.0
    %2142 = vmatpush1.msra.mxu0 0.0
    %2143 = vmatprep.subr.mxu0 0.0
    %2144 = vmatpush1.msra.mxu0 0.0
    %2145 = vmatprep.subr.mxu0 0.0
    %2146 = vmatpush1.msra.mxu0 0.0
    %2147 = vmatprep.subr.mxu0 0.0
    %2148 = vmatpush1.msra.mxu0 0.0
    %2149 = vmatprep.subr.mxu0 0.0
    %2150 = vmatpush1.msra.mxu0 0.0
    %2151 = vmatprep.subr.mxu0 0.0
    %2152 = vmatpush1.msra.mxu0 0.0
    %2153 = vmatprep.subr.mxu0 0.0
    %2154 = vmatpush1.msra.mxu0 0.0
    %2155 = vmatprep.subr.mxu0 0.0
    %2156 = vmatpush1.msra.mxu0 0.0
    %2157 = vmatprep.subr.mxu0 0.0
    %2158 = vmatpush1.msra.mxu0 0.0
    %2159 = vmatprep.subr.mxu0 0.0
    %2160 = vmatpush1.msra.mxu0 0.0
    %2161 = vmatprep.subr.mxu0 0.0
    %2162 = vmatpush1.msra.mxu0 0.0
    %2163 = vmatprep.subr.mxu0 0.0
    %2164 = vmatpush1.msra.mxu0 0.0
    %2165 = vmatprep.subr.mxu0 0.0
    %2166 = vmatpush1.msra.mxu0 0.0
    %2167 = vmatprep.subr.mxu0 0.0
    %2168 = vmatpush1.msra.mxu0 0.0
    %2169 = vmatprep.subr.mxu0 0.0
    %2170 = vmatpush1.msra.mxu0 0.0
    %2171 = vmatprep.mubr.f32.mxu0 0.0
    %v2172 = vand.u32 %v2006, 4294901760
    %2173 = vmatmul.mubr.f32.gmra.mrb[0].mxu0 %v2172
    %v2174 = vpop.f32.mrb[0].mxu0
    %v2175 = vadd.f32 %v2084, %v2174
    %v2176 = vpop.f32.mrb[0].mxu0
    %2177 = vdwg.mxu0
    %2178 = vmatprep.subr.mxu0 0.0
    %v2179 = vand.u32 %v36, 4294901760
    %v2180 = vsub.f32 %v36, %v2179
    %2181 = vmatpush1.msra.mxu0 %v2180
    %2182 = vmatprep.subr.mxu0 0.0
    %v2183 = vand.u32 %v37, 4294901760
    %v2184 = vsub.f32 %v37, %v2183
    %2185 = vmatpush1.msra.mxu0 %v2184
    %2186 = vmatprep.subr.mxu0 0.0
    %v2187 = vand.u32 %v38, 4294901760
    %v2188 = vsub.f32 %v38, %v2187
    %2189 = vmatpush1.msra.mxu0 %v2188
    %2190 = vmatprep.subr.mxu0 0.0
    %v2191 = vand.u32 %v39, 4294901760
    %v2192 = vsub.f32 %v39, %v2191
    %2193 = vmatpush1.msra.mxu0 %v2192
    %2194 = vmatprep.subr.mxu0 0.0
    %2195 = vmatpush1.msra.mxu0 0.0
    %2196 = vmatprep.subr.mxu0 0.0
    %2197 = vmatpush1.msra.mxu0 0.0
    %2198 = vmatprep.subr.mxu0 0.0
    %2199 = vmatpush1.msra.mxu0 0.0
    %2200 = vmatprep.subr.mxu0 0.0
    %2201 = vmatpush1.msra.mxu0 0.0
    %2202 = vmatprep.subr.mxu0 0.0
    %2203 = vmatpush1.msra.mxu0 0.0
    %2204 = vmatprep.subr.mxu0 0.0
    %2205 = vmatpush1.msra.mxu0 0.0
    %2206 = vmatprep.subr.mxu0 0.0
    %2207 = vmatpush1.msra.mxu0 0.0
    %2208 = vmatprep.subr.mxu0 0.0
    %2209 = vmatpush1.msra.mxu0 0.0
    %2210 = vmatprep.subr.mxu0 0.0
    %2211 = vmatpush1.msra.mxu0 0.0
    %2212 = vmatprep.subr.mxu0 0.0
    %2213 = vmatpush1.msra.mxu0 0.0
    %2214 = vmatprep.subr.mxu0 0.0
    %2215 = vmatpush1.msra.mxu0 0.0
    %2216 = vmatprep.subr.mxu0 0.0
    %2217 = vmatpush1.msra.mxu0 0.0
    %2218 = vmatprep.subr.mxu0 0.0
    %2219 = vmatpush1.msra.mxu0 0.0
    %2220 = vmatprep.subr.mxu0 0.0
    %2221 = vmatpush1.msra.mxu0 0.0
    %2222 = vmatprep.subr.mxu0 0.0
    %2223 = vmatpush1.msra.mxu0 0.0
    %2224 = vmatprep.subr.mxu0 0.0
    %2225 = vmatpush1.msra.mxu0 0.0
    %2226 = vmatprep.subr.mxu0 0.0
    %2227 = vmatpush1.msra.mxu0 0.0
    %2228 = vmatprep.subr.mxu0 0.0
    %2229 = vmatpush1.msra.mxu0 0.0
    %2230 = vmatprep.subr.mxu0 0.0
    %2231 = vmatpush1.msra.mxu0 0.0
    %2232 = vmatprep.subr.mxu0 0.0
    %2233 = vmatpush1.msra.mxu0 0.0
    %2234 = vmatprep.subr.mxu0 0.0
    %2235 = vmatpush1.msra.mxu0 0.0
    %2236 = vmatprep.subr.mxu0 0.0
    %2237 = vmatpush1.msra.mxu0 0.0
    %2238 = vmatprep.subr.mxu0 0.0
    %2239 = vmatpush1.msra.mxu0 0.0
    %2240 = vmatprep.subr.mxu0 0.0
    %2241 = vmatpush1.msra.mxu0 0.0
    %2242 = vmatprep.subr.mxu0 0.0
    %2243 = vmatpush1.msra.mxu0 0.0
    %2244 = vmatprep.subr.mxu0 0.0
    %2245 = vmatpush1.msra.mxu0 0.0
    %2246 = vmatprep.subr.mxu0 0.0
    %2247 = vmatpush1.msra.mxu0 0.0
    %2248 = vmatprep.subr.mxu0 0.0
    %2249 = vmatpush1.msra.mxu0 0.0
    %2250 = vmatprep.mubr.f32.mxu0 0.0
    %v2251 = vand.u32 %v2006, 4294901760
    %v2252 = vsub.f32 %v2006, %v2251
    %2253 = vmatmul.mubr.f32.gmra.mrb[0].mxu0 %v2252
    %v2254 = vpop.f32.mrb[0].mxu0
    %v2255 = vadd.f32 %v2175, %v2254
    %v2256 = vpop.f32.mrb[0].mxu0
    %2257 = vdwg.mxu0
    %2258 = vmatprep.subr.mxu0 0.0
    %v2259 = vand.u32 %v36, 4294901760
    %2260 = vmatpush1.msra.mxu0 %v2259
    %2261 = vmatprep.subr.mxu0 0.0
    %v2262 = vand.u32 %v37, 4294901760
    %2263 = vmatpush1.msra.mxu0 %v2262
    %2264 = vmatprep.subr.mxu0 0.0
    %v2265 = vand.u32 %v38, 4294901760
    %2266 = vmatpush1.msra.mxu0 %v2265
    %2267 = vmatprep.subr.mxu0 0.0
    %v2268 = vand.u32 %v39, 4294901760
    %2269 = vmatpush1.msra.mxu0 %v2268
    %2270 = vmatprep.subr.mxu0 0.0
    %2271 = vmatpush1.msra.mxu0 0.0
    %2272 = vmatprep.subr.mxu0 0.0
    %2273 = vmatpush1.msra.mxu0 0.0
    %2274 = vmatprep.subr.mxu0 0.0
    %2275 = vmatpush1.msra.mxu0 0.0
    %2276 = vmatprep.subr.mxu0 0.0
    %2277 = vmatpush1.msra.mxu0 0.0
    %2278 = vmatprep.subr.mxu0 0.0
    %2279 = vmatpush1.msra.mxu0 0.0
    %2280 = vmatprep.subr.mxu0 0.0
    %2281 = vmatpush1.msra.mxu0 0.0
    %2282 = vmatprep.subr.mxu0 0.0
    %2283 = vmatpush1.msra.mxu0 0.0
    %2284 = vmatprep.subr.mxu0 0.0
    %2285 = vmatpush1.msra.mxu0 0.0
    %2286 = vmatprep.subr.mxu0 0.0
    %2287 = vmatpush1.msra.mxu0 0.0
    %2288 = vmatprep.subr.mxu0 0.0
    %2289 = vmatpush1.msra.mxu0 0.0
    %2290 = vmatprep.subr.mxu0 0.0
    %2291 = vmatpush1.msra.mxu0 0.0
    %2292 = vmatprep.subr.mxu0 0.0
    %2293 = vmatpush1.msra.mxu0 0.0
    %2294 = vmatprep.subr.mxu0 0.0
    %2295 = vmatpush1.msra.mxu0 0.0
    %2296 = vmatprep.subr.mxu0 0.0
    %2297 = vmatpush1.msra.mxu0 0.0
    %2298 = vmatprep.subr.mxu0 0.0
    %2299 = vmatpush1.msra.mxu0 0.0
    %2300 = vmatprep.subr.mxu0 0.0
    %2301 = vmatpush1.msra.mxu0 0.0
    %2302 = vmatprep.subr.mxu0 0.0
    %2303 = vmatpush1.msra.mxu0 0.0
    %2304 = vmatprep.subr.mxu0 0.0
    %2305 = vmatpush1.msra.mxu0 0.0
    %2306 = vmatprep.subr.mxu0 0.0
    %2307 = vmatpush1.msra.mxu0 0.0
    %2308 = vmatprep.subr.mxu0 0.0
    %2309 = vmatpush1.msra.mxu0 0.0
    %2310 = vmatprep.subr.mxu0 0.0
    %2311 = vmatpush1.msra.mxu0 0.0
    %2312 = vmatprep.subr.mxu0 0.0
    %2313 = vmatpush1.msra.mxu0 0.0
    %2314 = vmatprep.subr.mxu0 0.0
    %2315 = vmatpush1.msra.mxu0 0.0
    %2316 = vmatprep.subr.mxu0 0.0
    %2317 = vmatpush1.msra.mxu0 0.0
    %2318 = vmatprep.subr.mxu0 0.0
    %2319 = vmatpush1.msra.mxu0 0.0
    %2320 = vmatprep.subr.mxu0 0.0
    %2321 = vmatpush1.msra.mxu0 0.0
    %2322 = vmatprep.subr.mxu0 0.0
    %2323 = vmatpush1.msra.mxu0 0.0
    %2324 = vmatprep.subr.mxu0 0.0
    %2325 = vmatpush1.msra.mxu0 0.0
    %2326 = vmatprep.mubr.f32.mxu0 0.0
    %v2327 = vand.u32 %v2006, 4294901760
    %v2328 = vsub.f32 %v2006, %v2327
    %v2329 = vand.u32 %v2328, 4294901760
    %2330 = vmatmul.mubr.f32.gmra.mrb[0].mxu0 %v2329
    %v2331 = vpop.f32.mrb[0].mxu0
    %v2332 = vadd.f32 %v2255, %v2331
    %v2333 = vpop.f32.mrb[0].mxu0
    %2334 = vdwg.mxu0
    %2335 = vmatprep.subr.mxu0 0.0
    %v2336 = vand.u32 %v36, 4294901760
    %v2337 = vsub.f32 %v36, %v2336
    %v2338 = vand.u32 %v2337, 4294901760
    %2339 = vmatpush1.msra.mxu0 %v2338
    %2340 = vmatprep.subr.mxu0 0.0
    %v2341 = vand.u32 %v37, 4294901760
    %v2342 = vsub.f32 %v37, %v2341
    %v2343 = vand.u32 %v2342, 4294901760
    %2344 = vmatpush1.msra.mxu0 %v2343
    %2345 = vmatprep.subr.mxu0 0.0
    %v2346 = vand.u32 %v38, 4294901760
    %v2347 = vsub.f32 %v38, %v2346
    %v2348 = vand.u32 %v2347, 4294901760
    %2349 = vmatpush1.msra.mxu0 %v2348
    %2350 = vmatprep.subr.mxu0 0.0
    %v2351 = vand.u32 %v39, 4294901760
    %v2352 = vsub.f32 %v39, %v2351
    %v2353 = vand.u32 %v2352, 4294901760
    %2354 = vmatpush1.msra.mxu0 %v2353
    %2355 = vmatprep.subr.mxu0 0.0
    %2356 = vmatpush1.msra.mxu0 0.0
    %2357 = vmatprep.subr.mxu0 0.0
    %2358 = vmatpush1.msra.mxu0 0.0
    %2359 = vmatprep.subr.mxu0 0.0
    %2360 = vmatpush1.msra.mxu0 0.0
    %2361 = vmatprep.subr.mxu0 0.0
    %2362 = vmatpush1.msra.mxu0 0.0
    %2363 = vmatprep.subr.mxu0 0.0
    %2364 = vmatpush1.msra.mxu0 0.0
    %2365 = vmatprep.subr.mxu0 0.0
    %2366 = vmatpush1.msra.mxu0 0.0
    %2367 = vmatprep.subr.mxu0 0.0
    %2368 = vmatpush1.msra.mxu0 0.0
    %2369 = vmatprep.subr.mxu0 0.0
    %2370 = vmatpush1.msra.mxu0 0.0
    %2371 = vmatprep.subr.mxu0 0.0
    %2372 = vmatpush1.msra.mxu0 0.0
    %2373 = vmatprep.subr.mxu0 0.0
    %2374 = vmatpush1.msra.mxu0 0.0
    %2375 = vmatprep.subr.mxu0 0.0
    %2376 = vmatpush1.msra.mxu0 0.0
    %2377 = vmatprep.subr.mxu0 0.0
    %2378 = vmatpush1.msra.mxu0 0.0
    %2379 = vmatprep.subr.mxu0 0.0
    %2380 = vmatpush1.msra.mxu0 0.0
    %2381 = vmatprep.subr.mxu0 0.0
    %2382 = vmatpush1.msra.mxu0 0.0
    %2383 = vmatprep.subr.mxu0 0.0
    %2384 = vmatpush1.msra.mxu0 0.0
    %2385 = vmatprep.subr.mxu0 0.0
    %2386 = vmatpush1.msra.mxu0 0.0
    %2387 = vmatprep.subr.mxu0 0.0
    %2388 = vmatpush1.msra.mxu0 0.0
    %2389 = vmatprep.subr.mxu0 0.0
    %2390 = vmatpush1.msra.mxu0 0.0
    %2391 = vmatprep.subr.mxu0 0.0
    %2392 = vmatpush1.msra.mxu0 0.0
    %2393 = vmatprep.subr.mxu0 0.0
    %2394 = vmatpush1.msra.mxu0 0.0
    %2395 = vmatprep.subr.mxu0 0.0
    %2396 = vmatpush1.msra.mxu0 0.0
    %2397 = vmatprep.subr.mxu0 0.0
    %2398 = vmatpush1.msra.mxu0 0.0
    %2399 = vmatprep.subr.mxu0 0.0
    %2400 = vmatpush1.msra.mxu0 0.0
    %2401 = vmatprep.subr.mxu0 0.0
    %2402 = vmatpush1.msra.mxu0 0.0
    %2403 = vmatprep.subr.mxu0 0.0
    %2404 = vmatpush1.msra.mxu0 0.0
    %2405 = vmatprep.subr.mxu0 0.0
    %2406 = vmatpush1.msra.mxu0 0.0
    %2407 = vmatprep.subr.mxu0 0.0
    %2408 = vmatpush1.msra.mxu0 0.0
    %2409 = vmatprep.subr.mxu0 0.0
    %2410 = vmatpush1.msra.mxu0 0.0
    %2411 = vmatprep.mubr.f32.mxu0 0.0
    %v2412 = vand.u32 %v2006, 4294901760
    %2413 = vmatmul.mubr.f32.gmra.mrb[0].mxu0 %v2412
    %v2414 = vpop.f32.mrb[0].mxu0
    %v2415 = vadd.f32 %v2332, %v2414
    %v2416 = vpop.f32.mrb[0].mxu0
    %2417 = vdwg.mxu0
    %2418 = vmatprep.subr.mxu0 0.0
    %v2419 = vand.u32 %v36, 4294901760
    %2420 = vmatpush1.msra.mxu0 %v2419
    %2421 = vmatprep.subr.mxu0 0.0
    %v2422 = vand.u32 %v37, 4294901760
    %2423 = vmatpush1.msra.mxu0 %v2422
    %2424 = vmatprep.subr.mxu0 0.0
    %v2425 = vand.u32 %v38, 4294901760
    %2426 = vmatpush1.msra.mxu0 %v2425
    %2427 = vmatprep.subr.mxu0 0.0
    %v2428 = vand.u32 %v39, 4294901760
    %2429 = vmatpush1.msra.mxu0 %v2428
    %2430 = vmatprep.subr.mxu0 0.0
    %2431 = vmatpush1.msra.mxu0 0.0
    %2432 = vmatprep.subr.mxu0 0.0
    %2433 = vmatpush1.msra.mxu0 0.0
    %2434 = vmatprep.subr.mxu0 0.0
    %2435 = vmatpush1.msra.mxu0 0.0
    %2436 = vmatprep.subr.mxu0 0.0
    %2437 = vmatpush1.msra.mxu0 0.0
    %2438 = vmatprep.subr.mxu0 0.0
    %2439 = vmatpush1.msra.mxu0 0.0
    %2440 = vmatprep.subr.mxu0 0.0
    %2441 = vmatpush1.msra.mxu0 0.0
    %2442 = vmatprep.subr.mxu0 0.0
    %2443 = vmatpush1.msra.mxu0 0.0
    %2444 = vmatprep.subr.mxu0 0.0
    %2445 = vmatpush1.msra.mxu0 0.0
    %2446 = vmatprep.subr.mxu0 0.0
    %2447 = vmatpush1.msra.mxu0 0.0
    %2448 = vmatprep.subr.mxu0 0.0
    %2449 = vmatpush1.msra.mxu0 0.0
    %2450 = vmatprep.subr.mxu0 0.0
    %2451 = vmatpush1.msra.mxu0 0.0
    %2452 = vmatprep.subr.mxu0 0.0
    %2453 = vmatpush1.msra.mxu0 0.0
    %2454 = vmatprep.subr.mxu0 0.0
    %2455 = vmatpush1.msra.mxu0 0.0
    %2456 = vmatprep.subr.mxu0 0.0
    %2457 = vmatpush1.msra.mxu0 0.0
    %2458 = vmatprep.subr.mxu0 0.0
    %2459 = vmatpush1.msra.mxu0 0.0
    %2460 = vmatprep.subr.mxu0 0.0
    %2461 = vmatpush1.msra.mxu0 0.0
    %2462 = vmatprep.subr.mxu0 0.0
    %2463 = vmatpush1.msra.mxu0 0.0
    %2464 = vmatprep.subr.mxu0 0.0
    %2465 = vmatpush1.msra.mxu0 0.0
    %2466 = vmatprep.subr.mxu0 0.0
    %2467 = vmatpush1.msra.mxu0 0.0
    %2468 = vmatprep.subr.mxu0 0.0
    %2469 = vmatpush1.msra.mxu0 0.0
    %2470 = vmatprep.subr.mxu0 0.0
    %2471 = vmatpush1.msra.mxu0 0.0
    %2472 = vmatprep.subr.mxu0 0.0
    %2473 = vmatpush1.msra.mxu0 0.0
    %2474 = vmatprep.subr.mxu0 0.0
    %2475 = vmatpush1.msra.mxu0 0.0
    %2476 = vmatprep.subr.mxu0 0.0
    %2477 = vmatpush1.msra.mxu0 0.0
    %2478 = vmatprep.subr.mxu0 0.0
    %2479 = vmatpush1.msra.mxu0 0.0
    %2480 = vmatprep.subr.mxu0 0.0
    %2481 = vmatpush1.msra.mxu0 0.0
    %2482 = vmatprep.subr.mxu0 0.0
    %2483 = vmatpush1.msra.mxu0 0.0
    %2484 = vmatprep.subr.mxu0 0.0
    %2485 = vmatpush1.msra.mxu0 0.0
    %2486 = vmatprep.mubr.f32.mxu0 0.0
    %v2487 = vand.u32 %v2006, 4294901760
    %2488 = vmatmul.mubr.f32.gmra.mrb[0].mxu0 %v2487
    %v2489 = vpop.f32.mrb[0].mxu0
    %v2490 = vadd.f32 %v2415, %v2489
    %v2491 = vpop.f32.mrb[0].mxu0
    %2492 = vdwg.mxu0
    %v2494 = vsel %vm52, %v17, 0
    %2496 = vmatprep.subr.mxu0 0.0
    %v2497 = vand.u32 %v40, 4294901760
    %2498 = vmatpush1.msra.mxu0 %v2497
    %2499 = vmatprep.subr.mxu0 0.0
    %v2500 = vand.u32 %v41, 4294901760
    %2501 = vmatpush1.msra.mxu0 %v2500
    %2502 = vmatprep.subr.mxu0 0.0
    %v2503 = vand.u32 %v42, 4294901760
    %2504 = vmatpush1.msra.mxu0 %v2503
    %2505 = vmatprep.subr.mxu0 0.0
    %v2506 = vand.u32 %v43, 4294901760
    %2507 = vmatpush1.msra.mxu0 %v2506
    %2508 = vmatprep.subr.mxu0 0.0
    %2509 = vmatpush1.msra.mxu0 0.0
    %2510 = vmatprep.subr.mxu0 0.0
    %2511 = vmatpush1.msra.mxu0 0.0
    %2512 = vmatprep.subr.mxu0 0.0
    %2513 = vmatpush1.msra.mxu0 0.0
    %2514 = vmatprep.subr.mxu0 0.0
    %2515 = vmatpush1.msra.mxu0 0.0
    %2516 = vmatprep.subr.mxu0 0.0
    %2517 = vmatpush1.msra.mxu0 0.0
    %2518 = vmatprep.subr.mxu0 0.0
    %2519 = vmatpush1.msra.mxu0 0.0
    %2520 = vmatprep.subr.mxu0 0.0
    %2521 = vmatpush1.msra.mxu0 0.0
    %2522 = vmatprep.subr.mxu0 0.0
    %2523 = vmatpush1.msra.mxu0 0.0
    %2524 = vmatprep.subr.mxu0 0.0
    %2525 = vmatpush1.msra.mxu0 0.0
    %2526 = vmatprep.subr.mxu0 0.0
    %2527 = vmatpush1.msra.mxu0 0.0
    %2528 = vmatprep.subr.mxu0 0.0
    %2529 = vmatpush1.msra.mxu0 0.0
    %2530 = vmatprep.subr.mxu0 0.0
    %2531 = vmatpush1.msra.mxu0 0.0
    %2532 = vmatprep.subr.mxu0 0.0
    %2533 = vmatpush1.msra.mxu0 0.0
    %2534 = vmatprep.subr.mxu0 0.0
    %2535 = vmatpush1.msra.mxu0 0.0
    %2536 = vmatprep.subr.mxu0 0.0
    %2537 = vmatpush1.msra.mxu0 0.0
    %2538 = vmatprep.subr.mxu0 0.0
    %2539 = vmatpush1.msra.mxu0 0.0
    %2540 = vmatprep.subr.mxu0 0.0
    %2541 = vmatpush1.msra.mxu0 0.0
    %2542 = vmatprep.subr.mxu0 0.0
    %2543 = vmatpush1.msra.mxu0 0.0
    %2544 = vmatprep.subr.mxu0 0.0
    %2545 = vmatpush1.msra.mxu0 0.0
    %2546 = vmatprep.subr.mxu0 0.0
    %2547 = vmatpush1.msra.mxu0 0.0
    %2548 = vmatprep.subr.mxu0 0.0
    %2549 = vmatpush1.msra.mxu0 0.0
    %2550 = vmatprep.subr.mxu0 0.0
    %2551 = vmatpush1.msra.mxu0 0.0
    %2552 = vmatprep.subr.mxu0 0.0
    %2553 = vmatpush1.msra.mxu0 0.0
    %2554 = vmatprep.subr.mxu0 0.0
    %2555 = vmatpush1.msra.mxu0 0.0
    %2556 = vmatprep.subr.mxu0 0.0
    %2557 = vmatpush1.msra.mxu0 0.0
    %2558 = vmatprep.subr.mxu0 0.0
    %2559 = vmatpush1.msra.mxu0 0.0
    %2560 = vmatprep.subr.mxu0 0.0
    %2561 = vmatpush1.msra.mxu0 0.0
    %2562 = vmatprep.subr.mxu0 0.0
    %2563 = vmatpush1.msra.mxu0 0.0
    %2564 = vmatprep.mubr.f32.mxu0 0.0
    %v2565 = vand.u32 %v2494, 4294901760
    %v2566 = vsub.f32 %v2494, %v2565
    %v2567 = vand.u32 %v2566, 4294901760
    %v2568 = vsub.f32 %v2566, %v2567
    %v2569 = vand.u32 %v2568, 4294901760
    %2570 = vmatmul.mubr.f32.gmra.mrb[0].mxu0 %v2569
    %v2571 = vpop.f32.mrb[0].mxu0
    %v2572 = vadd.f32 0.0, %v2571
    %v2573 = vpop.f32.mrb[0].mxu0
    %2574 = vdwg.mxu0
    %2575 = vmatprep.subr.mxu0 0.0
    %v2576 = vand.u32 %v40, 4294901760
    %v2577 = vsub.f32 %v40, %v2576
    %v2578 = vand.u32 %v2577, 4294901760
    %v2579 = vsub.f32 %v2577, %v2578
    %v2580 = vand.u32 %v2579, 4294901760
    %2581 = vmatpush1.msra.mxu0 %v2580
    %2582 = vmatprep.subr.mxu0 0.0
    %v2583 = vand.u32 %v41, 4294901760
    %v2584 = vsub.f32 %v41, %v2583
    %v2585 = vand.u32 %v2584, 4294901760
    %v2586 = vsub.f32 %v2584, %v2585
    %v2587 = vand.u32 %v2586, 4294901760
    %2588 = vmatpush1.msra.mxu0 %v2587
    %2589 = vmatprep.subr.mxu0 0.0
    %v2590 = vand.u32 %v42, 4294901760
    %v2591 = vsub.f32 %v42, %v2590
    %v2592 = vand.u32 %v2591, 4294901760
    %v2593 = vsub.f32 %v2591, %v2592
    %v2594 = vand.u32 %v2593, 4294901760
    %2595 = vmatpush1.msra.mxu0 %v2594
    %2596 = vmatprep.subr.mxu0 0.0
    %v2597 = vand.u32 %v43, 4294901760
    %v2598 = vsub.f32 %v43, %v2597
    %v2599 = vand.u32 %v2598, 4294901760
    %v2600 = vsub.f32 %v2598, %v2599
    %v2601 = vand.u32 %v2600, 4294901760
    %2602 = vmatpush1.msra.mxu0 %v2601
    %2603 = vmatprep.subr.mxu0 0.0
    %2604 = vmatpush1.msra.mxu0 0.0
    %2605 = vmatprep.subr.mxu0 0.0
    %2606 = vmatpush1.msra.mxu0 0.0
    %2607 = vmatprep.subr.mxu0 0.0
    %2608 = vmatpush1.msra.mxu0 0.0
    %2609 = vmatprep.subr.mxu0 0.0
    %2610 = vmatpush1.msra.mxu0 0.0
    %2611 = vmatprep.subr.mxu0 0.0
    %2612 = vmatpush1.msra.mxu0 0.0
    %2613 = vmatprep.subr.mxu0 0.0
    %2614 = vmatpush1.msra.mxu0 0.0
    %2615 = vmatprep.subr.mxu0 0.0
    %2616 = vmatpush1.msra.mxu0 0.0
    %2617 = vmatprep.subr.mxu0 0.0
    %2618 = vmatpush1.msra.mxu0 0.0
    %2619 = vmatprep.subr.mxu0 0.0
    %2620 = vmatpush1.msra.mxu0 0.0
    %2621 = vmatprep.subr.mxu0 0.0
    %2622 = vmatpush1.msra.mxu0 0.0
    %2623 = vmatprep.subr.mxu0 0.0
    %2624 = vmatpush1.msra.mxu0 0.0
    %2625 = vmatprep.subr.mxu0 0.0
    %2626 = vmatpush1.msra.mxu0 0.0
    %2627 = vmatprep.subr.mxu0 0.0
    %2628 = vmatpush1.msra.mxu0 0.0
    %2629 = vmatprep.subr.mxu0 0.0
    %2630 = vmatpush1.msra.mxu0 0.0
    %2631 = vmatprep.subr.mxu0 0.0
    %2632 = vmatpush1.msra.mxu0 0.0
    %2633 = vmatprep.subr.mxu0 0.0
    %2634 = vmatpush1.msra.mxu0 0.0
    %2635 = vmatprep.subr.mxu0 0.0
    %2636 = vmatpush1.msra.mxu0 0.0
    %2637 = vmatprep.subr.mxu0 0.0
    %2638 = vmatpush1.msra.mxu0 0.0
    %2639 = vmatprep.subr.mxu0 0.0
    %2640 = vmatpush1.msra.mxu0 0.0
    %2641 = vmatprep.subr.mxu0 0.0
    %2642 = vmatpush1.msra.mxu0 0.0
    %2643 = vmatprep.subr.mxu0 0.0
    %2644 = vmatpush1.msra.mxu0 0.0
    %2645 = vmatprep.subr.mxu0 0.0
    %2646 = vmatpush1.msra.mxu0 0.0
    %2647 = vmatprep.subr.mxu0 0.0
    %2648 = vmatpush1.msra.mxu0 0.0
    %2649 = vmatprep.subr.mxu0 0.0
    %2650 = vmatpush1.msra.mxu0 0.0
    %2651 = vmatprep.subr.mxu0 0.0
    %2652 = vmatpush1.msra.mxu0 0.0
    %2653 = vmatprep.subr.mxu0 0.0
    %2654 = vmatpush1.msra.mxu0 0.0
    %2655 = vmatprep.subr.mxu0 0.0
    %2656 = vmatpush1.msra.mxu0 0.0
    %2657 = vmatprep.subr.mxu0 0.0
    %2658 = vmatpush1.msra.mxu0 0.0
    %2659 = vmatprep.mubr.f32.mxu0 0.0
    %v2660 = vand.u32 %v2494, 4294901760
    %2661 = vmatmul.mubr.f32.gmra.mrb[0].mxu0 %v2660
    %v2662 = vpop.f32.mrb[0].mxu0
    %v2663 = vadd.f32 %v2572, %v2662
    %v2664 = vpop.f32.mrb[0].mxu0
    %2665 = vdwg.mxu0
    %2666 = vmatprep.subr.mxu0 0.0
    %v2667 = vand.u32 %v40, 4294901760
    %v2668 = vsub.f32 %v40, %v2667
    %2669 = vmatpush1.msra.mxu0 %v2668
    %2670 = vmatprep.subr.mxu0 0.0
    %v2671 = vand.u32 %v41, 4294901760
    %v2672 = vsub.f32 %v41, %v2671
    %2673 = vmatpush1.msra.mxu0 %v2672
    %2674 = vmatprep.subr.mxu0 0.0
    %v2675 = vand.u32 %v42, 4294901760
    %v2676 = vsub.f32 %v42, %v2675
    %2677 = vmatpush1.msra.mxu0 %v2676
    %2678 = vmatprep.subr.mxu0 0.0
    %v2679 = vand.u32 %v43, 4294901760
    %v2680 = vsub.f32 %v43, %v2679
    %2681 = vmatpush1.msra.mxu0 %v2680
    %2682 = vmatprep.subr.mxu0 0.0
    %2683 = vmatpush1.msra.mxu0 0.0
    %2684 = vmatprep.subr.mxu0 0.0
    %2685 = vmatpush1.msra.mxu0 0.0
    %2686 = vmatprep.subr.mxu0 0.0
    %2687 = vmatpush1.msra.mxu0 0.0
    %2688 = vmatprep.subr.mxu0 0.0
    %2689 = vmatpush1.msra.mxu0 0.0
    %2690 = vmatprep.subr.mxu0 0.0
    %2691 = vmatpush1.msra.mxu0 0.0
    %2692 = vmatprep.subr.mxu0 0.0
    %2693 = vmatpush1.msra.mxu0 0.0
    %2694 = vmatprep.subr.mxu0 0.0
    %2695 = vmatpush1.msra.mxu0 0.0
    %2696 = vmatprep.subr.mxu0 0.0
    %2697 = vmatpush1.msra.mxu0 0.0
    %2698 = vmatprep.subr.mxu0 0.0
    %2699 = vmatpush1.msra.mxu0 0.0
    %2700 = vmatprep.subr.mxu0 0.0
    %2701 = vmatpush1.msra.mxu0 0.0
    %2702 = vmatprep.subr.mxu0 0.0
    %2703 = vmatpush1.msra.mxu0 0.0
    %2704 = vmatprep.subr.mxu0 0.0
    %2705 = vmatpush1.msra.mxu0 0.0
    %2706 = vmatprep.subr.mxu0 0.0
    %2707 = vmatpush1.msra.mxu0 0.0
    %2708 = vmatprep.subr.mxu0 0.0
    %2709 = vmatpush1.msra.mxu0 0.0
    %2710 = vmatprep.subr.mxu0 0.0
    %2711 = vmatpush1.msra.mxu0 0.0
    %2712 = vmatprep.subr.mxu0 0.0
    %2713 = vmatpush1.msra.mxu0 0.0
    %2714 = vmatprep.subr.mxu0 0.0
    %2715 = vmatpush1.msra.mxu0 0.0
    %2716 = vmatprep.subr.mxu0 0.0
    %2717 = vmatpush1.msra.mxu0 0.0
    %2718 = vmatprep.subr.mxu0 0.0
    %2719 = vmatpush1.msra.mxu0 0.0
    %2720 = vmatprep.subr.mxu0 0.0
    %2721 = vmatpush1.msra.mxu0 0.0
    %2722 = vmatprep.subr.mxu0 0.0
    %2723 = vmatpush1.msra.mxu0 0.0
    %2724 = vmatprep.subr.mxu0 0.0
    %2725 = vmatpush1.msra.mxu0 0.0
    %2726 = vmatprep.subr.mxu0 0.0
    %2727 = vmatpush1.msra.mxu0 0.0
    %2728 = vmatprep.subr.mxu0 0.0
    %2729 = vmatpush1.msra.mxu0 0.0
    %2730 = vmatprep.subr.mxu0 0.0
    %2731 = vmatpush1.msra.mxu0 0.0
    %2732 = vmatprep.subr.mxu0 0.0
    %2733 = vmatpush1.msra.mxu0 0.0
    %2734 = vmatprep.subr.mxu0 0.0
    %2735 = vmatpush1.msra.mxu0 0.0
    %2736 = vmatprep.subr.mxu0 0.0
    %2737 = vmatpush1.msra.mxu0 0.0
    %2738 = vmatprep.mubr.f32.mxu0 0.0
    %v2739 = vand.u32 %v2494, 4294901760
    %v2740 = vsub.f32 %v2494, %v2739
    %2741 = vmatmul.mubr.f32.gmra.mrb[0].mxu0 %v2740
    %v2742 = vpop.f32.mrb[0].mxu0
    %v2743 = vadd.f32 %v2663, %v2742
    %v2744 = vpop.f32.mrb[0].mxu0
    %2745 = vdwg.mxu0
    %2746 = vmatprep.subr.mxu0 0.0
    %v2747 = vand.u32 %v40, 4294901760
    %2748 = vmatpush1.msra.mxu0 %v2747
    %2749 = vmatprep.subr.mxu0 0.0
    %v2750 = vand.u32 %v41, 4294901760
    %2751 = vmatpush1.msra.mxu0 %v2750
    %2752 = vmatprep.subr.mxu0 0.0
    %v2753 = vand.u32 %v42, 4294901760
    %2754 = vmatpush1.msra.mxu0 %v2753
    %2755 = vmatprep.subr.mxu0 0.0
    %v2756 = vand.u32 %v43, 4294901760
    %2757 = vmatpush1.msra.mxu0 %v2756
    %2758 = vmatprep.subr.mxu0 0.0
    %2759 = vmatpush1.msra.mxu0 0.0
    %2760 = vmatprep.subr.mxu0 0.0
    %2761 = vmatpush1.msra.mxu0 0.0
    %2762 = vmatprep.subr.mxu0 0.0
    %2763 = vmatpush1.msra.mxu0 0.0
    %2764 = vmatprep.subr.mxu0 0.0
    %2765 = vmatpush1.msra.mxu0 0.0
    %2766 = vmatprep.subr.mxu0 0.0
    %2767 = vmatpush1.msra.mxu0 0.0
    %2768 = vmatprep.subr.mxu0 0.0
    %2769 = vmatpush1.msra.mxu0 0.0
    %2770 = vmatprep.subr.mxu0 0.0
    %2771 = vmatpush1.msra.mxu0 0.0
    %2772 = vmatprep.subr.mxu0 0.0
    %2773 = vmatpush1.msra.mxu0 0.0
    %2774 = vmatprep.subr.mxu0 0.0
    %2775 = vmatpush1.msra.mxu0 0.0
    %2776 = vmatprep.subr.mxu0 0.0
    %2777 = vmatpush1.msra.mxu0 0.0
    %2778 = vmatprep.subr.mxu0 0.0
    %2779 = vmatpush1.msra.mxu0 0.0
    %2780 = vmatprep.subr.mxu0 0.0
    %2781 = vmatpush1.msra.mxu0 0.0
    %2782 = vmatprep.subr.mxu0 0.0
    %2783 = vmatpush1.msra.mxu0 0.0
    %2784 = vmatprep.subr.mxu0 0.0
    %2785 = vmatpush1.msra.mxu0 0.0
    %2786 = vmatprep.subr.mxu0 0.0
    %2787 = vmatpush1.msra.mxu0 0.0
    %2788 = vmatprep.subr.mxu0 0.0
    %2789 = vmatpush1.msra.mxu0 0.0
    %2790 = vmatprep.subr.mxu0 0.0
    %2791 = vmatpush1.msra.mxu0 0.0
    %2792 = vmatprep.subr.mxu0 0.0
    %2793 = vmatpush1.msra.mxu0 0.0
    %2794 = vmatprep.subr.mxu0 0.0
    %2795 = vmatpush1.msra.mxu0 0.0
    %2796 = vmatprep.subr.mxu0 0.0
    %2797 = vmatpush1.msra.mxu0 0.0
    %2798 = vmatprep.subr.mxu0 0.0
    %2799 = vmatpush1.msra.mxu0 0.0
    %2800 = vmatprep.subr.mxu0 0.0
    %2801 = vmatpush1.msra.mxu0 0.0
    %2802 = vmatprep.subr.mxu0 0.0
    %2803 = vmatpush1.msra.mxu0 0.0
    %2804 = vmatprep.subr.mxu0 0.0
    %2805 = vmatpush1.msra.mxu0 0.0
    %2806 = vmatprep.subr.mxu0 0.0
    %2807 = vmatpush1.msra.mxu0 0.0
    %2808 = vmatprep.subr.mxu0 0.0
    %2809 = vmatpush1.msra.mxu0 0.0
    %2810 = vmatprep.subr.mxu0 0.0
    %2811 = vmatpush1.msra.mxu0 0.0
    %2812 = vmatprep.subr.mxu0 0.0
    %2813 = vmatpush1.msra.mxu0 0.0
    %2814 = vmatprep.mubr.f32.mxu0 0.0
    %v2815 = vand.u32 %v2494, 4294901760
    %v2816 = vsub.f32 %v2494, %v2815
    %v2817 = vand.u32 %v2816, 4294901760
    %2818 = vmatmul.mubr.f32.gmra.mrb[0].mxu0 %v2817
    %v2819 = vpop.f32.mrb[0].mxu0
    %v2820 = vadd.f32 %v2743, %v2819
    %v2821 = vpop.f32.mrb[0].mxu0
    %2822 = vdwg.mxu0
    %2823 = vmatprep.subr.mxu0 0.0
    %v2824 = vand.u32 %v40, 4294901760
    %v2825 = vsub.f32 %v40, %v2824
    %v2826 = vand.u32 %v2825, 4294901760
    %2827 = vmatpush1.msra.mxu0 %v2826
    %2828 = vmatprep.subr.mxu0 0.0
    %v2829 = vand.u32 %v41, 4294901760
    %v2830 = vsub.f32 %v41, %v2829
    %v2831 = vand.u32 %v2830, 4294901760
    %2832 = vmatpush1.msra.mxu0 %v2831
    %2833 = vmatprep.subr.mxu0 0.0
    %v2834 = vand.u32 %v42, 4294901760
    %v2835 = vsub.f32 %v42, %v2834
    %v2836 = vand.u32 %v2835, 4294901760
    %2837 = vmatpush1.msra.mxu0 %v2836
    %2838 = vmatprep.subr.mxu0 0.0
    %v2839 = vand.u32 %v43, 4294901760
    %v2840 = vsub.f32 %v43, %v2839
    %v2841 = vand.u32 %v2840, 4294901760
    %2842 = vmatpush1.msra.mxu0 %v2841
    %2843 = vmatprep.subr.mxu0 0.0
    %2844 = vmatpush1.msra.mxu0 0.0
    %2845 = vmatprep.subr.mxu0 0.0
    %2846 = vmatpush1.msra.mxu0 0.0
    %2847 = vmatprep.subr.mxu0 0.0
    %2848 = vmatpush1.msra.mxu0 0.0
    %2849 = vmatprep.subr.mxu0 0.0
    %2850 = vmatpush1.msra.mxu0 0.0
    %2851 = vmatprep.subr.mxu0 0.0
    %2852 = vmatpush1.msra.mxu0 0.0
    %2853 = vmatprep.subr.mxu0 0.0
    %2854 = vmatpush1.msra.mxu0 0.0
    %2855 = vmatprep.subr.mxu0 0.0
    %2856 = vmatpush1.msra.mxu0 0.0
    %2857 = vmatprep.subr.mxu0 0.0
    %2858 = vmatpush1.msra.mxu0 0.0
    %2859 = vmatprep.subr.mxu0 0.0
    %2860 = vmatpush1.msra.mxu0 0.0
    %2861 = vmatprep.subr.mxu0 0.0
    %2862 = vmatpush1.msra.mxu0 0.0
    %2863 = vmatprep.subr.mxu0 0.0
    %2864 = vmatpush1.msra.mxu0 0.0
    %2865 = vmatprep.subr.mxu0 0.0
    %2866 = vmatpush1.msra.mxu0 0.0
    %2867 = vmatprep.subr.mxu0 0.0
    %2868 = vmatpush1.msra.mxu0 0.0
    %2869 = vmatprep.subr.mxu0 0.0
    %2870 = vmatpush1.msra.mxu0 0.0
    %2871 = vmatprep.subr.mxu0 0.0
    %2872 = vmatpush1.msra.mxu0 0.0
    %2873 = vmatprep.subr.mxu0 0.0
    %2874 = vmatpush1.msra.mxu0 0.0
    %2875 = vmatprep.subr.mxu0 0.0
    %2876 = vmatpush1.msra.mxu0 0.0
    %2877 = vmatprep.subr.mxu0 0.0
    %2878 = vmatpush1.msra.mxu0 0.0
    %2879 = vmatprep.subr.mxu0 0.0
    %2880 = vmatpush1.msra.mxu0 0.0
    %2881 = vmatprep.subr.mxu0 0.0
    %2882 = vmatpush1.msra.mxu0 0.0
    %2883 = vmatprep.subr.mxu0 0.0
    %2884 = vmatpush1.msra.mxu0 0.0
    %2885 = vmatprep.subr.mxu0 0.0
    %2886 = vmatpush1.msra.mxu0 0.0
    %2887 = vmatprep.subr.mxu0 0.0
    %2888 = vmatpush1.msra.mxu0 0.0
    %2889 = vmatprep.subr.mxu0 0.0
    %2890 = vmatpush1.msra.mxu0 0.0
    %2891 = vmatprep.subr.mxu0 0.0
    %2892 = vmatpush1.msra.mxu0 0.0
    %2893 = vmatprep.subr.mxu0 0.0
    %2894 = vmatpush1.msra.mxu0 0.0
    %2895 = vmatprep.subr.mxu0 0.0
    %2896 = vmatpush1.msra.mxu0 0.0
    %2897 = vmatprep.subr.mxu0 0.0
    %2898 = vmatpush1.msra.mxu0 0.0
    %2899 = vmatprep.mubr.f32.mxu0 0.0
    %v2900 = vand.u32 %v2494, 4294901760
    %2901 = vmatmul.mubr.f32.gmra.mrb[0].mxu0 %v2900
    %v2902 = vpop.f32.mrb[0].mxu0
    %v2903 = vadd.f32 %v2820, %v2902
    %v2904 = vpop.f32.mrb[0].mxu0
    %2905 = vdwg.mxu0
    %2906 = vmatprep.subr.mxu0 0.0
    %v2907 = vand.u32 %v40, 4294901760
    %2908 = vmatpush1.msra.mxu0 %v2907
    %2909 = vmatprep.subr.mxu0 0.0
    %v2910 = vand.u32 %v41, 4294901760
    %2911 = vmatpush1.msra.mxu0 %v2910
    %2912 = vmatprep.subr.mxu0 0.0
    %v2913 = vand.u32 %v42, 4294901760
    %2914 = vmatpush1.msra.mxu0 %v2913
    %2915 = vmatprep.subr.mxu0 0.0
    %v2916 = vand.u32 %v43, 4294901760
    %2917 = vmatpush1.msra.mxu0 %v2916
    %2918 = vmatprep.subr.mxu0 0.0
    %2919 = vmatpush1.msra.mxu0 0.0
    %2920 = vmatprep.subr.mxu0 0.0
    %2921 = vmatpush1.msra.mxu0 0.0
    %2922 = vmatprep.subr.mxu0 0.0
    %2923 = vmatpush1.msra.mxu0 0.0
    %2924 = vmatprep.subr.mxu0 0.0
    %2925 = vmatpush1.msra.mxu0 0.0
    %2926 = vmatprep.subr.mxu0 0.0
    %2927 = vmatpush1.msra.mxu0 0.0
    %2928 = vmatprep.subr.mxu0 0.0
    %2929 = vmatpush1.msra.mxu0 0.0
    %2930 = vmatprep.subr.mxu0 0.0
    %2931 = vmatpush1.msra.mxu0 0.0
    %2932 = vmatprep.subr.mxu0 0.0
    %2933 = vmatpush1.msra.mxu0 0.0
    %2934 = vmatprep.subr.mxu0 0.0
    %2935 = vmatpush1.msra.mxu0 0.0
    %2936 = vmatprep.subr.mxu0 0.0
    %2937 = vmatpush1.msra.mxu0 0.0
    %2938 = vmatprep.subr.mxu0 0.0
    %2939 = vmatpush1.msra.mxu0 0.0
    %2940 = vmatprep.subr.mxu0 0.0
    %2941 = vmatpush1.msra.mxu0 0.0
    %2942 = vmatprep.subr.mxu0 0.0
    %2943 = vmatpush1.msra.mxu0 0.0
    %2944 = vmatprep.subr.mxu0 0.0
    %2945 = vmatpush1.msra.mxu0 0.0
    %2946 = vmatprep.subr.mxu0 0.0
    %2947 = vmatpush1.msra.mxu0 0.0
    %2948 = vmatprep.subr.mxu0 0.0
    %2949 = vmatpush1.msra.mxu0 0.0
    %2950 = vmatprep.subr.mxu0 0.0
    %2951 = vmatpush1.msra.mxu0 0.0
    %2952 = vmatprep.subr.mxu0 0.0
    %2953 = vmatpush1.msra.mxu0 0.0
    %2954 = vmatprep.subr.mxu0 0.0
    %2955 = vmatpush1.msra.mxu0 0.0
    %2956 = vmatprep.subr.mxu0 0.0
    %2957 = vmatpush1.msra.mxu0 0.0
    %2958 = vmatprep.subr.mxu0 0.0
    %2959 = vmatpush1.msra.mxu0 0.0
    %2960 = vmatprep.subr.mxu0 0.0
    %2961 = vmatpush1.msra.mxu0 0.0
    %2962 = vmatprep.subr.mxu0 0.0
    %2963 = vmatpush1.msra.mxu0 0.0
    %2964 = vmatprep.subr.mxu0 0.0
    %2965 = vmatpush1.msra.mxu0 0.0
    %2966 = vmatprep.subr.mxu0 0.0
    %2967 = vmatpush1.msra.mxu0 0.0
    %2968 = vmatprep.subr.mxu0 0.0
    %2969 = vmatpush1.msra.mxu0 0.0
    %2970 = vmatprep.subr.mxu0 0.0
    %2971 = vmatpush1.msra.mxu0 0.0
    %2972 = vmatprep.subr.mxu0 0.0
    %2973 = vmatpush1.msra.mxu0 0.0
    %2974 = vmatprep.mubr.f32.mxu0 0.0
    %v2975 = vand.u32 %v2494, 4294901760
    %2976 = vmatmul.mubr.f32.gmra.mrb[0].mxu0 %v2975
    %v2977 = vpop.f32.mrb[0].mxu0
    %v2978 = vadd.f32 %v2903, %v2977
    %v2979 = vpop.f32.mrb[0].mxu0
    %2980 = vdwg.mxu0
    %v2982 = vsel %vm52, %v18, 0
    %2984 = vmatprep.subr.mxu0 0.0
    %v2985 = vand.u32 %v44, 4294901760
    %2986 = vmatpush1.msra.mxu0 %v2985
    %2987 = vmatprep.subr.mxu0 0.0
    %v2988 = vand.u32 %v45, 4294901760
    %2989 = vmatpush1.msra.mxu0 %v2988
    %2990 = vmatprep.subr.mxu0 0.0
    %v2991 = vand.u32 %v46, 4294901760
    %2992 = vmatpush1.msra.mxu0 %v2991
    %2993 = vmatprep.subr.mxu0 0.0
    %v2994 = vand.u32 %v47, 4294901760
    %2995 = vmatpush1.msra.mxu0 %v2994
    %2996 = vmatprep.subr.mxu0 0.0
    %2997 = vmatpush1.msra.mxu0 0.0
    %2998 = vmatprep.subr.mxu0 0.0
    %2999 = vmatpush1.msra.mxu0 0.0
    %3000 = vmatprep.subr.mxu0 0.0
    %3001 = vmatpush1.msra.mxu0 0.0
    %3002 = vmatprep.subr.mxu0 0.0
    %3003 = vmatpush1.msra.mxu0 0.0
    %3004 = vmatprep.subr.mxu0 0.0
    %3005 = vmatpush1.msra.mxu0 0.0
    %3006 = vmatprep.subr.mxu0 0.0
    %3007 = vmatpush1.msra.mxu0 0.0
    %3008 = vmatprep.subr.mxu0 0.0
    %3009 = vmatpush1.msra.mxu0 0.0
    %3010 = vmatprep.subr.mxu0 0.0
    %3011 = vmatpush1.msra.mxu0 0.0
    %3012 = vmatprep.subr.mxu0 0.0
    %3013 = vmatpush1.msra.mxu0 0.0
    %3014 = vmatprep.subr.mxu0 0.0
    %3015 = vmatpush1.msra.mxu0 0.0
    %3016 = vmatprep.subr.mxu0 0.0
    %3017 = vmatpush1.msra.mxu0 0.0
    %3018 = vmatprep.subr.mxu0 0.0
    %3019 = vmatpush1.msra.mxu0 0.0
    %3020 = vmatprep.subr.mxu0 0.0
    %3021 = vmatpush1.msra.mxu0 0.0
    %3022 = vmatprep.subr.mxu0 0.0
    %3023 = vmatpush1.msra.mxu0 0.0
    %3024 = vmatprep.subr.mxu0 0.0
    %3025 = vmatpush1.msra.mxu0 0.0
    %3026 = vmatprep.subr.mxu0 0.0
    %3027 = vmatpush1.msra.mxu0 0.0
    %3028 = vmatprep.subr.mxu0 0.0
    %3029 = vmatpush1.msra.mxu0 0.0
    %3030 = vmatprep.subr.mxu0 0.0
    %3031 = vmatpush1.msra.mxu0 0.0
    %3032 = vmatprep.subr.mxu0 0.0
    %3033 = vmatpush1.msra.mxu0 0.0
    %3034 = vmatprep.subr.mxu0 0.0
    %3035 = vmatpush1.msra.mxu0 0.0
    %3036 = vmatprep.subr.mxu0 0.0
    %3037 = vmatpush1.msra.mxu0 0.0
    %3038 = vmatprep.subr.mxu0 0.0
    %3039 = vmatpush1.msra.mxu0 0.0
    %3040 = vmatprep.subr.mxu0 0.0
    %3041 = vmatpush1.msra.mxu0 0.0
    %3042 = vmatprep.subr.mxu0 0.0
    %3043 = vmatpush1.msra.mxu0 0.0
    %3044 = vmatprep.subr.mxu0 0.0
    %3045 = vmatpush1.msra.mxu0 0.0
    %3046 = vmatprep.subr.mxu0 0.0
    %3047 = vmatpush1.msra.mxu0 0.0
    %3048 = vmatprep.subr.mxu0 0.0
    %3049 = vmatpush1.msra.mxu0 0.0
    %3050 = vmatprep.subr.mxu0 0.0
    %3051 = vmatpush1.msra.mxu0 0.0
    %3052 = vmatprep.mubr.f32.mxu0 0.0
    %v3053 = vand.u32 %v2982, 4294901760
    %v3054 = vsub.f32 %v2982, %v3053
    %v3055 = vand.u32 %v3054, 4294901760
    %v3056 = vsub.f32 %v3054, %v3055
    %v3057 = vand.u32 %v3056, 4294901760
    %3058 = vmatmul.mubr.f32.gmra.mrb[0].mxu0 %v3057
    %v3059 = vpop.f32.mrb[0].mxu0
    %v3060 = vadd.f32 0.0, %v3059
    %v3061 = vpop.f32.mrb[0].mxu0
    %3062 = vdwg.mxu0
    %3063 = vmatprep.subr.mxu0 0.0
    %v3064 = vand.u32 %v44, 4294901760
    %v3065 = vsub.f32 %v44, %v3064
    %v3066 = vand.u32 %v3065, 4294901760
    %v3067 = vsub.f32 %v3065, %v3066
    %v3068 = vand.u32 %v3067, 4294901760
    %3069 = vmatpush1.msra.mxu0 %v3068
    %3070 = vmatprep.subr.mxu0 0.0
    %v3071 = vand.u32 %v45, 4294901760
    %v3072 = vsub.f32 %v45, %v3071
    %v3073 = vand.u32 %v3072, 4294901760
    %v3074 = vsub.f32 %v3072, %v3073
    %v3075 = vand.u32 %v3074, 4294901760
    %3076 = vmatpush1.msra.mxu0 %v3075
    %3077 = vmatprep.subr.mxu0 0.0
    %v3078 = vand.u32 %v46, 4294901760
    %v3079 = vsub.f32 %v46, %v3078
    %v3080 = vand.u32 %v3079, 4294901760
    %v3081 = vsub.f32 %v3079, %v3080
    %v3082 = vand.u32 %v3081, 4294901760
    %3083 = vmatpush1.msra.mxu0 %v3082
    %3084 = vmatprep.subr.mxu0 0.0
    %v3085 = vand.u32 %v47, 4294901760
    %v3086 = vsub.f32 %v47, %v3085
    %v3087 = vand.u32 %v3086, 4294901760
    %v3088 = vsub.f32 %v3086, %v3087
    %v3089 = vand.u32 %v3088, 4294901760
    %3090 = vmatpush1.msra.mxu0 %v3089
    %3091 = vmatprep.subr.mxu0 0.0
    %3092 = vmatpush1.msra.mxu0 0.0
    %3093 = vmatprep.subr.mxu0 0.0
    %3094 = vmatpush1.msra.mxu0 0.0
    %3095 = vmatprep.subr.mxu0 0.0
    %3096 = vmatpush1.msra.mxu0 0.0
    %3097 = vmatprep.subr.mxu0 0.0
    %3098 = vmatpush1.msra.mxu0 0.0
    %3099 = vmatprep.subr.mxu0 0.0
    %3100 = vmatpush1.msra.mxu0 0.0
    %3101 = vmatprep.subr.mxu0 0.0
    %3102 = vmatpush1.msra.mxu0 0.0
    %3103 = vmatprep.subr.mxu0 0.0
    %3104 = vmatpush1.msra.mxu0 0.0
    %3105 = vmatprep.subr.mxu0 0.0
    %3106 = vmatpush1.msra.mxu0 0.0
    %3107 = vmatprep.subr.mxu0 0.0
    %3108 = vmatpush1.msra.mxu0 0.0
    %3109 = vmatprep.subr.mxu0 0.0
    %3110 = vmatpush1.msra.mxu0 0.0
    %3111 = vmatprep.subr.mxu0 0.0
    %3112 = vmatpush1.msra.mxu0 0.0
    %3113 = vmatprep.subr.mxu0 0.0
    %3114 = vmatpush1.msra.mxu0 0.0
    %3115 = vmatprep.subr.mxu0 0.0
    %3116 = vmatpush1.msra.mxu0 0.0
    %3117 = vmatprep.subr.mxu0 0.0
    %3118 = vmatpush1.msra.mxu0 0.0
    %3119 = vmatprep.subr.mxu0 0.0
    %3120 = vmatpush1.msra.mxu0 0.0
    %3121 = vmatprep.subr.mxu0 0.0
    %3122 = vmatpush1.msra.mxu0 0.0
    %3123 = vmatprep.subr.mxu0 0.0
    %3124 = vmatpush1.msra.mxu0 0.0
    %3125 = vmatprep.subr.mxu0 0.0
    %3126 = vmatpush1.msra.mxu0 0.0
    %3127 = vmatprep.subr.mxu0 0.0
    %3128 = vmatpush1.msra.mxu0 0.0
    %3129 = vmatprep.subr.mxu0 0.0
    %3130 = vmatpush1.msra.mxu0 0.0
    %3131 = vmatprep.subr.mxu0 0.0
    %3132 = vmatpush1.msra.mxu0 0.0
    %3133 = vmatprep.subr.mxu0 0.0
    %3134 = vmatpush1.msra.mxu0 0.0
    %3135 = vmatprep.subr.mxu0 0.0
    %3136 = vmatpush1.msra.mxu0 0.0
    %3137 = vmatprep.subr.mxu0 0.0
    %3138 = vmatpush1.msra.mxu0 0.0
    %3139 = vmatprep.subr.mxu0 0.0
    %3140 = vmatpush1.msra.mxu0 0.0
    %3141 = vmatprep.subr.mxu0 0.0
    %3142 = vmatpush1.msra.mxu0 0.0
    %3143 = vmatprep.subr.mxu0 0.0
    %3144 = vmatpush1.msra.mxu0 0.0
    %3145 = vmatprep.subr.mxu0 0.0
    %3146 = vmatpush1.msra.mxu0 0.0
    %3147 = vmatprep.mubr.f32.mxu0 0.0
    %v3148 = vand.u32 %v2982, 4294901760
    %3149 = vmatmul.mubr.f32.gmra.mrb[0].mxu0 %v3148
    %v3150 = vpop.f32.mrb[0].mxu0
    %v3151 = vadd.f32 %v3060, %v3150
    %v3152 = vpop.f32.mrb[0].mxu0
    %3153 = vdwg.mxu0
    %3154 = vmatprep.subr.mxu0 0.0
    %v3155 = vand.u32 %v44, 4294901760
    %v3156 = vsub.f32 %v44, %v3155
    %3157 = vmatpush1.msra.mxu0 %v3156
    %3158 = vmatprep.subr.mxu0 0.0
    %v3159 = vand.u32 %v45, 4294901760
    %v3160 = vsub.f32 %v45, %v3159
    %3161 = vmatpush1.msra.mxu0 %v3160
    %3162 = vmatprep.subr.mxu0 0.0
    %v3163 = vand.u32 %v46, 4294901760
    %v3164 = vsub.f32 %v46, %v3163
    %3165 = vmatpush1.msra.mxu0 %v3164
    %3166 = vmatprep.subr.mxu0 0.0
    %v3167 = vand.u32 %v47, 4294901760
    %v3168 = vsub.f32 %v47, %v3167
    %3169 = vmatpush1.msra.mxu0 %v3168
    %3170 = vmatprep.subr.mxu0 0.0
    %3171 = vmatpush1.msra.mxu0 0.0
    %3172 = vmatprep.subr.mxu0 0.0
    %3173 = vmatpush1.msra.mxu0 0.0
    %3174 = vmatprep.subr.mxu0 0.0
    %3175 = vmatpush1.msra.mxu0 0.0
    %3176 = vmatprep.subr.mxu0 0.0
    %3177 = vmatpush1.msra.mxu0 0.0
    %3178 = vmatprep.subr.mxu0 0.0
    %3179 = vmatpush1.msra.mxu0 0.0
    %3180 = vmatprep.subr.mxu0 0.0
    %3181 = vmatpush1.msra.mxu0 0.0
    %3182 = vmatprep.subr.mxu0 0.0
    %3183 = vmatpush1.msra.mxu0 0.0
    %3184 = vmatprep.subr.mxu0 0.0
    %3185 = vmatpush1.msra.mxu0 0.0
    %3186 = vmatprep.subr.mxu0 0.0
    %3187 = vmatpush1.msra.mxu0 0.0
    %3188 = vmatprep.subr.mxu0 0.0
    %3189 = vmatpush1.msra.mxu0 0.0
    %3190 = vmatprep.subr.mxu0 0.0
    %3191 = vmatpush1.msra.mxu0 0.0
    %3192 = vmatprep.subr.mxu0 0.0
    %3193 = vmatpush1.msra.mxu0 0.0
    %3194 = vmatprep.subr.mxu0 0.0
    %3195 = vmatpush1.msra.mxu0 0.0
    %3196 = vmatprep.subr.mxu0 0.0
    %3197 = vmatpush1.msra.mxu0 0.0
    %3198 = vmatprep.subr.mxu0 0.0
    %3199 = vmatpush1.msra.mxu0 0.0
    %3200 = vmatprep.subr.mxu0 0.0
    %3201 = vmatpush1.msra.mxu0 0.0
    %3202 = vmatprep.subr.mxu0 0.0
    %3203 = vmatpush1.msra.mxu0 0.0
    %3204 = vmatprep.subr.mxu0 0.0
    %3205 = vmatpush1.msra.mxu0 0.0
    %3206 = vmatprep.subr.mxu0 0.0
    %3207 = vmatpush1.msra.mxu0 0.0
    %3208 = vmatprep.subr.mxu0 0.0
    %3209 = vmatpush1.msra.mxu0 0.0
    %3210 = vmatprep.subr.mxu0 0.0
    %3211 = vmatpush1.msra.mxu0 0.0
    %3212 = vmatprep.subr.mxu0 0.0
    %3213 = vmatpush1.msra.mxu0 0.0
    %3214 = vmatprep.subr.mxu0 0.0
    %3215 = vmatpush1.msra.mxu0 0.0
    %3216 = vmatprep.subr.mxu0 0.0
    %3217 = vmatpush1.msra.mxu0 0.0
    %3218 = vmatprep.subr.mxu0 0.0
    %3219 = vmatpush1.msra.mxu0 0.0
    %3220 = vmatprep.subr.mxu0 0.0
    %3221 = vmatpush1.msra.mxu0 0.0
    %3222 = vmatprep.subr.mxu0 0.0
    %3223 = vmatpush1.msra.mxu0 0.0
    %3224 = vmatprep.subr.mxu0 0.0
    %3225 = vmatpush1.msra.mxu0 0.0
    %3226 = vmatprep.mubr.f32.mxu0 0.0
    %v3227 = vand.u32 %v2982, 4294901760
    %v3228 = vsub.f32 %v2982, %v3227
    %3229 = vmatmul.mubr.f32.gmra.mrb[0].mxu0 %v3228
    %v3230 = vpop.f32.mrb[0].mxu0
    %v3231 = vadd.f32 %v3151, %v3230
    %v3232 = vpop.f32.mrb[0].mxu0
    %3233 = vdwg.mxu0
    %3234 = vmatprep.subr.mxu0 0.0
    %v3235 = vand.u32 %v44, 4294901760
    %3236 = vmatpush1.msra.mxu0 %v3235
    %3237 = vmatprep.subr.mxu0 0.0
    %v3238 = vand.u32 %v45, 4294901760
    %3239 = vmatpush1.msra.mxu0 %v3238
    %3240 = vmatprep.subr.mxu0 0.0
    %v3241 = vand.u32 %v46, 4294901760
    %3242 = vmatpush1.msra.mxu0 %v3241
    %3243 = vmatprep.subr.mxu0 0.0
    %v3244 = vand.u32 %v47, 4294901760
    %3245 = vmatpush1.msra.mxu0 %v3244
    %3246 = vmatprep.subr.mxu0 0.0
    %3247 = vmatpush1.msra.mxu0 0.0
    %3248 = vmatprep.subr.mxu0 0.0
    %3249 = vmatpush1.msra.mxu0 0.0
    %3250 = vmatprep.subr.mxu0 0.0
    %3251 = vmatpush1.msra.mxu0 0.0
    %3252 = vmatprep.subr.mxu0 0.0
    %3253 = vmatpush1.msra.mxu0 0.0
    %3254 = vmatprep.subr.mxu0 0.0
    %3255 = vmatpush1.msra.mxu0 0.0
    %3256 = vmatprep.subr.mxu0 0.0
    %3257 = vmatpush1.msra.mxu0 0.0
    %3258 = vmatprep.subr.mxu0 0.0
    %3259 = vmatpush1.msra.mxu0 0.0
    %3260 = vmatprep.subr.mxu0 0.0
    %3261 = vmatpush1.msra.mxu0 0.0
    %3262 = vmatprep.subr.mxu0 0.0
    %3263 = vmatpush1.msra.mxu0 0.0
    %3264 = vmatprep.subr.mxu0 0.0
    %3265 = vmatpush1.msra.mxu0 0.0
    %3266 = vmatprep.subr.mxu0 0.0
    %3267 = vmatpush1.msra.mxu0 0.0
    %3268 = vmatprep.subr.mxu0 0.0
    %3269 = vmatpush1.msra.mxu0 0.0
    %3270 = vmatprep.subr.mxu0 0.0
    %3271 = vmatpush1.msra.mxu0 0.0
    %3272 = vmatprep.subr.mxu0 0.0
    %3273 = vmatpush1.msra.mxu0 0.0
    %3274 = vmatprep.subr.mxu0 0.0
    %3275 = vmatpush1.msra.mxu0 0.0
    %3276 = vmatprep.subr.mxu0 0.0
    %3277 = vmatpush1.msra.mxu0 0.0
    %3278 = vmatprep.subr.mxu0 0.0
    %3279 = vmatpush1.msra.mxu0 0.0
    %3280 = vmatprep.subr.mxu0 0.0
    %3281 = vmatpush1.msra.mxu0 0.0
    %3282 = vmatprep.subr.mxu0 0.0
    %3283 = vmatpush1.msra.mxu0 0.0
    %3284 = vmatprep.subr.mxu0 0.0
    %3285 = vmatpush1.msra.mxu0 0.0
    %3286 = vmatprep.subr.mxu0 0.0
    %3287 = vmatpush1.msra.mxu0 0.0
    %3288 = vmatprep.subr.mxu0 0.0
    %3289 = vmatpush1.msra.mxu0 0.0
    %3290 = vmatprep.subr.mxu0 0.0
    %3291 = vmatpush1.msra.mxu0 0.0
    %3292 = vmatprep.subr.mxu0 0.0
    %3293 = vmatpush1.msra.mxu0 0.0
    %3294 = vmatprep.subr.mxu0 0.0
    %3295 = vmatpush1.msra.mxu0 0.0
    %3296 = vmatprep.subr.mxu0 0.0
    %3297 = vmatpush1.msra.mxu0 0.0
    %3298 = vmatprep.subr.mxu0 0.0
    %3299 = vmatpush1.msra.mxu0 0.0
    %3300 = vmatprep.subr.mxu0 0.0
    %3301 = vmatpush1.msra.mxu0 0.0
    %3302 = vmatprep.mubr.f32.mxu0 0.0
    %v3303 = vand.u32 %v2982, 4294901760
    %v3304 = vsub.f32 %v2982, %v3303
    %v3305 = vand.u32 %v3304, 4294901760
    %3306 = vmatmul.mubr.f32.gmra.mrb[0].mxu0 %v3305
    %v3307 = vpop.f32.mrb[0].mxu0
    %v3308 = vadd.f32 %v3231, %v3307
    %v3309 = vpop.f32.mrb[0].mxu0
    %3310 = vdwg.mxu0
    %3311 = vmatprep.subr.mxu0 0.0
    %v3312 = vand.u32 %v44, 4294901760
    %v3313 = vsub.f32 %v44, %v3312
    %v3314 = vand.u32 %v3313, 4294901760
    %3315 = vmatpush1.msra.mxu0 %v3314
    %3316 = vmatprep.subr.mxu0 0.0
    %v3317 = vand.u32 %v45, 4294901760
    %v3318 = vsub.f32 %v45, %v3317
    %v3319 = vand.u32 %v3318, 4294901760
    %3320 = vmatpush1.msra.mxu0 %v3319
    %3321 = vmatprep.subr.mxu0 0.0
    %v3322 = vand.u32 %v46, 4294901760
    %v3323 = vsub.f32 %v46, %v3322
    %v3324 = vand.u32 %v3323, 4294901760
    %3325 = vmatpush1.msra.mxu0 %v3324
    %3326 = vmatprep.subr.mxu0 0.0
    %v3327 = vand.u32 %v47, 4294901760
    %v3328 = vsub.f32 %v47, %v3327
    %v3329 = vand.u32 %v3328, 4294901760
    %3330 = vmatpush1.msra.mxu0 %v3329
    %3331 = vmatprep.subr.mxu0 0.0
    %3332 = vmatpush1.msra.mxu0 0.0
    %3333 = vmatprep.subr.mxu0 0.0
    %3334 = vmatpush1.msra.mxu0 0.0
    %3335 = vmatprep.subr.mxu0 0.0
    %3336 = vmatpush1.msra.mxu0 0.0
    %3337 = vmatprep.subr.mxu0 0.0
    %3338 = vmatpush1.msra.mxu0 0.0
    %3339 = vmatprep.subr.mxu0 0.0
    %3340 = vmatpush1.msra.mxu0 0.0
    %3341 = vmatprep.subr.mxu0 0.0
    %3342 = vmatpush1.msra.mxu0 0.0
    %3343 = vmatprep.subr.mxu0 0.0
    %3344 = vmatpush1.msra.mxu0 0.0
    %3345 = vmatprep.subr.mxu0 0.0
    %3346 = vmatpush1.msra.mxu0 0.0
    %3347 = vmatprep.subr.mxu0 0.0
    %3348 = vmatpush1.msra.mxu0 0.0
    %3349 = vmatprep.subr.mxu0 0.0
    %3350 = vmatpush1.msra.mxu0 0.0
    %3351 = vmatprep.subr.mxu0 0.0
    %3352 = vmatpush1.msra.mxu0 0.0
    %3353 = vmatprep.subr.mxu0 0.0
    %3354 = vmatpush1.msra.mxu0 0.0
    %3355 = vmatprep.subr.mxu0 0.0
    %3356 = vmatpush1.msra.mxu0 0.0
    %3357 = vmatprep.subr.mxu0 0.0
    %3358 = vmatpush1.msra.mxu0 0.0
    %3359 = vmatprep.subr.mxu0 0.0
    %3360 = vmatpush1.msra.mxu0 0.0
    %3361 = vmatprep.subr.mxu0 0.0
    %3362 = vmatpush1.msra.mxu0 0.0
    %3363 = vmatprep.subr.mxu0 0.0
    %3364 = vmatpush1.msra.mxu0 0.0
    %3365 = vmatprep.subr.mxu0 0.0
    %3366 = vmatpush1.msra.mxu0 0.0
    %3367 = vmatprep.subr.mxu0 0.0
    %3368 = vmatpush1.msra.mxu0 0.0
    %3369 = vmatprep.subr.mxu0 0.0
    %3370 = vmatpush1.msra.mxu0 0.0
    %3371 = vmatprep.subr.mxu0 0.0
    %3372 = vmatpush1.msra.mxu0 0.0
    %3373 = vmatprep.subr.mxu0 0.0
    %3374 = vmatpush1.msra.mxu0 0.0
    %3375 = vmatprep.subr.mxu0 0.0
    %3376 = vmatpush1.msra.mxu0 0.0
    %3377 = vmatprep.subr.mxu0 0.0
    %3378 = vmatpush1.msra.mxu0 0.0
    %3379 = vmatprep.subr.mxu0 0.0
    %3380 = vmatpush1.msra.mxu0 0.0
    %3381 = vmatprep.subr.mxu0 0.0
    %3382 = vmatpush1.msra.mxu0 0.0
    %3383 = vmatprep.subr.mxu0 0.0
    %3384 = vmatpush1.msra.mxu0 0.0
    %3385 = vmatprep.subr.mxu0 0.0
    %3386 = vmatpush1.msra.mxu0 0.0
    %3387 = vmatprep.mubr.f32.mxu0 0.0
    %v3388 = vand.u32 %v2982, 4294901760
    %3389 = vmatmul.mubr.f32.gmra.mrb[0].mxu0 %v3388
    %v3390 = vpop.f32.mrb[0].mxu0
    %v3391 = vadd.f32 %v3308, %v3390
    %v3392 = vpop.f32.mrb[0].mxu0
    %3393 = vdwg.mxu0
    %3394 = vmatprep.subr.mxu0 0.0
    %v3395 = vand.u32 %v44, 4294901760
    %3396 = vmatpush1.msra.mxu0 %v3395
    %3397 = vmatprep.subr.mxu0 0.0
    %v3398 = vand.u32 %v45, 4294901760
    %3399 = vmatpush1.msra.mxu0 %v3398
    %3400 = vmatprep.subr.mxu0 0.0
    %v3401 = vand.u32 %v46, 4294901760
    %3402 = vmatpush1.msra.mxu0 %v3401
    %3403 = vmatprep.subr.mxu0 0.0
    %v3404 = vand.u32 %v47, 4294901760
    %3405 = vmatpush1.msra.mxu0 %v3404
    %3406 = vmatprep.subr.mxu0 0.0
    %3407 = vmatpush1.msra.mxu0 0.0
    %3408 = vmatprep.subr.mxu0 0.0
    %3409 = vmatpush1.msra.mxu0 0.0
    %3410 = vmatprep.subr.mxu0 0.0
    %3411 = vmatpush1.msra.mxu0 0.0
    %3412 = vmatprep.subr.mxu0 0.0
    %3413 = vmatpush1.msra.mxu0 0.0
    %3414 = vmatprep.subr.mxu0 0.0
    %3415 = vmatpush1.msra.mxu0 0.0
    %3416 = vmatprep.subr.mxu0 0.0
    %3417 = vmatpush1.msra.mxu0 0.0
    %3418 = vmatprep.subr.mxu0 0.0
    %3419 = vmatpush1.msra.mxu0 0.0
    %3420 = vmatprep.subr.mxu0 0.0
    %3421 = vmatpush1.msra.mxu0 0.0
    %3422 = vmatprep.subr.mxu0 0.0
    %3423 = vmatpush1.msra.mxu0 0.0
    %3424 = vmatprep.subr.mxu0 0.0
    %3425 = vmatpush1.msra.mxu0 0.0
    %3426 = vmatprep.subr.mxu0 0.0
    %3427 = vmatpush1.msra.mxu0 0.0
    %3428 = vmatprep.subr.mxu0 0.0
    %3429 = vmatpush1.msra.mxu0 0.0
    %3430 = vmatprep.subr.mxu0 0.0
    %3431 = vmatpush1.msra.mxu0 0.0
    %3432 = vmatprep.subr.mxu0 0.0
    %3433 = vmatpush1.msra.mxu0 0.0
    %3434 = vmatprep.subr.mxu0 0.0
    %3435 = vmatpush1.msra.mxu0 0.0
    %3436 = vmatprep.subr.mxu0 0.0
    %3437 = vmatpush1.msra.mxu0 0.0
    %3438 = vmatprep.subr.mxu0 0.0
    %3439 = vmatpush1.msra.mxu0 0.0
    %3440 = vmatprep.subr.mxu0 0.0
    %3441 = vmatpush1.msra.mxu0 0.0
    %3442 = vmatprep.subr.mxu0 0.0
    %3443 = vmatpush1.msra.mxu0 0.0
    %3444 = vmatprep.subr.mxu0 0.0
    %3445 = vmatpush1.msra.mxu0 0.0
    %3446 = vmatprep.subr.mxu0 0.0
    %3447 = vmatpush1.msra.mxu0 0.0
    %3448 = vmatprep.subr.mxu0 0.0
    %3449 = vmatpush1.msra.mxu0 0.0
    %3450 = vmatprep.subr.mxu0 0.0
    %3451 = vmatpush1.msra.mxu0 0.0
    %3452 = vmatprep.subr.mxu0 0.0
    %3453 = vmatpush1.msra.mxu0 0.0
    %3454 = vmatprep.subr.mxu0 0.0
    %3455 = vmatpush1.msra.mxu0 0.0
    %3456 = vmatprep.subr.mxu0 0.0
    %3457 = vmatpush1.msra.mxu0 0.0
    %3458 = vmatprep.subr.mxu0 0.0
    %3459 = vmatpush1.msra.mxu0 0.0
    %3460 = vmatprep.subr.mxu0 0.0
    %3461 = vmatpush1.msra.mxu0 0.0
    %3462 = vmatprep.mubr.f32.mxu0 0.0
    %v3463 = vand.u32 %v2982, 4294901760
    %3464 = vmatmul.mubr.f32.gmra.mrb[0].mxu0 %v3463
    %v3465 = vpop.f32.mrb[0].mxu0
    %v3466 = vadd.f32 %v3391, %v3465
    %v3467 = vpop.f32.mrb[0].mxu0
    %3468 = vdwg.mxu0
    %v3470 = vsel %vm52, %v19, 0
    %3472 = vmatprep.subr.mxu0 0.0
    %v3473 = vand.u32 %v48, 4294901760
    %3474 = vmatpush1.msra.mxu0 %v3473
    %3475 = vmatprep.subr.mxu0 0.0
    %v3476 = vand.u32 %v49, 4294901760
    %3477 = vmatpush1.msra.mxu0 %v3476
    %3478 = vmatprep.subr.mxu0 0.0
    %v3479 = vand.u32 %v50, 4294901760
    %3480 = vmatpush1.msra.mxu0 %v3479
    %3481 = vmatprep.subr.mxu0 0.0
    %v3482 = vand.u32 %v51, 4294901760
    %3483 = vmatpush1.msra.mxu0 %v3482
    %3484 = vmatprep.subr.mxu0 0.0
    %3485 = vmatpush1.msra.mxu0 0.0
    %3486 = vmatprep.subr.mxu0 0.0
    %3487 = vmatpush1.msra.mxu0 0.0
    %3488 = vmatprep.subr.mxu0 0.0
    %3489 = vmatpush1.msra.mxu0 0.0
    %3490 = vmatprep.subr.mxu0 0.0
    %3491 = vmatpush1.msra.mxu0 0.0
    %3492 = vmatprep.subr.mxu0 0.0
    %3493 = vmatpush1.msra.mxu0 0.0
    %3494 = vmatprep.subr.mxu0 0.0
    %3495 = vmatpush1.msra.mxu0 0.0
    %3496 = vmatprep.subr.mxu0 0.0
    %3497 = vmatpush1.msra.mxu0 0.0
    %3498 = vmatprep.subr.mxu0 0.0
    %3499 = vmatpush1.msra.mxu0 0.0
    %3500 = vmatprep.subr.mxu0 0.0
    %3501 = vmatpush1.msra.mxu0 0.0
    %3502 = vmatprep.subr.mxu0 0.0
    %3503 = vmatpush1.msra.mxu0 0.0
    %3504 = vmatprep.subr.mxu0 0.0
    %3505 = vmatpush1.msra.mxu0 0.0
    %3506 = vmatprep.subr.mxu0 0.0
    %3507 = vmatpush1.msra.mxu0 0.0
    %3508 = vmatprep.subr.mxu0 0.0
    %3509 = vmatpush1.msra.mxu0 0.0
    %3510 = vmatprep.subr.mxu0 0.0
    %3511 = vmatpush1.msra.mxu0 0.0
    %3512 = vmatprep.subr.mxu0 0.0
    %3513 = vmatpush1.msra.mxu0 0.0
    %3514 = vmatprep.subr.mxu0 0.0
    %3515 = vmatpush1.msra.mxu0 0.0
    %3516 = vmatprep.subr.mxu0 0.0
    %3517 = vmatpush1.msra.mxu0 0.0
    %3518 = vmatprep.subr.mxu0 0.0
    %3519 = vmatpush1.msra.mxu0 0.0
    %3520 = vmatprep.subr.mxu0 0.0
    %3521 = vmatpush1.msra.mxu0 0.0
    %3522 = vmatprep.subr.mxu0 0.0
    %3523 = vmatpush1.msra.mxu0 0.0
    %3524 = vmatprep.subr.mxu0 0.0
    %3525 = vmatpush1.msra.mxu0 0.0
    %3526 = vmatprep.subr.mxu0 0.0
    %3527 = vmatpush1.msra.mxu0 0.0
    %3528 = vmatprep.subr.mxu0 0.0
    %3529 = vmatpush1.msra.mxu0 0.0
    %3530 = vmatprep.subr.mxu0 0.0
    %3531 = vmatpush1.msra.mxu0 0.0
    %3532 = vmatprep.subr.mxu0 0.0
    %3533 = vmatpush1.msra.mxu0 0.0
    %3534 = vmatprep.subr.mxu0 0.0
    %3535 = vmatpush1.msra.mxu0 0.0
    %3536 = vmatprep.subr.mxu0 0.0
    %3537 = vmatpush1.msra.mxu0 0.0
    %3538 = vmatprep.subr.mxu0 0.0
    %3539 = vmatpush1.msra.mxu0 0.0
    %3540 = vmatprep.mubr.f32.mxu0 0.0
    %v3541 = vand.u32 %v3470, 4294901760
    %v3542 = vsub.f32 %v3470, %v3541
    %v3543 = vand.u32 %v3542, 4294901760
    %v3544 = vsub.f32 %v3542, %v3543
    %v3545 = vand.u32 %v3544, 4294901760
    %3546 = vmatmul.mubr.f32.gmra.mrb[0].mxu0 %v3545
    %v3547 = vpop.f32.mrb[0].mxu0
    %v3548 = vadd.f32 0.0, %v3547
    %v3549 = vpop.f32.mrb[0].mxu0
    %3550 = vdwg.mxu0
    %3551 = vmatprep.subr.mxu0 0.0
    %v3552 = vand.u32 %v48, 4294901760
    %v3553 = vsub.f32 %v48, %v3552
    %v3554 = vand.u32 %v3553, 4294901760
    %v3555 = vsub.f32 %v3553, %v3554
    %v3556 = vand.u32 %v3555, 4294901760
    %3557 = vmatpush1.msra.mxu0 %v3556
    %3558 = vmatprep.subr.mxu0 0.0
    %v3559 = vand.u32 %v49, 4294901760
    %v3560 = vsub.f32 %v49, %v3559
    %v3561 = vand.u32 %v3560, 4294901760
    %v3562 = vsub.f32 %v3560, %v3561
    %v3563 = vand.u32 %v3562, 4294901760
    %3564 = vmatpush1.msra.mxu0 %v3563
    %3565 = vmatprep.subr.mxu0 0.0
    %v3566 = vand.u32 %v50, 4294901760
    %v3567 = vsub.f32 %v50, %v3566
    %v3568 = vand.u32 %v3567, 4294901760
    %v3569 = vsub.f32 %v3567, %v3568
    %v3570 = vand.u32 %v3569, 4294901760
    %3571 = vmatpush1.msra.mxu0 %v3570
    %3572 = vmatprep.subr.mxu0 0.0
    %v3573 = vand.u32 %v51, 4294901760
    %v3574 = vsub.f32 %v51, %v3573
    %v3575 = vand.u32 %v3574, 4294901760
    %v3576 = vsub.f32 %v3574, %v3575
    %v3577 = vand.u32 %v3576, 4294901760
    %3578 = vmatpush1.msra.mxu0 %v3577
    %3579 = vmatprep.subr.mxu0 0.0
    %3580 = vmatpush1.msra.mxu0 0.0
    %3581 = vmatprep.subr.mxu0 0.0
    %3582 = vmatpush1.msra.mxu0 0.0
    %3583 = vmatprep.subr.mxu0 0.0
    %3584 = vmatpush1.msra.mxu0 0.0
    %3585 = vmatprep.subr.mxu0 0.0
    %3586 = vmatpush1.msra.mxu0 0.0
    %3587 = vmatprep.subr.mxu0 0.0
    %3588 = vmatpush1.msra.mxu0 0.0
    %3589 = vmatprep.subr.mxu0 0.0
    %3590 = vmatpush1.msra.mxu0 0.0
    %3591 = vmatprep.subr.mxu0 0.0
    %3592 = vmatpush1.msra.mxu0 0.0
    %3593 = vmatprep.subr.mxu0 0.0
    %3594 = vmatpush1.msra.mxu0 0.0
    %3595 = vmatprep.subr.mxu0 0.0
    %3596 = vmatpush1.msra.mxu0 0.0
    %3597 = vmatprep.subr.mxu0 0.0
    %3598 = vmatpush1.msra.mxu0 0.0
    %3599 = vmatprep.subr.mxu0 0.0
    %3600 = vmatpush1.msra.mxu0 0.0
    %3601 = vmatprep.subr.mxu0 0.0
    %3602 = vmatpush1.msra.mxu0 0.0
    %3603 = vmatprep.subr.mxu0 0.0
    %3604 = vmatpush1.msra.mxu0 0.0
    %3605 = vmatprep.subr.mxu0 0.0
    %3606 = vmatpush1.msra.mxu0 0.0
    %3607 = vmatprep.subr.mxu0 0.0
    %3608 = vmatpush1.msra.mxu0 0.0
    %3609 = vmatprep.subr.mxu0 0.0
    %3610 = vmatpush1.msra.mxu0 0.0
    %3611 = vmatprep.subr.mxu0 0.0
    %3612 = vmatpush1.msra.mxu0 0.0
    %3613 = vmatprep.subr.mxu0 0.0
    %3614 = vmatpush1.msra.mxu0 0.0
    %3615 = vmatprep.subr.mxu0 0.0
    %3616 = vmatpush1.msra.mxu0 0.0
    %3617 = vmatprep.subr.mxu0 0.0
    %3618 = vmatpush1.msra.mxu0 0.0
    %3619 = vmatprep.subr.mxu0 0.0
    %3620 = vmatpush1.msra.mxu0 0.0
    %3621 = vmatprep.subr.mxu0 0.0
    %3622 = vmatpush1.msra.mxu0 0.0
    %3623 = vmatprep.subr.mxu0 0.0
    %3624 = vmatpush1.msra.mxu0 0.0
    %3625 = vmatprep.subr.mxu0 0.0
    %3626 = vmatpush1.msra.mxu0 0.0
    %3627 = vmatprep.subr.mxu0 0.0
    %3628 = vmatpush1.msra.mxu0 0.0
    %3629 = vmatprep.subr.mxu0 0.0
    %3630 = vmatpush1.msra.mxu0 0.0
    %3631 = vmatprep.subr.mxu0 0.0
    %3632 = vmatpush1.msra.mxu0 0.0
    %3633 = vmatprep.subr.mxu0 0.0
    %3634 = vmatpush1.msra.mxu0 0.0
    %3635 = vmatprep.mubr.f32.mxu0 0.0
    %v3636 = vand.u32 %v3470, 4294901760
    %3637 = vmatmul.mubr.f32.gmra.mrb[0].mxu0 %v3636
    %v3638 = vpop.f32.mrb[0].mxu0
    %v3639 = vadd.f32 %v3548, %v3638
    %v3640 = vpop.f32.mrb[0].mxu0
    %3641 = vdwg.mxu0
    %3642 = vmatprep.subr.mxu0 0.0
    %v3643 = vand.u32 %v48, 4294901760
    %v3644 = vsub.f32 %v48, %v3643
    %3645 = vmatpush1.msra.mxu0 %v3644
    %3646 = vmatprep.subr.mxu0 0.0
    %v3647 = vand.u32 %v49, 4294901760
    %v3648 = vsub.f32 %v49, %v3647
    %3649 = vmatpush1.msra.mxu0 %v3648
    %3650 = vmatprep.subr.mxu0 0.0
    %v3651 = vand.u32 %v50, 4294901760
    %v3652 = vsub.f32 %v50, %v3651
    %3653 = vmatpush1.msra.mxu0 %v3652
    %3654 = vmatprep.subr.mxu0 0.0
    %v3655 = vand.u32 %v51, 4294901760
    %v3656 = vsub.f32 %v51, %v3655
    %3657 = vmatpush1.msra.mxu0 %v3656
    %3658 = vmatprep.subr.mxu0 0.0
    %3659 = vmatpush1.msra.mxu0 0.0
    %3660 = vmatprep.subr.mxu0 0.0
    %3661 = vmatpush1.msra.mxu0 0.0
    %3662 = vmatprep.subr.mxu0 0.0
    %3663 = vmatpush1.msra.mxu0 0.0
    %3664 = vmatprep.subr.mxu0 0.0
    %3665 = vmatpush1.msra.mxu0 0.0
    %3666 = vmatprep.subr.mxu0 0.0
    %3667 = vmatpush1.msra.mxu0 0.0
    %3668 = vmatprep.subr.mxu0 0.0
    %3669 = vmatpush1.msra.mxu0 0.0
    %3670 = vmatprep.subr.mxu0 0.0
    %3671 = vmatpush1.msra.mxu0 0.0
    %3672 = vmatprep.subr.mxu0 0.0
    %3673 = vmatpush1.msra.mxu0 0.0
    %3674 = vmatprep.subr.mxu0 0.0
    %3675 = vmatpush1.msra.mxu0 0.0
    %3676 = vmatprep.subr.mxu0 0.0
    %3677 = vmatpush1.msra.mxu0 0.0
    %3678 = vmatprep.subr.mxu0 0.0
    %3679 = vmatpush1.msra.mxu0 0.0
    %3680 = vmatprep.subr.mxu0 0.0
    %3681 = vmatpush1.msra.mxu0 0.0
    %3682 = vmatprep.subr.mxu0 0.0
    %3683 = vmatpush1.msra.mxu0 0.0
    %3684 = vmatprep.subr.mxu0 0.0
    %3685 = vmatpush1.msra.mxu0 0.0
    %3686 = vmatprep.subr.mxu0 0.0
    %3687 = vmatpush1.msra.mxu0 0.0
    %3688 = vmatprep.subr.mxu0 0.0
    %3689 = vmatpush1.msra.mxu0 0.0
    %3690 = vmatprep.subr.mxu0 0.0
    %3691 = vmatpush1.msra.mxu0 0.0
    %3692 = vmatprep.subr.mxu0 0.0
    %3693 = vmatpush1.msra.mxu0 0.0
    %3694 = vmatprep.subr.mxu0 0.0
    %3695 = vmatpush1.msra.mxu0 0.0
    %3696 = vmatprep.subr.mxu0 0.0
    %3697 = vmatpush1.msra.mxu0 0.0
    %3698 = vmatprep.subr.mxu0 0.0
    %3699 = vmatpush1.msra.mxu0 0.0
    %3700 = vmatprep.subr.mxu0 0.0
    %3701 = vmatpush1.msra.mxu0 0.0
    %3702 = vmatprep.subr.mxu0 0.0
    %3703 = vmatpush1.msra.mxu0 0.0
    %3704 = vmatprep.subr.mxu0 0.0
    %3705 = vmatpush1.msra.mxu0 0.0
    %3706 = vmatprep.subr.mxu0 0.0
    %3707 = vmatpush1.msra.mxu0 0.0
    %3708 = vmatprep.subr.mxu0 0.0
    %3709 = vmatpush1.msra.mxu0 0.0
    %3710 = vmatprep.subr.mxu0 0.0
    %3711 = vmatpush1.msra.mxu0 0.0
    %3712 = vmatprep.subr.mxu0 0.0
    %3713 = vmatpush1.msra.mxu0 0.0
    %3714 = vmatprep.mubr.f32.mxu0 0.0
    %v3715 = vand.u32 %v3470, 4294901760
    %v3716 = vsub.f32 %v3470, %v3715
    %3717 = vmatmul.mubr.f32.gmra.mrb[0].mxu0 %v3716
    %v3718 = vpop.f32.mrb[0].mxu0
    %v3719 = vadd.f32 %v3639, %v3718
    %v3720 = vpop.f32.mrb[0].mxu0
    %3721 = vdwg.mxu0
    %3722 = vmatprep.subr.mxu0 0.0
    %v3723 = vand.u32 %v48, 4294901760
    %3724 = vmatpush1.msra.mxu0 %v3723
    %3725 = vmatprep.subr.mxu0 0.0
    %v3726 = vand.u32 %v49, 4294901760
    %3727 = vmatpush1.msra.mxu0 %v3726
    %3728 = vmatprep.subr.mxu0 0.0
    %v3729 = vand.u32 %v50, 4294901760
    %3730 = vmatpush1.msra.mxu0 %v3729
    %3731 = vmatprep.subr.mxu0 0.0
    %v3732 = vand.u32 %v51, 4294901760
    %3733 = vmatpush1.msra.mxu0 %v3732
    %3734 = vmatprep.subr.mxu0 0.0
    %3735 = vmatpush1.msra.mxu0 0.0
    %3736 = vmatprep.subr.mxu0 0.0
    %3737 = vmatpush1.msra.mxu0 0.0
    %3738 = vmatprep.subr.mxu0 0.0
    %3739 = vmatpush1.msra.mxu0 0.0
    %3740 = vmatprep.subr.mxu0 0.0
    %3741 = vmatpush1.msra.mxu0 0.0
    %3742 = vmatprep.subr.mxu0 0.0
    %3743 = vmatpush1.msra.mxu0 0.0
    %3744 = vmatprep.subr.mxu0 0.0
    %3745 = vmatpush1.msra.mxu0 0.0
    %3746 = vmatprep.subr.mxu0 0.0
    %3747 = vmatpush1.msra.mxu0 0.0
    %3748 = vmatprep.subr.mxu0 0.0
    %3749 = vmatpush1.msra.mxu0 0.0
    %3750 = vmatprep.subr.mxu0 0.0
    %3751 = vmatpush1.msra.mxu0 0.0
    %3752 = vmatprep.subr.mxu0 0.0
    %3753 = vmatpush1.msra.mxu0 0.0
    %3754 = vmatprep.subr.mxu0 0.0
    %3755 = vmatpush1.msra.mxu0 0.0
    %3756 = vmatprep.subr.mxu0 0.0
    %3757 = vmatpush1.msra.mxu0 0.0
    %3758 = vmatprep.subr.mxu0 0.0
    %3759 = vmatpush1.msra.mxu0 0.0
    %3760 = vmatprep.subr.mxu0 0.0
    %3761 = vmatpush1.msra.mxu0 0.0
    %3762 = vmatprep.subr.mxu0 0.0
    %3763 = vmatpush1.msra.mxu0 0.0
    %3764 = vmatprep.subr.mxu0 0.0
    %3765 = vmatpush1.msra.mxu0 0.0
    %3766 = vmatprep.subr.mxu0 0.0
    %3767 = vmatpush1.msra.mxu0 0.0
    %3768 = vmatprep.subr.mxu0 0.0
    %3769 = vmatpush1.msra.mxu0 0.0
    %3770 = vmatprep.subr.mxu0 0.0
    %3771 = vmatpush1.msra.mxu0 0.0
    %3772 = vmatprep.subr.mxu0 0.0
    %3773 = vmatpush1.msra.mxu0 0.0
    %3774 = vmatprep.subr.mxu0 0.0
    %3775 = vmatpush1.msra.mxu0 0.0
    %3776 = vmatprep.subr.mxu0 0.0
    %3777 = vmatpush1.msra.mxu0 0.0
    %3778 = vmatprep.subr.mxu0 0.0
    %3779 = vmatpush1.msra.mxu0 0.0
    %3780 = vmatprep.subr.mxu0 0.0
    %3781 = vmatpush1.msra.mxu0 0.0
    %3782 = vmatprep.subr.mxu0 0.0
    %3783 = vmatpush1.msra.mxu0 0.0
    %3784 = vmatprep.subr.mxu0 0.0
    %3785 = vmatpush1.msra.mxu0 0.0
    %3786 = vmatprep.subr.mxu0 0.0
    %3787 = vmatpush1.msra.mxu0 0.0
    %3788 = vmatprep.subr.mxu0 0.0
    %3789 = vmatpush1.msra.mxu0 0.0
    %3790 = vmatprep.mubr.f32.mxu0 0.0
    %v3791 = vand.u32 %v3470, 4294901760
    %v3792 = vsub.f32 %v3470, %v3791
    %v3793 = vand.u32 %v3792, 4294901760
    %3794 = vmatmul.mubr.f32.gmra.mrb[0].mxu0 %v3793
    %v3795 = vpop.f32.mrb[0].mxu0
    %v3796 = vadd.f32 %v3719, %v3795
    %v3797 = vpop.f32.mrb[0].mxu0
    %3798 = vdwg.mxu0
    %3799 = vmatprep.subr.mxu0 0.0
    %v3800 = vand.u32 %v48, 4294901760
    %v3801 = vsub.f32 %v48, %v3800
    %v3802 = vand.u32 %v3801, 4294901760
    %3803 = vmatpush1.msra.mxu0 %v3802
    %3804 = vmatprep.subr.mxu0 0.0
    %v3805 = vand.u32 %v49, 4294901760
    %v3806 = vsub.f32 %v49, %v3805
    %v3807 = vand.u32 %v3806, 4294901760
    %3808 = vmatpush1.msra.mxu0 %v3807
    %3809 = vmatprep.subr.mxu0 0.0
    %v3810 = vand.u32 %v50, 4294901760
    %v3811 = vsub.f32 %v50, %v3810
    %v3812 = vand.u32 %v3811, 4294901760
    %3813 = vmatpush1.msra.mxu0 %v3812
    %3814 = vmatprep.subr.mxu0 0.0
    %v3815 = vand.u32 %v51, 4294901760
    %v3816 = vsub.f32 %v51, %v3815
    %v3817 = vand.u32 %v3816, 4294901760
    %3818 = vmatpush1.msra.mxu0 %v3817
    %3819 = vmatprep.subr.mxu0 0.0
    %3820 = vmatpush1.msra.mxu0 0.0
    %3821 = vmatprep.subr.mxu0 0.0
    %3822 = vmatpush1.msra.mxu0 0.0
    %3823 = vmatprep.subr.mxu0 0.0
    %3824 = vmatpush1.msra.mxu0 0.0
    %3825 = vmatprep.subr.mxu0 0.0
    %3826 = vmatpush1.msra.mxu0 0.0
    %3827 = vmatprep.subr.mxu0 0.0
    %3828 = vmatpush1.msra.mxu0 0.0
    %3829 = vmatprep.subr.mxu0 0.0
    %3830 = vmatpush1.msra.mxu0 0.0
    %3831 = vmatprep.subr.mxu0 0.0
    %3832 = vmatpush1.msra.mxu0 0.0
    %3833 = vmatprep.subr.mxu0 0.0
    %3834 = vmatpush1.msra.mxu0 0.0
    %3835 = vmatprep.subr.mxu0 0.0
    %3836 = vmatpush1.msra.mxu0 0.0
    %3837 = vmatprep.subr.mxu0 0.0
    %3838 = vmatpush1.msra.mxu0 0.0
    %3839 = vmatprep.subr.mxu0 0.0
    %3840 = vmatpush1.msra.mxu0 0.0
    %3841 = vmatprep.subr.mxu0 0.0
    %3842 = vmatpush1.msra.mxu0 0.0
    %3843 = vmatprep.subr.mxu0 0.0
    %3844 = vmatpush1.msra.mxu0 0.0
    %3845 = vmatprep.subr.mxu0 0.0
    %3846 = vmatpush1.msra.mxu0 0.0
    %3847 = vmatprep.subr.mxu0 0.0
    %3848 = vmatpush1.msra.mxu0 0.0
    %3849 = vmatprep.subr.mxu0 0.0
    %3850 = vmatpush1.msra.mxu0 0.0
    %3851 = vmatprep.subr.mxu0 0.0
    %3852 = vmatpush1.msra.mxu0 0.0
    %3853 = vmatprep.subr.mxu0 0.0
    %3854 = vmatpush1.msra.mxu0 0.0
    %3855 = vmatprep.subr.mxu0 0.0
    %3856 = vmatpush1.msra.mxu0 0.0
    %3857 = vmatprep.subr.mxu0 0.0
    %3858 = vmatpush1.msra.mxu0 0.0
    %3859 = vmatprep.subr.mxu0 0.0
    %3860 = vmatpush1.msra.mxu0 0.0
    %3861 = vmatprep.subr.mxu0 0.0
    %3862 = vmatpush1.msra.mxu0 0.0
    %3863 = vmatprep.subr.mxu0 0.0
    %3864 = vmatpush1.msra.mxu0 0.0
    %3865 = vmatprep.subr.mxu0 0.0
    %3866 = vmatpush1.msra.mxu0 0.0
    %3867 = vmatprep.subr.mxu0 0.0
    %3868 = vmatpush1.msra.mxu0 0.0
    %3869 = vmatprep.subr.mxu0 0.0
    %3870 = vmatpush1.msra.mxu0 0.0
    %3871 = vmatprep.subr.mxu0 0.0
    %3872 = vmatpush1.msra.mxu0 0.0
    %3873 = vmatprep.subr.mxu0 0.0
    %3874 = vmatpush1.msra.mxu0 0.0
    %3875 = vmatprep.mubr.f32.mxu0 0.0
    %v3876 = vand.u32 %v3470, 4294901760
    %3877 = vmatmul.mubr.f32.gmra.mrb[0].mxu0 %v3876
    %v3878 = vpop.f32.mrb[0].mxu0
    %v3879 = vadd.f32 %v3796, %v3878
    %v3880 = vpop.f32.mrb[0].mxu0
    %3881 = vdwg.mxu0
    %3882 = vmatprep.subr.mxu0 0.0
    %v3883 = vand.u32 %v48, 4294901760
    %3884 = vmatpush1.msra.mxu0 %v3883
    %3885 = vmatprep.subr.mxu0 0.0
    %v3886 = vand.u32 %v49, 4294901760
    %3887 = vmatpush1.msra.mxu0 %v3886
    %3888 = vmatprep.subr.mxu0 0.0
    %v3889 = vand.u32 %v50, 4294901760
    %3890 = vmatpush1.msra.mxu0 %v3889
    %3891 = vmatprep.subr.mxu0 0.0
    %v3892 = vand.u32 %v51, 4294901760
    %3893 = vmatpush1.msra.mxu0 %v3892
    %3894 = vmatprep.subr.mxu0 0.0
    %3895 = vmatpush1.msra.mxu0 0.0
    %3896 = vmatprep.subr.mxu0 0.0
    %3897 = vmatpush1.msra.mxu0 0.0
    %3898 = vmatprep.subr.mxu0 0.0
    %3899 = vmatpush1.msra.mxu0 0.0
    %3900 = vmatprep.subr.mxu0 0.0
    %3901 = vmatpush1.msra.mxu0 0.0
    %3902 = vmatprep.subr.mxu0 0.0
    %3903 = vmatpush1.msra.mxu0 0.0
    %3904 = vmatprep.subr.mxu0 0.0
    %3905 = vmatpush1.msra.mxu0 0.0
    %3906 = vmatprep.subr.mxu0 0.0
    %3907 = vmatpush1.msra.mxu0 0.0
    %3908 = vmatprep.subr.mxu0 0.0
    %3909 = vmatpush1.msra.mxu0 0.0
    %3910 = vmatprep.subr.mxu0 0.0
    %3911 = vmatpush1.msra.mxu0 0.0
    %3912 = vmatprep.subr.mxu0 0.0
    %3913 = vmatpush1.msra.mxu0 0.0
    %3914 = vmatprep.subr.mxu0 0.0
    %3915 = vmatpush1.msra.mxu0 0.0
    %3916 = vmatprep.subr.mxu0 0.0
    %3917 = vmatpush1.msra.mxu0 0.0
    %3918 = vmatprep.subr.mxu0 0.0
    %3919 = vmatpush1.msra.mxu0 0.0
    %3920 = vmatprep.subr.mxu0 0.0
    %3921 = vmatpush1.msra.mxu0 0.0
    %3922 = vmatprep.subr.mxu0 0.0
    %3923 = vmatpush1.msra.mxu0 0.0
    %3924 = vmatprep.subr.mxu0 0.0
    %3925 = vmatpush1.msra.mxu0 0.0
    %3926 = vmatprep.subr.mxu0 0.0
    %3927 = vmatpush1.msra.mxu0 0.0
    %3928 = vmatprep.subr.mxu0 0.0
    %3929 = vmatpush1.msra.mxu0 0.0
    %3930 = vmatprep.subr.mxu0 0.0
    %3931 = vmatpush1.msra.mxu0 0.0
    %3932 = vmatprep.subr.mxu0 0.0
    %3933 = vmatpush1.msra.mxu0 0.0
    %3934 = vmatprep.subr.mxu0 0.0
    %3935 = vmatpush1.msra.mxu0 0.0
    %3936 = vmatprep.subr.mxu0 0.0
    %3937 = vmatpush1.msra.mxu0 0.0
    %3938 = vmatprep.subr.mxu0 0.0
    %3939 = vmatpush1.msra.mxu0 0.0
    %3940 = vmatprep.subr.mxu0 0.0
    %3941 = vmatpush1.msra.mxu0 0.0
    %3942 = vmatprep.subr.mxu0 0.0
    %3943 = vmatpush1.msra.mxu0 0.0
    %3944 = vmatprep.subr.mxu0 0.0
    %3945 = vmatpush1.msra.mxu0 0.0
    %3946 = vmatprep.subr.mxu0 0.0
    %3947 = vmatpush1.msra.mxu0 0.0
    %3948 = vmatprep.subr.mxu0 0.0
    %3949 = vmatpush1.msra.mxu0 0.0
    %3950 = vmatprep.mubr.f32.mxu0 0.0
    %v3951 = vand.u32 %v3470, 4294901760
    %3952 = vmatmul.mubr.f32.gmra.mrb[0].mxu0 %v3951
    %v3953 = vpop.f32.mrb[0].mxu0
    %v3954 = vadd.f32 %v3879, %v3953
    %v3955 = vpop.f32.mrb[0].mxu0
    %3956 = vdwg.mxu0
    %vm3957 = vcmask 64512
    %3958 = vst.msk [vmem:[#allocation2] sm:$0xff] %vm3957, %v538
    %3959 = vst.msk [vmem:[#allocation2 + $0x8] sm:$0xff] %vm3957, %v1026
    %3960 = vst.msk [vmem:[#allocation2 + $0x10] sm:$0xff] %vm3957, %v1514
    %3961 = vst.msk [vmem:[#allocation2 + $0x18] sm:$0xff] %vm3957, %v2002
    %3962 = vst.msk [vmem:[#allocation2 + $0x20] sm:$0xff] %vm3957, %v2490
    %3963 = vst.msk [vmem:[#allocation2 + $0x28] sm:$0xff] %vm3957, %v2978
    %3964 = vst.msk [vmem:[#allocation2 + $0x30] sm:$0xff] %vm3957, %v3466
    %3965 = vst.msk [vmem:[#allocation2 + $0x38] sm:$0xff] %vm3957, %v3954
    // Predicated region
    $region10: #{tpu_custom_call.1} parent=1 // pred_check
      _
    $region11: #{tpu_custom_call.1} parent=1 // pred_check_branch
      %3967 = sbr.rel (0) target = $region13
    $region12: #{tpu_custom_call.1} parent=1 // pred_region
      %s3969 = ssub.s32 1024, 1024
      %3970 = vsyncadd [#allocation3], %s3969
      %s3971 = sshll.u32 [#allocation2], 4
      %s3972 = int_to_ptr.vmem [resolvable:$true] %s3971
      %3977 = dma.vmem_to_hbm [thread:$0]  %s3972, 1024, %s2, [#allocation3], 128, 128, 8
    $region13: #{tpu_custom_call.1} parent=1 // pred_fallthru
      _
    // Predicated region
    $region14: #{tpu_custom_call.1} parent=1 // pred_check
      _
    $region15: #{tpu_custom_call.1} parent=1 // pred_check_branch
      %3979 = sbr.rel (0) target = $region17
    $region16: #{tpu_custom_call.1} parent=1 // pred_region
      %3980 = dma.done [#allocation3], 1024
    $region17: #{tpu_custom_call.1} parent=1 // pred_fallthru
      _
    %3981 = vsyncpa [#allocation3], 1

</llo_original>
